<compile_context>
chip_gen: v7x
topology: tpu7x:2x2x1
jax: 0.10.0
libtpu: 0.0.40
codegen_flags: <defaults>
</compile_context>

<pallas_src>
import numpy as np
import jax
import jax.numpy as jnp
from jax.experimental import pallas as pl
from jax.experimental.pallas import tpu as pltpu

# ---------------- Spectrogram (Transform) constants -------------------------
N_FFT = 512
WIN_LENGTH = 128                            # Hann window support inside the 512 frame
HOP = 50
WIN_PAD_L = (N_FFT - WIN_LENGTH) // 2       # 192: left zero-pad of the centred window
N_FREQ_FULL = N_FFT // 2 + 1                # 257 (onesided)
N_FREQ_CROP = int(20 / 100 * N_FREQ_FULL + 2)   # 53 == image[:, :, :crop, :]
LANES = 128                                 # lane-dense magnitude width (freqs 0..52 used)
FEAT = 2048                                 # backbone feature width
POOL_T = 4                                  # adaptive-pool sizes of the spec scaffold
POOL_F = 4
POOL_C = 4
ROWS = 8                                    # (batch*ch) rows processed per grid step


def _adaptive_bins(length, size):
    """PyTorch AdaptiveAvgPool bin boundaries (start=floor, end=ceil; may overlap)."""
    return [((i * length) // size, -(-((i + 1) * length) // size)) for i in range(size)]


# ---------------- Pallas kernels ---------------------------------------------
def _spec_pool_kernel(frames_ref, basis_ref, pool_ref, out_ref):
    """frames: (rows*NFp, 128) bf16; basis: (128, 256) bf16 (Hann & 1e-3 folded,
    cos in lanes 0..127, -sin in 128..255); pool: (rows*4, rows*NFp) f32 block-diag
    time-bin means; out: (rows*4, 128) f32 time-pooled clip(|STFT|,0,10000)/1000."""
    z = jnp.dot(frames_ref[...], basis_ref[...], preferred_element_type=jnp.float32)
    zz = z * z                                           # lanes 0:128 = re^2, 128:256 = im^2
    mag = jnp.clip(jnp.sqrt(zz[:, :LANES] + zz[:, LANES:]), 0.0, 10.0)
    out_ref[...] = jnp.dot(pool_ref[...], mag, preferred_element_type=jnp.float32)


def _head_kernel(xe_ref, xs_ref, wce_ref, wcs_ref, b_ref, o_ref):
    """Collapsed head: out = xe @ Wce + xs @ Wcs + bias  (exact fold of
    proj_eeg -> concat -> Dropout(identity) -> fc)."""
    o_ref[...] = (jnp.dot(xe_ref[...], wce_ref[...], preferred_element_type=jnp.float32)
                  + jnp.dot(xs_ref[...], wcs_ref[...], preferred_element_type=jnp.float32)
                  + b_ref[...])


# ---------------- constant builders -------------------------------------------
def _build_spectro_basis():
    """(128, 256) fused real-DFT basis: windowed cos in lanes 0..52, windowed -sin in
    lanes 128..180; Hann window and the /1000 scale folded in.  bf16."""
    n = np.arange(WIN_LENGTH)
    hann = 0.5 * (1.0 - np.cos(2.0 * np.pi * n / WIN_LENGTH))        # periodic Hann(128)
    k = (np.arange(WIN_LENGTH) + WIN_PAD_L)[:, None].astype(np.float64)   # 192..319
    f = np.arange(N_FREQ_CROP)[None, :].astype(np.float64)
    ang = 2.0 * np.pi * k * f / N_FFT
    basis = np.zeros((WIN_LENGTH, 2 * LANES), np.float32)
    basis[:, :N_FREQ_CROP] = hann[:, None] * np.cos(ang) * 1e-3
    basis[:, LANES:LANES + N_FREQ_CROP] = hann[:, None] * (-np.sin(ang)) * 1e-3
    return jnp.asarray(basis, dtype=jnp.bfloat16)


def _build_time_pool_mask(n_frames, nf_pad, rows):
    """(rows*4, rows*nf_pad) block-diagonal time-bin-mean matrix (1/count folded in).
    Columns >= n_frames within each block are 0, so frame padding contributes nothing."""
    m = np.zeros((POOL_T, nf_pad), np.float32)
    for i, (s, e) in enumerate(_adaptive_bins(n_frames, POOL_T)):
        m[i, s:e] = 1.0 / (e - s)
    bd = np.zeros((rows * POOL_T, rows * nf_pad), np.float32)
    for r in range(rows):
        bd[r * POOL_T:(r + 1) * POOL_T, r * nf_pad:(r + 1) * nf_pad] = m
    return jnp.asarray(bd)


# ---------------- Pallas wrappers ---------------------------------------------
def pallas_spec_pooled(eeg):
    """Transform (Spectrogram(512,128,50,power=1) + clip/scale + crop to 53 freqs),
    fused with the time-adaptive-pooling of the spec-branch scaffold.
    Returns (bs, ch, POOL_F, POOL_T) float32."""
    bs, ch, T = eeg.shape
    BC = bs * ch
    assert T % HOP == 0
    n_frames = 1 + T // HOP
    assert 2 * HOP < WIN_LENGTH <= 3 * HOP   # 3-slice frame construction assumption

    # --- frame construction (XLA, 3 contiguous strided views, no gather) ---
    sig = eeg.reshape(BC, T)
    # Only 128 samples of each centred 512-frame see a nonzero window, so a reflect
    # pad of 64 (= n_fft/2 - 192) reproduces exactly the samples torch.stft uses.
    pad = N_FFT // 2 - WIN_PAD_L                                      # 64
    sig = jnp.pad(sig, ((0, 0), (pad, pad)), mode="reflect")          # (BC, T+128)
    ext_len = (n_frames + 2) * HOP
    sig = jnp.pad(sig, ((0, 0), (0, ext_len - sig.shape[1])))         # zero tail, unused
    p1 = sig[:, 0:n_frames * HOP].reshape(BC, n_frames, HOP)
    p2 = sig[:, HOP:(n_frames + 1) * HOP].reshape(BC, n_frames, HOP)
    p3 = sig[:, 2 * HOP:(n_frames + 2) * HOP].reshape(BC, n_frames, HOP)
    p3 = p3[:, :, :WIN_LENGTH - 2 * HOP]
    frames = jnp.concatenate([p1, p2, p3], axis=2)                    # (BC, n_frames, 128)

    # pad frame count to a multiple of 16 (bf16 sublane packing) and rows to ROWS
    nf_pad = -(-n_frames // 16) * 16
    rows = min(ROWS, BC)
    bc_pad = -(-BC // rows) * rows
    frames = jnp.pad(frames, ((0, bc_pad - BC), (0, nf_pad - n_frames), (0, 0)))
    frames = frames.reshape(bc_pad * nf_pad, WIN_LENGTH).astype(jnp.bfloat16)

    basis = _build_spectro_basis()
    pool = _build_time_pool_mask(n_frames, nf_pad, rows)

    grid = (bc_pad // rows,)
    out = pl.pallas_call(
        _spec_pool_kernel,
        out_shape=jax.ShapeDtypeStruct((bc_pad * POOL_T, LANES), jnp.float32),
        grid=grid,
        in_specs=[
            pl.BlockSpec((rows * nf_pad, WIN_LENGTH), lambda i: (i, 0)),
            pl.BlockSpec((WIN_LENGTH, 2 * LANES), lambda i: (0, 0)),
            pl.BlockSpec((rows * POOL_T, rows * nf_pad), lambda i: (0, 0)),
        ],
        out_specs=pl.BlockSpec((rows * POOL_T, LANES), lambda i: (i, 0)),
        compiler_params=pltpu.CompilerParams(dimension_semantics=("parallel",)),
    )(frames, basis, pool)

    # Frequency pooling over lanes 0..52 (tiny (BC,4,128) array, lanes >= 53 are 0
    # by construction and are excluded by the bin matrix).
    pooled_t = out.reshape(bc_pad, POOL_T, LANES)[:BC]                # (BC, time4, 128)
    fmat = np.zeros((LANES, POOL_F), np.float32)
    for i, (s, e) in enumerate(_adaptive_bins(N_FREQ_CROP, POOL_F)):
        fmat[s:e, i] = 1.0 / (e - s)
    pooled = jnp.einsum("btl,lf->bft", pooled_t, jnp.asarray(fmat))   # (BC, freq4, time4)
    return pooled.reshape(bs, ch, POOL_F, POOL_T)


def pallas_head(xe, xs, wce, wcs, bias):
    """Collapsed head: both projections, concat, Dropout(identity) and fc folded into
    two (64,6) matmuls + bias."""
    B = xe.shape[0]
    full = lambda a: pl.BlockSpec(a.shape, lambda i: (0, 0))
    return pl.pallas_call(
        _head_kernel,
        out_shape=jax.ShapeDtypeStruct((B, 6), jnp.float32),
        grid=(1,),
        in_specs=[full(xe), full(xs), full(wce), full(wcs), full(bias)],
        out_specs=pl.BlockSpec((B, 6), lambda i: (0, 0)),
    )(xe, xs, wce, wcs, bias)


# ---------------- model ---------------------------------------------------------
class NetPallas:
    """JAX/Pallas re-implementation of `Net` (inference semantics, Dropout = identity)."""

    def __init__(self, key):
        k1, k2, k3, k4, k5, k6 = jax.random.split(key, 6)
        w_eeg = jax.random.normal(k1, (3 * 8 * 8, FEAT), jnp.float32) * 0.02
        b_eeg = jax.random.normal(k2, (FEAT,), jnp.float32) * 0.02
        w_spec = jax.random.normal(k3, (3 * 4 * 4 * 4, FEAT), jnp.float32) * 0.02
        b_spec = jax.random.normal(k4, (FEAT,), jnp.float32) * 0.02
        lim = 1.0 / np.sqrt(2 * FEAT)
        w_fc = jax.random.uniform(k5, (2 * FEAT, 6), jnp.float32, -lim, lim)
        b_fc = jax.random.uniform(k6, (6,), jnp.float32, -lim, lim)

        # The three stacked input channels are identical -> fold the 3x replication
        # into the projections, then collapse proj @ fc offline (exact: Dropout is
        # identity and there is no nonlinearity between proj and fc):
        #   out = xe @ (We @ Wfc_e) + xs @ (Ws @ Wfc_s) + (be @ Wfc_e + bs @ Wfc_s + bfc)
        w_eeg_f = w_eeg[:64] + w_eeg[64:128] + w_eeg[128:]            # (64, 2048)
        w_spec_f = w_spec[:64] + w_spec[64:128] + w_spec[128:]        # (64, 2048)
        wf_e, wf_s = w_fc[:FEAT], w_fc[FEAT:]
        self.wce = w_eeg_f @ wf_e                                     # (64, 6)
        self.wcs = w_spec_f @ wf_s                                    # (64, 6)
        self.bias = b_eeg[None, :] @ wf_e + b_spec[None, :] @ wf_s + b_fc[None, :]  # (1, 6)

        self._forward = jax.jit(self._forward_impl)

    # ----- Modeleeg branch (backbone replaced, see TODO) -----
    def _pool_wave(self, eeg):
        bs = eeg.shape[0]
        r = eeg.reshape(bs, 16, 1000, 10)
        r = jnp.transpose(r, (0, 1, 3, 2)).reshape(bs, 160, 1000)
        # TODO(synk): timm efficientnet_b5 forward_features has no clean Pallas
        # equivalent; replaced by adaptive-avg-pool(8x8) + deterministic linear.
        pooled = r.reshape(bs, 8, 20, 8, 125).mean(axis=(2, 4))       # (bs, 8, 8)
        return pooled.reshape(bs, 64)

    def _forward_impl(self, eeg):
        bs = eeg.shape[0]
        # TODO(synk): pytorchvideo x3d_l backbone has no clean Pallas equivalent;
        # replaced by adaptive-avg-pool(4x4x4) + deterministic linear (freq/time
        # pooling is fused into the spectrogram kernel, channel pooling here).
        spec_pool = pallas_spec_pooled(eeg)                           # (bs, 16, 4, 4)
        xs = spec_pool.reshape(bs, POOL_C, 16 // POOL_C, POOL_F, POOL_T).mean(axis=2)
        xs = xs.reshape(bs, POOL_C * POOL_F * POOL_T)                 # (bs, 64)
        xe = self._pool_wave(eeg)                                     # (bs, 64)
        # Dropout(0.5) at inference -> identity; projections + concat + fc collapsed.
        return pallas_head(xe, xs, self.wce, self.wcs, self.bias)     # (bs, 6)

    def __call__(self, eeg):
        return self._forward(eeg)


if __name__ == "__main__":
    # eeg must reshape to (bs, 16, 1000, 10) -> (bs, 16, 10000) per batch element.
    eeg = jax.random.normal(jax.random.PRNGKey(0), (2, 16, 10000), jnp.float32)
    net = NetPallas(jax.random.PRNGKey(42))
    out = net(eeg)
    out = jax.block_until_ready(out)
    assert out.shape == (2, 6) and out.dtype == jnp.float32
    print("KERNEL_OK")
</pallas_src>

<mosaic_0001>
module attributes {stable_mosaic.version = 11 : i64} {
  func.func @_spec_pool_kernel(%arg0: i32, %arg1: memref<1664x128xbf16, #tpu.memory_space<vmem>>, %arg2: memref<128x256xbf16, #tpu.memory_space<vmem>>, %arg3: memref<32x1664xf32, #tpu.memory_space<vmem>>, %arg4: memref<32x128xf32, #tpu.memory_space<vmem>>) attributes {dimension_semantics = [#tpu.dimension_semantics<parallel>], iteration_bounds = array<i64: 4>, scalar_prefetch = 0 : i64, scratch_operands = 0 : i64, tpu.core_type = #tpu.core_type<tc>, window_params = [{transform_indices = @transform_0, window_bounds = array<i64: 1664, 128>}, {pipeline_mode = #tpu.pipeline_mode<synchronous>, transform_indices = @transform_1, window_bounds = array<i64: 128, 256>}, {pipeline_mode = #tpu.pipeline_mode<synchronous>, transform_indices = @transform_2, window_bounds = array<i64: 32, 1664>}, {transform_indices = @transform_3, window_bounds = array<i64: 32, 128>}]} {
    %c0 = arith.constant 0 : index
    %c0_0 = arith.constant 0 : index
    %0 = vector.load %arg1[%c0, %c0_0] : memref<1664x128xbf16, #tpu.memory_space<vmem>>, vector<1664x128xbf16>
    %c0_1 = arith.constant 0 : index
    %c0_2 = arith.constant 0 : index
    %1 = vector.load %arg2[%c0_1, %c0_2] : memref<128x256xbf16, #tpu.memory_space<vmem>>, vector<128x256xbf16>
    %cst = arith.constant dense<0.000000e+00> : vector<1664x256xf32>
    %2 = tpu.matmul %0, %1, %cst {dimension_numbers = #tpu.dot_dimension_numbers<[1], [0], [0], [1], [0, 0, 1, 1], [], []>} : vector<1664x128xbf16>, vector<128x256xbf16>, vector<1664x256xf32> -> vector<1664x256xf32>
    %3 = arith.mulf %2, %2 : vector<1664x256xf32>
    %4 = vector.extract_strided_slice %3 {offsets = [0, 0], sizes = [1664, 128], strides = [1, 1]} : vector<1664x256xf32> to vector<1664x128xf32>
    %5 = vector.extract_strided_slice %3 {offsets = [0, 128], sizes = [1664, 128], strides = [1, 1]} : vector<1664x256xf32> to vector<1664x128xf32>
    %6 = arith.addf %4, %5 : vector<1664x128xf32>
    %7 = math.sqrt %6 : vector<1664x128xf32>
    %cst_3 = arith.constant 0.000000e+00 : f32
    %cst_4 = arith.constant 1.000000e+01 : f32
    %8 = vector.broadcast %cst_3 : f32 to vector<1664x128xf32>
    %9 = arith.maximumf %8, %7 : vector<1664x128xf32>
    %10 = vector.broadcast %cst_4 : f32 to vector<1664x128xf32>
    %11 = arith.minimumf %10, %9 : vector<1664x128xf32>
    %c0_5 = arith.constant 0 : index
    %c0_6 = arith.constant 0 : index
    %12 = vector.load %arg3[%c0_5, %c0_6] : memref<32x1664xf32, #tpu.memory_space<vmem>>, vector<32x1664xf32>
    %cst_7 = arith.constant dense<0.000000e+00> : vector<32x128xf32>
    %13 = tpu.matmul %12, %11, %cst_7 {dimension_numbers = #tpu.dot_dimension_numbers<[1], [0], [0], [1], [0, 0, 1, 1], [], []>} : vector<32x1664xf32>, vector<1664x128xf32>, vector<32x128xf32> -> vector<32x128xf32>
    %c0_8 = arith.constant 0 : index
    %c0_9 = arith.constant 0 : index
    %14 = vector.load %arg4[%c0_8, %c0_9] : memref<32x128xf32, #tpu.memory_space<vmem>>, vector<32x128xf32>
    tpu.vector_store %arg4[%c0_8, %c0_9], %13 {strides = array<i32>} : memref<32x128xf32, #tpu.memory_space<vmem>>, vector<32x128xf32>,
    return
  }
  func.func @transform_0(%arg0: i32) -> (i32, i32) {
    %c0_i32 = arith.constant 0 : i32
    %c0_i32_0 = arith.constant 0 : i32
    return %arg0, %c0_i32 : i32, i32
  }
  func.func @transform_1(%arg0: i32) -> (i32, i32) {
    %c0_i32 = arith.constant 0 : i32
    %c0_i32_0 = arith.constant 0 : i32
    %c0_i32_1 = arith.constant 0 : i32
    return %c0_i32, %c0_i32_0 : i32, i32
  }
  func.func @transform_2(%arg0: i32) -> (i32, i32) {
    %c0_i32 = arith.constant 0 : i32
    %c0_i32_0 = arith.constant 0 : i32
    %c0_i32_1 = arith.constant 0 : i32
    return %c0_i32, %c0_i32_0 : i32, i32
  }
  func.func @transform_3(%arg0: i32) -> (i32, i32) {
    %c0_i32 = arith.constant 0 : i32
    %c0_i32_0 = arith.constant 0 : i32
    return %arg0, %c0_i32 : i32, i32
  }
}

module attributes {stable_mosaic.version = 11 : i64} {
  func.func @_head_kernel(%arg0: i32, %arg1: memref<2x64xf32, #tpu.memory_space<vmem>>, %arg2: memref<2x64xf32, #tpu.memory_space<vmem>>, %arg3: memref<64x6xf32, #tpu.memory_space<vmem>>, %arg4: memref<64x6xf32, #tpu.memory_space<vmem>>, %arg5: memref<1x6xf32, #tpu.memory_space<vmem>>, %arg6: memref<2x6xf32, #tpu.memory_space<vmem>>) attributes {dimension_semantics = [#tpu.dimension_semantics<arbitrary>], iteration_bounds = array<i64: 1>, scalar_prefetch = 0 : i64, scratch_operands = 0 : i64, tpu.core_type = #tpu.core_type<tc>, window_params = [{pipeline_mode = #tpu.pipeline_mode<synchronous>, transform_indices = @transform_0, window_bounds = array<i64: 2, 64>}, {pipeline_mode = #tpu.pipeline_mode<synchronous>, transform_indices = @transform_1, window_bounds = array<i64: 2, 64>}, {pipeline_mode = #tpu.pipeline_mode<synchronous>, transform_indices = @transform_2, window_bounds = array<i64: 64, 6>}, {pipeline_mode = #tpu.pipeline_mode<synchronous>, transform_indices = @transform_3, window_bounds = array<i64: 64, 6>}, {pipeline_mode = #tpu.pipeline_mode<synchronous>, transform_indices = @transform_4, window_bounds = array<i64: 1, 6>}, {pipeline_mode = #tpu.pipeline_mode<synchronous>, transform_indices = @transform_5, window_bounds = array<i64: 2, 6>}]} {
    %c0 = arith.constant 0 : index
    %c0_0 = arith.constant 0 : index
    %0 = vector.load %arg1[%c0, %c0_0] : memref<2x64xf32, #tpu.memory_space<vmem>>, vector<2x64xf32>
    %c0_1 = arith.constant 0 : index
    %c0_2 = arith.constant 0 : index
    %1 = vector.load %arg3[%c0_1, %c0_2] : memref<64x6xf32, #tpu.memory_space<vmem>>, vector<64x6xf32>
    %cst = arith.constant dense<0.000000e+00> : vector<2x6xf32>
    %2 = tpu.matmul %0, %1, %cst {dimension_numbers = #tpu.dot_dimension_numbers<[1], [0], [0], [1], [0, 0, 1, 1], [], []>} : vector<2x64xf32>, vector<64x6xf32>, vector<2x6xf32> -> vector<2x6xf32>
    %c0_3 = arith.constant 0 : index
    %c0_4 = arith.constant 0 : index
    %3 = vector.load %arg2[%c0_3, %c0_4] : memref<2x64xf32, #tpu.memory_space<vmem>>, vector<2x64xf32>
    %c0_5 = arith.constant 0 : index
    %c0_6 = arith.constant 0 : index
    %4 = vector.load %arg4[%c0_5, %c0_6] : memref<64x6xf32, #tpu.memory_space<vmem>>, vector<64x6xf32>
    %cst_7 = arith.constant dense<0.000000e+00> : vector<2x6xf32>
    %5 = tpu.matmul %3, %4, %cst_7 {dimension_numbers = #tpu.dot_dimension_numbers<[1], [0], [0], [1], [0, 0, 1, 1], [], []>} : vector<2x64xf32>, vector<64x6xf32>, vector<2x6xf32> -> vector<2x6xf32>
    %6 = arith.addf %2, %5 : vector<2x6xf32>
    %c0_8 = arith.constant 0 : index
    %c0_9 = arith.constant 0 : index
    %7 = vector.load %arg5[%c0_8, %c0_9] : memref<1x6xf32, #tpu.memory_space<vmem>>, vector<1x6xf32>
    %8 = vector.broadcast %7 : vector<1x6xf32> to vector<2x6xf32>
    %9 = arith.addf %6, %8 : vector<2x6xf32>
    %c0_10 = arith.constant 0 : index
    %c0_11 = arith.constant 0 : index
    %10 = vector.load %arg6[%c0_10, %c0_11] : memref<2x6xf32, #tpu.memory_space<vmem>>, vector<2x6xf32>
    tpu.vector_store %arg6[%c0_10, %c0_11], %9 {strides = array<i32>} : memref<2x6xf32, #tpu.memory_space<vmem>>, vector<2x6xf32>,
    return
  }
  func.func @transform_0(%arg0: i32) -> (i32, i32) {
    %c0_i32 = arith.constant 0 : i32
    %c0_i32_0 = arith.constant 0 : i32
    %c0_i32_1 = arith.constant 0 : i32
    return %c0_i32, %c0_i32_0 : i32, i32
  }
  func.func @transform_1(%arg0: i32) -> (i32, i32) {
    %c0_i32 = arith.constant 0 : i32
    %c0_i32_0 = arith.constant 0 : i32
    %c0_i32_1 = arith.constant 0 : i32
    return %c0_i32, %c0_i32_0 : i32, i32
  }
  func.func @transform_2(%arg0: i32) -> (i32, i32) {
    %c0_i32 = arith.constant 0 : i32
    %c0_i32_0 = arith.constant 0 : i32
    %c0_i32_1 = arith.constant 0 : i32
    return %c0_i32, %c0_i32_0 : i32, i32
  }
  func.func @transform_3(%arg0: i32) -> (i32, i32) {
    %c0_i32 = arith.constant 0 : i32
    %c0_i32_0 = arith.constant 0 : i32
    %c0_i32_1 = arith.constant 0 : i32
    return %c0_i32, %c0_i32_0 : i32, i32
  }
  func.func @transform_4(%arg0: i32) -> (i32, i32) {
    %c0_i32 = arith.constant 0 : i32
    %c0_i32_0 = arith.constant 0 : i32
    %c0_i32_1 = arith.constant 0 : i32
    return %c0_i32, %c0_i32_0 : i32, i32
  }
  func.func @transform_5(%arg0: i32) -> (i32, i32) {
    %c0_i32 = arith.constant 0 : i32
    %c0_i32_0 = arith.constant 0 : i32
    %c0_i32_1 = arith.constant 0 : i32
    return %c0_i32, %c0_i32_0 : i32, i32
  }
}

</mosaic_0001>

<llo_original>
// kernel: _forward_impl.2
$region0: #{_forward_impl.2}
  #allocation0 [shape = 'u32[]', space=smem, size = 0x4, offset = 0x4, fixed_abs, tag = 'smem constant byte address 0x4 - core index']
  #allocation1 [shape = 'u32[144,128]{1,0:T(1,128)}', space=vmem, size = 0x12000, scoped, tag = 'internal scratch']
  %s0 = inlined_call_operand.vmem [shape: bf16[6656,128], index: 0, kind: input, shape index: {}]
  %s1 = inlined_call_operand.vmem [shape: bf16[128,256], index: 1, kind: input, shape index: {}]
  %s2 = inlined_call_operand.vmem [shape: f32[32,1664], index: 2, kind: input, shape index: {}]
  %s3 = inlined_call_operand.vmem [shape: f32[128,128], index: 3, kind: output, shape index: {}]
  %s4 = sld [smem:[#allocation0]]
  $region45: #{_forward_impl.2} parent=0
    _
  %s6 = ssub.s32 1, %s4
  %s7 = scalar_select 0, %s6, %s4
  loop: start=0, step=1, limit=6
  $region2: #{_forward_impl.2} parent=0 // loop_pre_header
    _
  $region3: #{_forward_impl.2} parent=0 // loop_header
    %s9 = sphi 0, %s13
    %p10 = scmp.ge.s32.totalorder %s9, 6
    %s19 = sphi 0, %s21
    %s22 = sphi 0, %s19
    %s23 = sphi 0, %s22
    %s39 = sphi 0, %s23
    %s43 = sphi 0, %s43
    %s45 = sphi 0, %s43
    %s46 = sphi 0, %s45
    %s60 = sphi 0, %s46
    %s64 = sphi 0, %s64
    %s66 = sphi 0, %s64
    %s67 = sphi 0, %s66
    %s81 = sphi 0, %s67
    %s87 = sphi 0, %s89
    %s90 = sphi 0, %s87
    %s91 = sphi 0, %s90
    %s107 = sphi 0, %s91
  $region4: #{_forward_impl.2} parent=0 // loop_header_branch
    %12 = sbr.rel (%p10) target = $region8
  $region5: #{_forward_impl.2} parent=0 // loop_body
    %s14 = ssub.s32 %s9, 1
    %s15 = ssub.s32 %s9, 2
    %s16 = sadd.s32 %s9, 1
    %s17 = ssub.s32 %s9, %s16
    %p18 = scmp.eq.s32.totalorder %s17, 0
    %s20 = sadd.s32 %s19, 1
    %s21 = scalar_select %p18, %s19, %s20
    %p24 = pneg %p18
    %p25 = scmp.eq.s32.totalorder %s9, 3
    %p26 = por %p24, %p25
    %p27 = scmp.ne.s32.totalorder %s19, %s22
    %p28 = scmp.eq.s32.totalorder %s9, 0
    %p29 = por %p27, %p28
    %p30 = scmp.ne.s32.totalorder %s19, %s22
    %p31 = scmp.eq.s32.totalorder %s14, 3
    %p32 = por %p30, %p31
    %p33 = scmp.ne.s32.totalorder %s22, %s23
    %p34 = scmp.eq.s32.totalorder %s14, 0
    %p35 = por %p33, %p34
    %p36 = scmp.ne.s32.totalorder %s22, %s23
    %p37 = scmp.eq.s32.totalorder %s15, 3
    %p38 = por %p36, %p37
    %p40 = scmp.ne.s32.totalorder %s23, %s39
    %p41 = scmp.eq.s32.totalorder %s15, 0
    %p42 = por %p40, %p41
    %s44 = sadd.s32 %s43, 1
    %p47 = scmp.eq.s32.totalorder %s9, 3
    %p48 = scmp.ne.s32.totalorder %s43, %s45
    %p49 = scmp.eq.s32.totalorder %s9, 0
    %p50 = por %p48, %p49
    %p51 = scmp.ne.s32.totalorder %s43, %s45
    %p52 = scmp.eq.s32.totalorder %s14, 3
    %p53 = por %p51, %p52
    %p54 = scmp.ne.s32.totalorder %s45, %s46
    %p55 = scmp.eq.s32.totalorder %s14, 0
    %p56 = por %p54, %p55
    %p57 = scmp.ne.s32.totalorder %s45, %s46
    %p58 = scmp.eq.s32.totalorder %s15, 3
    %p59 = por %p57, %p58
    %p61 = scmp.ne.s32.totalorder %s46, %s60
    %p62 = scmp.eq.s32.totalorder %s15, 0
    %p63 = por %p61, %p62
    %s65 = sadd.s32 %s64, 1
    %p68 = scmp.eq.s32.totalorder %s9, 3
    %p69 = scmp.ne.s32.totalorder %s64, %s66
    %p70 = scmp.eq.s32.totalorder %s9, 0
    %p71 = por %p69, %p70
    %p72 = scmp.ne.s32.totalorder %s64, %s66
    %p73 = scmp.eq.s32.totalorder %s14, 3
    %p74 = por %p72, %p73
    %p75 = scmp.ne.s32.totalorder %s66, %s67
    %p76 = scmp.eq.s32.totalorder %s14, 0
    %p77 = por %p75, %p76
    %p78 = scmp.ne.s32.totalorder %s66, %s67
    %p79 = scmp.eq.s32.totalorder %s15, 3
    %p80 = por %p78, %p79
    %p82 = scmp.ne.s32.totalorder %s67, %s81
    %p83 = scmp.eq.s32.totalorder %s15, 0
    %p84 = por %p82, %p83
    %s85 = ssub.s32 %s9, %s16
    %p86 = scmp.eq.s32.totalorder %s85, 0
    %s88 = sadd.s32 %s87, 1
    %s89 = scalar_select %p86, %s87, %s88
    %p92 = pneg %p86
    %p93 = scmp.eq.s32.totalorder %s9, 3
    %p94 = por %p92, %p93
    %p95 = scmp.ne.s32.totalorder %s87, %s90
    %p96 = scmp.eq.s32.totalorder %s9, 0
    %p97 = por %p95, %p96
    %p98 = scmp.ne.s32.totalorder %s87, %s90
    %p99 = scmp.eq.s32.totalorder %s14, 3
    %p100 = por %p98, %p99
    %p101 = scmp.ne.s32.totalorder %s90, %s91
    %p102 = scmp.eq.s32.totalorder %s14, 0
    %p103 = por %p101, %p102
    %p104 = scmp.ne.s32.totalorder %s90, %s91
    %p105 = scmp.eq.s32.totalorder %s15, 3
    %p106 = por %p104, %p105
    %p108 = scmp.ne.s32.totalorder %s91, %s107
    %p109 = scmp.eq.s32.totalorder %s15, 0
    %p110 = por %p108, %p109
    %p111 = scmp.le.s32.totalorder 1, %s9
    %p112 = scmp.lt.s32.totalorder %s9, 5
    %p113 = pnand %p111, %p112
    %p114 = pneg %p113
    // Predicated region
    $region9: #{_forward_impl.2} parent=5 // pred_check
      _
    $region10: #{_forward_impl.2} parent=5 // pred_check_branch
      %116 = sbr.rel (%p113) target = $region12
    $region11: #{_forward_impl.2} parent=5 // pred_region
      %s117 = ssub.s32 %s9, 1
      // Predicated region
      $region13: #{_forward_impl.2} parent=11 // pred_check
        %p118 = pneg %p56
      $region14: #{_forward_impl.2} parent=11 // pred_check_branch
        %120 = sbr.rel (%p118) target = $region16
      $region15: #{_forward_impl.2} parent=11 // pred_region
        _
      $region16: #{_forward_impl.2} parent=11 // pred_fallthru
        _
      // Predicated region
      $region17: #{_forward_impl.2} parent=11 // pred_check
        %p121 = pneg %p77
      $region18: #{_forward_impl.2} parent=11 // pred_check_branch
        %123 = sbr.rel (%p121) target = $region20
      $region19: #{_forward_impl.2} parent=11 // pred_region
        _
      $region20: #{_forward_impl.2} parent=11 // pred_fallthru
        _
    $region12: #{_forward_impl.2} parent=5 // pred_fallthru
      _
    %p124 = scmp.lt.s32.totalorder %s9, 4
    // Predicated region
    $region21: #{_forward_impl.2} parent=5 // pred_check
      %p125 = pneg %p124
    $region22: #{_forward_impl.2} parent=5 // pred_check_branch
      %127 = sbr.rel (%p125) target = $region24
    $region23: #{_forward_impl.2} parent=5 // pred_region
      // Predicated region
      $region25: #{_forward_impl.2} parent=23 // pred_check
        %p128 = pneg %p29
      $region26: #{_forward_impl.2} parent=23 // pred_check_branch
        %130 = sbr.rel (%p128) target = $region28
      $region27: #{_forward_impl.2} parent=23 // pred_region
        %s131 = smul.u32 208, %s9
        %p132 = scmp.lt.s32.totalorder %s131, 831
        %s133 = scalar_select %p132, %s131, 831
        %s134 = smul.addr %s133, 4
        %s135 = scalar_lea.vmem %s0, %s134
        %s136 = smul.u32 208, %s9
      $region28: #{_forward_impl.2} parent=23 // pred_fallthru
        _
    $region24: #{_forward_impl.2} parent=5 // pred_fallthru
      _
    %p137 = scmp.le.s32.totalorder 1, %s9
    %p138 = scmp.lt.s32.totalorder %s9, 5
    %p139 = pnand %p137, %p138
    %p140 = pneg %p139
    // Predicated region
    $region29: #{_forward_impl.2} parent=5 // pred_check
      _
    $region30: #{_forward_impl.2} parent=5 // pred_check_branch
      %142 = sbr.rel (%p139) target = $region32
    $region31: #{_forward_impl.2} parent=5 // pred_region
      %s143 = ssub.s32 %s9, 1
      %s144 = smul.u32 208, %s14
      %p145 = scmp.lt.s32.totalorder %s144, 831
      %s146 = scalar_select %p145, %s144, 831
      %s147 = smul.addr %s146, 4
      %s148 = scalar_lea.vmem %s0, %s147
      %p149 = pneg %p35
      %p150 = pneg %p32
      %p151 = pneg %p56
      %p152 = pneg %p53
      %p153 = pneg %p77
      %p154 = pneg %p74
      %p155 = pneg %p103
      %p156 = pneg %p100
      %s157 = smul.u32 4, %s14
      %p158 = scmp.lt.s32.totalorder %s157, 15
      %s159 = scalar_select %p158, %s157, 15
      %s160 = smul.addr %s159, 8
      %s161 = scalar_lea.vmem %s3, %s160
      %s162 = smul.u32 208, %s14
      %p163 = scmp.lt.s32.totalorder %s162, 831
      %s164 = scalar_select %p163, %s162, 831
      %s165 = smul.addr %s164, 4
      %s166 = scalar_lea.vmem %s0, %s165
      %s167 = smul.u32 208, %s14
      %s168 = smul.u32 4, %s14
      %p169 = scmp.lt.s32.totalorder %s168, 15
      %s170 = scalar_select %p169, %s168, 15
      %s171 = smul.addr %s170, 8
      %s172 = scalar_lea.vmem %s3, %s171
      %s173 = smul.u32 4, %s14
      %v175 = vld [vmem:[%s166] sm:$0xf]
      %v176 = vld [vmem:[%s166 + $0x4] sm:$0xf]
      %v177 = vld [vmem:[%s166 + $0x8] sm:$0xf]
      %v178 = vld [vmem:[%s166 + $0xc] sm:$0xf]
      %v179 = vld [vmem:[%s166 + $0x10] sm:$0xf]
      %v180 = vld [vmem:[%s166 + $0x14] sm:$0xf]
      %v181 = vld [vmem:[%s166 + $0x18] sm:$0xf]
      %v182 = vld [vmem:[%s166 + $0x1c] sm:$0xf]
      %v183 = vld [vmem:[%s166 + $0x20] sm:$0xf]
      %v184 = vld [vmem:[%s166 + $0x24] sm:$0xf]
      %v185 = vld [vmem:[%s166 + $0x28] sm:$0xf]
      %v186 = vld [vmem:[%s166 + $0x2c] sm:$0xf]
      %v187 = vld [vmem:[%s166 + $0x30] sm:$0xf]
      %v188 = vld [vmem:[%s166 + $0x34] sm:$0xf]
      %v189 = vld [vmem:[%s166 + $0x38] sm:$0xf]
      %v190 = vld [vmem:[%s166 + $0x3c] sm:$0xf]
      %v191 = vld [vmem:[%s166 + $0x40] sm:$0xf]
      %v192 = vld [vmem:[%s166 + $0x44] sm:$0xf]
      %v193 = vld [vmem:[%s166 + $0x48] sm:$0xf]
      %v194 = vld [vmem:[%s166 + $0x4c] sm:$0xf]
      %v195 = vld [vmem:[%s166 + $0x50] sm:$0xf]
      %v196 = vld [vmem:[%s166 + $0x54] sm:$0xf]
      %v197 = vld [vmem:[%s166 + $0x58] sm:$0xf]
      %v198 = vld [vmem:[%s166 + $0x5c] sm:$0xf]
      %v199 = vld [vmem:[%s166 + $0x60] sm:$0xf]
      %v200 = vld [vmem:[%s166 + $0x64] sm:$0xf]
      %v201 = vld [vmem:[%s166 + $0x68] sm:$0xf]
      %v202 = vld [vmem:[%s166 + $0x6c] sm:$0xf]
      %v203 = vld [vmem:[%s166 + $0x70] sm:$0xf]
      %v204 = vld [vmem:[%s166 + $0x74] sm:$0xf]
      %v205 = vld [vmem:[%s166 + $0x78] sm:$0xf]
      %v206 = vld [vmem:[%s166 + $0x7c] sm:$0xf]
      %v207 = vld [vmem:[%s166 + $0x80] sm:$0xf]
      %v208 = vld [vmem:[%s166 + $0x84] sm:$0xf]
      %v209 = vld [vmem:[%s166 + $0x88] sm:$0xf]
      %v210 = vld [vmem:[%s166 + $0x8c] sm:$0xf]
      %v211 = vld [vmem:[%s166 + $0x90] sm:$0xf]
      %v212 = vld [vmem:[%s166 + $0x94] sm:$0xf]
      %v213 = vld [vmem:[%s166 + $0x98] sm:$0xf]
      %v214 = vld [vmem:[%s166 + $0x9c] sm:$0xf]
      %v215 = vld [vmem:[%s166 + $0xa0] sm:$0xf]
      %v216 = vld [vmem:[%s166 + $0xa4] sm:$0xf]
      %v217 = vld [vmem:[%s166 + $0xa8] sm:$0xf]
      %v218 = vld [vmem:[%s166 + $0xac] sm:$0xf]
      %v219 = vld [vmem:[%s166 + $0xb0] sm:$0xf]
      %v220 = vld [vmem:[%s166 + $0xb4] sm:$0xf]
      %v221 = vld [vmem:[%s166 + $0xb8] sm:$0xf]
      %v222 = vld [vmem:[%s166 + $0xbc] sm:$0xf]
      %v223 = vld [vmem:[%s166 + $0xc0] sm:$0xf]
      %v224 = vld [vmem:[%s166 + $0xc4] sm:$0xf]
      %v225 = vld [vmem:[%s166 + $0xc8] sm:$0xf]
      %v226 = vld [vmem:[%s166 + $0xcc] sm:$0xf]
      %v227 = vld [vmem:[%s166 + $0xd0] sm:$0xf]
      %v228 = vld [vmem:[%s166 + $0xd4] sm:$0xf]
      %v229 = vld [vmem:[%s166 + $0xd8] sm:$0xf]
      %v230 = vld [vmem:[%s166 + $0xdc] sm:$0xf]
      %v231 = vld [vmem:[%s166 + $0xe0] sm:$0xf]
      %v232 = vld [vmem:[%s166 + $0xe4] sm:$0xf]
      %v233 = vld [vmem:[%s166 + $0xe8] sm:$0xf]
      %v234 = vld [vmem:[%s166 + $0xec] sm:$0xf]
      %v235 = vld [vmem:[%s166 + $0xf0] sm:$0xf]
      %v236 = vld [vmem:[%s166 + $0xf4] sm:$0xf]
      %v237 = vld [vmem:[%s166 + $0xf8] sm:$0xf]
      %v238 = vld [vmem:[%s166 + $0xfc] sm:$0xf]
      %v239 = vld [vmem:[%s166 + $0x100] sm:$0xf]
      %v240 = vld [vmem:[%s166 + $0x104] sm:$0xf]
      %v241 = vld [vmem:[%s166 + $0x108] sm:$0xf]
      %v242 = vld [vmem:[%s166 + $0x10c] sm:$0xf]
      %v243 = vld [vmem:[%s166 + $0x110] sm:$0xf]
      %v244 = vld [vmem:[%s166 + $0x114] sm:$0xf]
      %v245 = vld [vmem:[%s166 + $0x118] sm:$0xf]
      %v246 = vld [vmem:[%s166 + $0x11c] sm:$0xf]
      %v247 = vld [vmem:[%s166 + $0x120] sm:$0xf]
      %v248 = vld [vmem:[%s166 + $0x124] sm:$0xf]
      %v249 = vld [vmem:[%s166 + $0x128] sm:$0xf]
      %v250 = vld [vmem:[%s166 + $0x12c] sm:$0xf]
      %v251 = vld [vmem:[%s166 + $0x130] sm:$0xf]
      %v252 = vld [vmem:[%s166 + $0x134] sm:$0xf]
      %v253 = vld [vmem:[%s166 + $0x138] sm:$0xf]
      %v254 = vld [vmem:[%s166 + $0x13c] sm:$0xf]
      %v255 = vld [vmem:[%s166 + $0x140] sm:$0xf]
      %v256 = vld [vmem:[%s166 + $0x144] sm:$0xf]
      %v257 = vld [vmem:[%s166 + $0x148] sm:$0xf]
      %v258 = vld [vmem:[%s166 + $0x14c] sm:$0xf]
      %v259 = vld [vmem:[%s166 + $0x150] sm:$0xf]
      %v260 = vld [vmem:[%s166 + $0x154] sm:$0xf]
      %v261 = vld [vmem:[%s166 + $0x158] sm:$0xf]
      %v262 = vld [vmem:[%s166 + $0x15c] sm:$0xf]
      %v263 = vld [vmem:[%s166 + $0x160] sm:$0xf]
      %v264 = vld [vmem:[%s166 + $0x164] sm:$0xf]
      %v265 = vld [vmem:[%s166 + $0x168] sm:$0xf]
      %v266 = vld [vmem:[%s166 + $0x16c] sm:$0xf]
      %v267 = vld [vmem:[%s166 + $0x170] sm:$0xf]
      %v268 = vld [vmem:[%s166 + $0x174] sm:$0xf]
      %v269 = vld [vmem:[%s166 + $0x178] sm:$0xf]
      %v270 = vld [vmem:[%s166 + $0x17c] sm:$0xf]
      %v271 = vld [vmem:[%s166 + $0x180] sm:$0xf]
      %v272 = vld [vmem:[%s166 + $0x184] sm:$0xf]
      %v273 = vld [vmem:[%s166 + $0x188] sm:$0xf]
      %v274 = vld [vmem:[%s166 + $0x18c] sm:$0xf]
      %v275 = vld [vmem:[%s166 + $0x190] sm:$0xf]
      %v276 = vld [vmem:[%s166 + $0x194] sm:$0xf]
      %v277 = vld [vmem:[%s166 + $0x198] sm:$0xf]
      %v278 = vld [vmem:[%s166 + $0x19c] sm:$0xf]
      %v279 = vld [vmem:[%s166 + $0x1a0] sm:$0xf]
      %v280 = vld [vmem:[%s166 + $0x1a4] sm:$0xf]
      %v281 = vld [vmem:[%s166 + $0x1a8] sm:$0xf]
      %v282 = vld [vmem:[%s166 + $0x1ac] sm:$0xf]
      %v283 = vld [vmem:[%s166 + $0x1b0] sm:$0xf]
      %v284 = vld [vmem:[%s166 + $0x1b4] sm:$0xf]
      %v285 = vld [vmem:[%s166 + $0x1b8] sm:$0xf]
      %v286 = vld [vmem:[%s166 + $0x1bc] sm:$0xf]
      %v287 = vld [vmem:[%s166 + $0x1c0] sm:$0xf]
      %v288 = vld [vmem:[%s166 + $0x1c4] sm:$0xf]
      %v289 = vld [vmem:[%s166 + $0x1c8] sm:$0xf]
      %v290 = vld [vmem:[%s166 + $0x1cc] sm:$0xf]
      %v291 = vld [vmem:[%s166 + $0x1d0] sm:$0xf]
      %v292 = vld [vmem:[%s166 + $0x1d4] sm:$0xf]
      %v293 = vld [vmem:[%s166 + $0x1d8] sm:$0xf]
      %v294 = vld [vmem:[%s166 + $0x1dc] sm:$0xf]
      %v295 = vld [vmem:[%s166 + $0x1e0] sm:$0xf]
      %v296 = vld [vmem:[%s166 + $0x1e4] sm:$0xf]
      %v297 = vld [vmem:[%s166 + $0x1e8] sm:$0xf]
      %v298 = vld [vmem:[%s166 + $0x1ec] sm:$0xf]
      %v299 = vld [vmem:[%s166 + $0x1f0] sm:$0xf]
      %v300 = vld [vmem:[%s166 + $0x1f4] sm:$0xf]
      %v301 = vld [vmem:[%s166 + $0x1f8] sm:$0xf]
      %v302 = vld [vmem:[%s166 + $0x1fc] sm:$0xf]
      %v303 = vld [vmem:[%s166 + $0x200] sm:$0xf]
      %v304 = vld [vmem:[%s166 + $0x204] sm:$0xf]
      %v305 = vld [vmem:[%s166 + $0x208] sm:$0xf]
      %v306 = vld [vmem:[%s166 + $0x20c] sm:$0xf]
      %v307 = vld [vmem:[%s166 + $0x210] sm:$0xf]
      %v308 = vld [vmem:[%s166 + $0x214] sm:$0xf]
      %v309 = vld [vmem:[%s166 + $0x218] sm:$0xf]
      %v310 = vld [vmem:[%s166 + $0x21c] sm:$0xf]
      %v311 = vld [vmem:[%s166 + $0x220] sm:$0xf]
      %v312 = vld [vmem:[%s166 + $0x224] sm:$0xf]
      %v313 = vld [vmem:[%s166 + $0x228] sm:$0xf]
      %v314 = vld [vmem:[%s166 + $0x22c] sm:$0xf]
      %v315 = vld [vmem:[%s166 + $0x230] sm:$0xf]
      %v316 = vld [vmem:[%s166 + $0x234] sm:$0xf]
      %v317 = vld [vmem:[%s166 + $0x238] sm:$0xf]
      %v318 = vld [vmem:[%s166 + $0x23c] sm:$0xf]
      %v319 = vld [vmem:[%s166 + $0x240] sm:$0xf]
      %v320 = vld [vmem:[%s166 + $0x244] sm:$0xf]
      %v321 = vld [vmem:[%s166 + $0x248] sm:$0xf]
      %v322 = vld [vmem:[%s166 + $0x24c] sm:$0xf]
      %v323 = vld [vmem:[%s166 + $0x250] sm:$0xf]
      %v324 = vld [vmem:[%s166 + $0x254] sm:$0xf]
      %v325 = vld [vmem:[%s166 + $0x258] sm:$0xf]
      %v326 = vld [vmem:[%s166 + $0x25c] sm:$0xf]
      %v327 = vld [vmem:[%s166 + $0x260] sm:$0xf]
      %v328 = vld [vmem:[%s166 + $0x264] sm:$0xf]
      %v329 = vld [vmem:[%s166 + $0x268] sm:$0xf]
      %v330 = vld [vmem:[%s166 + $0x26c] sm:$0xf]
      %v331 = vld [vmem:[%s166 + $0x270] sm:$0xf]
      %v332 = vld [vmem:[%s166 + $0x274] sm:$0xf]
      %v333 = vld [vmem:[%s166 + $0x278] sm:$0xf]
      %v334 = vld [vmem:[%s166 + $0x27c] sm:$0xf]
      %v335 = vld [vmem:[%s166 + $0x280] sm:$0xf]
      %v336 = vld [vmem:[%s166 + $0x284] sm:$0xf]
      %v337 = vld [vmem:[%s166 + $0x288] sm:$0xf]
      %v338 = vld [vmem:[%s166 + $0x28c] sm:$0xf]
      %v339 = vld [vmem:[%s166 + $0x290] sm:$0xf]
      %v340 = vld [vmem:[%s166 + $0x294] sm:$0xf]
      %v341 = vld [vmem:[%s166 + $0x298] sm:$0xf]
      %v342 = vld [vmem:[%s166 + $0x29c] sm:$0xf]
      %v343 = vld [vmem:[%s166 + $0x2a0] sm:$0xf]
      %v344 = vld [vmem:[%s166 + $0x2a4] sm:$0xf]
      %v345 = vld [vmem:[%s166 + $0x2a8] sm:$0xf]
      %v346 = vld [vmem:[%s166 + $0x2ac] sm:$0xf]
      %v347 = vld [vmem:[%s166 + $0x2b0] sm:$0xf]
      %v348 = vld [vmem:[%s166 + $0x2b4] sm:$0xf]
      %v349 = vld [vmem:[%s166 + $0x2b8] sm:$0xf]
      %v350 = vld [vmem:[%s166 + $0x2bc] sm:$0xf]
      %v351 = vld [vmem:[%s166 + $0x2c0] sm:$0xf]
      %v352 = vld [vmem:[%s166 + $0x2c4] sm:$0xf]
      %v353 = vld [vmem:[%s166 + $0x2c8] sm:$0xf]
      %v354 = vld [vmem:[%s166 + $0x2cc] sm:$0xf]
      %v355 = vld [vmem:[%s166 + $0x2d0] sm:$0xf]
      %v356 = vld [vmem:[%s166 + $0x2d4] sm:$0xf]
      %v357 = vld [vmem:[%s166 + $0x2d8] sm:$0xf]
      %v358 = vld [vmem:[%s166 + $0x2dc] sm:$0xf]
      %v359 = vld [vmem:[%s166 + $0x2e0] sm:$0xf]
      %v360 = vld [vmem:[%s166 + $0x2e4] sm:$0xf]
      %v361 = vld [vmem:[%s166 + $0x2e8] sm:$0xf]
      %v362 = vld [vmem:[%s166 + $0x2ec] sm:$0xf]
      %v363 = vld [vmem:[%s166 + $0x2f0] sm:$0xf]
      %v364 = vld [vmem:[%s166 + $0x2f4] sm:$0xf]
      %v365 = vld [vmem:[%s166 + $0x2f8] sm:$0xf]
      %v366 = vld [vmem:[%s166 + $0x2fc] sm:$0xf]
      %v367 = vld [vmem:[%s166 + $0x300] sm:$0xf]
      %v368 = vld [vmem:[%s166 + $0x304] sm:$0xf]
      %v369 = vld [vmem:[%s166 + $0x308] sm:$0xf]
      %v370 = vld [vmem:[%s166 + $0x30c] sm:$0xf]
      %v371 = vld [vmem:[%s166 + $0x310] sm:$0xf]
      %v372 = vld [vmem:[%s166 + $0x314] sm:$0xf]
      %v373 = vld [vmem:[%s166 + $0x318] sm:$0xf]
      %v374 = vld [vmem:[%s166 + $0x31c] sm:$0xf]
      %v375 = vld [vmem:[%s166 + $0x320] sm:$0xf]
      %v376 = vld [vmem:[%s166 + $0x324] sm:$0xf]
      %v377 = vld [vmem:[%s166 + $0x328] sm:$0xf]
      %v378 = vld [vmem:[%s166 + $0x32c] sm:$0xf]
      %v379 = vld [vmem:[%s166 + $0x330] sm:$0xf]
      %v380 = vld [vmem:[%s166 + $0x334] sm:$0xf]
      %v381 = vld [vmem:[%s166 + $0x338] sm:$0xf]
      %v382 = vld [vmem:[%s166 + $0x33c] sm:$0xf]
      %v383 = vld [vmem:[%s1] sm:$0xff]
      %v384 = vld [vmem:[%s1 + $0x8] sm:$0xff]
      %v385 = vld [vmem:[%s1 + $0x10] sm:$0xff]
      %v386 = vld [vmem:[%s1 + $0x18] sm:$0xff]
      %v387 = vld [vmem:[%s1 + $0x20] sm:$0xff]
      %v388 = vld [vmem:[%s1 + $0x28] sm:$0xff]
      %v389 = vld [vmem:[%s1 + $0x30] sm:$0xff]
      %v390 = vld [vmem:[%s1 + $0x38] sm:$0xff]
      %v391 = vld [vmem:[%s1 + $0x40] sm:$0xff]
      %v392 = vld [vmem:[%s1 + $0x48] sm:$0xff]
      %v393 = vld [vmem:[%s1 + $0x50] sm:$0xff]
      %v394 = vld [vmem:[%s1 + $0x58] sm:$0xff]
      %v395 = vld [vmem:[%s1 + $0x60] sm:$0xff]
      %v396 = vld [vmem:[%s1 + $0x68] sm:$0xff]
      %v397 = vld [vmem:[%s1 + $0x70] sm:$0xff]
      %v398 = vld [vmem:[%s1 + $0x78] sm:$0xff]
      %v607 = vunpack.c.l.b16 %v175
      %v608 = vunpack.c.l.b16 %v176
      %v609 = vunpack.c.l.b16 %v177
      %v610 = vunpack.c.l.b16 %v178
      %v611 = vunpack.c.l.b16 %v179
      %v612 = vunpack.c.l.b16 %v180
      %v613 = vunpack.c.l.b16 %v181
      %v614 = vunpack.c.l.b16 %v182
      %v615 = vunpack.c.l.b16 %v183
      %v616 = vunpack.c.l.b16 %v184
      %v617 = vunpack.c.l.b16 %v185
      %v618 = vunpack.c.l.b16 %v186
      %v619 = vunpack.c.l.b16 %v187
      %v620 = vunpack.c.l.b16 %v188
      %v621 = vunpack.c.l.b16 %v189
      %v622 = vunpack.c.l.b16 %v190
      %v623 = vunpack.c.l.b16 %v191
      %v624 = vunpack.c.l.b16 %v192
      %v625 = vunpack.c.l.b16 %v193
      %v626 = vunpack.c.l.b16 %v194
      %v627 = vunpack.c.l.b16 %v195
      %v628 = vunpack.c.l.b16 %v196
      %v629 = vunpack.c.l.b16 %v197
      %v630 = vunpack.c.l.b16 %v198
      %v631 = vunpack.c.l.b16 %v199
      %v632 = vunpack.c.l.b16 %v200
      %v633 = vunpack.c.l.b16 %v201
      %v634 = vunpack.c.l.b16 %v202
      %v635 = vunpack.c.l.b16 %v203
      %v636 = vunpack.c.l.b16 %v204
      %v637 = vunpack.c.l.b16 %v205
      %v638 = vunpack.c.l.b16 %v206
      %v639 = vunpack.c.l.b16 %v207
      %v640 = vunpack.c.l.b16 %v208
      %v641 = vunpack.c.l.b16 %v209
      %v642 = vunpack.c.l.b16 %v210
      %v643 = vunpack.c.l.b16 %v211
      %v644 = vunpack.c.l.b16 %v212
      %v645 = vunpack.c.l.b16 %v213
      %v646 = vunpack.c.l.b16 %v214
      %v647 = vunpack.c.l.b16 %v215
      %v648 = vunpack.c.l.b16 %v216
      %v649 = vunpack.c.l.b16 %v217
      %v650 = vunpack.c.l.b16 %v218
      %v651 = vunpack.c.l.b16 %v219
      %v652 = vunpack.c.l.b16 %v220
      %v653 = vunpack.c.l.b16 %v221
      %v654 = vunpack.c.l.b16 %v222
      %v655 = vunpack.c.l.b16 %v223
      %v656 = vunpack.c.l.b16 %v224
      %v657 = vunpack.c.l.b16 %v225
      %v658 = vunpack.c.l.b16 %v226
      %v659 = vunpack.c.l.b16 %v227
      %v660 = vunpack.c.l.b16 %v228
      %v661 = vunpack.c.l.b16 %v229
      %v662 = vunpack.c.l.b16 %v230
      %v663 = vunpack.c.l.b16 %v231
      %v664 = vunpack.c.l.b16 %v232
      %v665 = vunpack.c.l.b16 %v233
      %v666 = vunpack.c.l.b16 %v234
      %v667 = vunpack.c.l.b16 %v235
      %v668 = vunpack.c.l.b16 %v236
      %v669 = vunpack.c.l.b16 %v237
      %v670 = vunpack.c.l.b16 %v238
      %v671 = vunpack.c.l.b16 %v239
      %v672 = vunpack.c.l.b16 %v240
      %v673 = vunpack.c.l.b16 %v241
      %v674 = vunpack.c.l.b16 %v242
      %v675 = vunpack.c.l.b16 %v243
      %v676 = vunpack.c.l.b16 %v244
      %v677 = vunpack.c.l.b16 %v245
      %v678 = vunpack.c.l.b16 %v246
      %v679 = vunpack.c.l.b16 %v247
      %v680 = vunpack.c.l.b16 %v248
      %v681 = vunpack.c.l.b16 %v249
      %v682 = vunpack.c.l.b16 %v250
      %v683 = vunpack.c.l.b16 %v251
      %v684 = vunpack.c.l.b16 %v252
      %v685 = vunpack.c.l.b16 %v253
      %v686 = vunpack.c.l.b16 %v254
      %v687 = vunpack.c.l.b16 %v255
      %v688 = vunpack.c.l.b16 %v256
      %v689 = vunpack.c.l.b16 %v257
      %v690 = vunpack.c.l.b16 %v258
      %v691 = vunpack.c.l.b16 %v259
      %v692 = vunpack.c.l.b16 %v260
      %v693 = vunpack.c.l.b16 %v261
      %v694 = vunpack.c.l.b16 %v262
      %v695 = vunpack.c.l.b16 %v263
      %v696 = vunpack.c.l.b16 %v264
      %v697 = vunpack.c.l.b16 %v265
      %v698 = vunpack.c.l.b16 %v266
      %v699 = vunpack.c.l.b16 %v267
      %v700 = vunpack.c.l.b16 %v268
      %v701 = vunpack.c.l.b16 %v269
      %v702 = vunpack.c.l.b16 %v270
      %v703 = vunpack.c.l.b16 %v271
      %v704 = vunpack.c.l.b16 %v272
      %v705 = vunpack.c.l.b16 %v273
      %v706 = vunpack.c.l.b16 %v274
      %v707 = vunpack.c.l.b16 %v275
      %v708 = vunpack.c.l.b16 %v276
      %v709 = vunpack.c.l.b16 %v277
      %v710 = vunpack.c.l.b16 %v278
      %v711 = vunpack.c.l.b16 %v279
      %v712 = vunpack.c.l.b16 %v280
      %v713 = vunpack.c.l.b16 %v281
      %v714 = vunpack.c.l.b16 %v282
      %v715 = vunpack.c.l.b16 %v283
      %v716 = vunpack.c.l.b16 %v284
      %v717 = vunpack.c.l.b16 %v285
      %v718 = vunpack.c.l.b16 %v286
      %v719 = vunpack.c.l.b16 %v287
      %v720 = vunpack.c.l.b16 %v288
      %v721 = vunpack.c.l.b16 %v289
      %v722 = vunpack.c.l.b16 %v290
      %v723 = vunpack.c.l.b16 %v291
      %v724 = vunpack.c.l.b16 %v292
      %v725 = vunpack.c.l.b16 %v293
      %v726 = vunpack.c.l.b16 %v294
      %v727 = vunpack.c.l.b16 %v295
      %v728 = vunpack.c.l.b16 %v296
      %v729 = vunpack.c.l.b16 %v297
      %v730 = vunpack.c.l.b16 %v298
      %v731 = vunpack.c.l.b16 %v299
      %v732 = vunpack.c.l.b16 %v300
      %v733 = vunpack.c.l.b16 %v301
      %v734 = vunpack.c.l.b16 %v302
      %v735 = vunpack.c.l.b16 %v303
      %v736 = vunpack.c.l.b16 %v304
      %v737 = vunpack.c.l.b16 %v305
      %v738 = vunpack.c.l.b16 %v306
      %v739 = vunpack.c.l.b16 %v307
      %v740 = vunpack.c.l.b16 %v308
      %v741 = vunpack.c.l.b16 %v309
      %v742 = vunpack.c.l.b16 %v310
      %v743 = vunpack.c.l.b16 %v311
      %v744 = vunpack.c.l.b16 %v312
      %v745 = vunpack.c.l.b16 %v313
      %v746 = vunpack.c.l.b16 %v314
      %v747 = vunpack.c.l.b16 %v315
      %v748 = vunpack.c.l.b16 %v316
      %v749 = vunpack.c.l.b16 %v317
      %v750 = vunpack.c.l.b16 %v318
      %v751 = vunpack.c.l.b16 %v319
      %v752 = vunpack.c.l.b16 %v320
      %v753 = vunpack.c.l.b16 %v321
      %v754 = vunpack.c.l.b16 %v322
      %v755 = vunpack.c.l.b16 %v323
      %v756 = vunpack.c.l.b16 %v324
      %v757 = vunpack.c.l.b16 %v325
      %v758 = vunpack.c.l.b16 %v326
      %v759 = vunpack.c.l.b16 %v327
      %v760 = vunpack.c.l.b16 %v328
      %v761 = vunpack.c.l.b16 %v329
      %v762 = vunpack.c.l.b16 %v330
      %v763 = vunpack.c.l.b16 %v331
      %v764 = vunpack.c.l.b16 %v332
      %v765 = vunpack.c.l.b16 %v333
      %v766 = vunpack.c.l.b16 %v334
      %v767 = vunpack.c.l.b16 %v335
      %v768 = vunpack.c.l.b16 %v336
      %v769 = vunpack.c.l.b16 %v337
      %v770 = vunpack.c.l.b16 %v338
      %v771 = vunpack.c.l.b16 %v339
      %v772 = vunpack.c.l.b16 %v340
      %v773 = vunpack.c.l.b16 %v341
      %v774 = vunpack.c.l.b16 %v342
      %v775 = vunpack.c.l.b16 %v343
      %v776 = vunpack.c.l.b16 %v344
      %v777 = vunpack.c.l.b16 %v345
      %v778 = vunpack.c.l.b16 %v346
      %v779 = vunpack.c.l.b16 %v347
      %v780 = vunpack.c.l.b16 %v348
      %v781 = vunpack.c.l.b16 %v349
      %v782 = vunpack.c.l.b16 %v350
      %v783 = vunpack.c.l.b16 %v351
      %v784 = vunpack.c.l.b16 %v352
      %v785 = vunpack.c.l.b16 %v353
      %v786 = vunpack.c.l.b16 %v354
      %v787 = vunpack.c.l.b16 %v355
      %v788 = vunpack.c.l.b16 %v356
      %v789 = vunpack.c.l.b16 %v357
      %v790 = vunpack.c.l.b16 %v358
      %v791 = vunpack.c.l.b16 %v359
      %v792 = vunpack.c.l.b16 %v360
      %v793 = vunpack.c.l.b16 %v361
      %v794 = vunpack.c.l.b16 %v362
      %v795 = vunpack.c.l.b16 %v363
      %v796 = vunpack.c.l.b16 %v364
      %v797 = vunpack.c.l.b16 %v365
      %v798 = vunpack.c.l.b16 %v366
      %v799 = vunpack.c.l.b16 %v367
      %v800 = vunpack.c.l.b16 %v368
      %v801 = vunpack.c.l.b16 %v369
      %v802 = vunpack.c.l.b16 %v370
      %v803 = vunpack.c.l.b16 %v371
      %v804 = vunpack.c.l.b16 %v372
      %v805 = vunpack.c.l.b16 %v373
      %v806 = vunpack.c.l.b16 %v374
      %v807 = vunpack.c.l.b16 %v375
      %v808 = vunpack.c.l.b16 %v376
      %v809 = vunpack.c.l.b16 %v377
      %v810 = vunpack.c.l.b16 %v378
      %v811 = vunpack.c.l.b16 %v379
      %v812 = vunpack.c.l.b16 %v380
      %v813 = vunpack.c.l.b16 %v381
      %v814 = vunpack.c.l.b16 %v382
      %v815 = vpack.c.b16 %v608, %v607
      %v816 = vpack.c.b16 %v610, %v609
      %v817 = vpack.c.b16 %v612, %v611
      %v818 = vpack.c.b16 %v614, %v613
      %v819 = vpack.c.b16 %v616, %v615
      %v820 = vpack.c.b16 %v618, %v617
      %v821 = vpack.c.b16 %v620, %v619
      %v822 = vpack.c.b16 %v622, %v621
      %v823 = vpack.c.b16 %v624, %v623
      %v824 = vpack.c.b16 %v626, %v625
      %v825 = vpack.c.b16 %v628, %v627
      %v826 = vpack.c.b16 %v630, %v629
      %v827 = vpack.c.b16 %v632, %v631
      %v828 = vpack.c.b16 %v634, %v633
      %v829 = vpack.c.b16 %v636, %v635
      %v830 = vpack.c.b16 %v638, %v637
      %v831 = vpack.c.b16 %v640, %v639
      %v832 = vpack.c.b16 %v642, %v641
      %v833 = vpack.c.b16 %v644, %v643
      %v834 = vpack.c.b16 %v646, %v645
      %v835 = vpack.c.b16 %v648, %v647
      %v836 = vpack.c.b16 %v650, %v649
      %v837 = vpack.c.b16 %v652, %v651
      %v838 = vpack.c.b16 %v654, %v653
      %v839 = vpack.c.b16 %v656, %v655
      %v840 = vpack.c.b16 %v658, %v657
      %v841 = vpack.c.b16 %v660, %v659
      %v842 = vpack.c.b16 %v662, %v661
      %v843 = vpack.c.b16 %v664, %v663
      %v844 = vpack.c.b16 %v666, %v665
      %v845 = vpack.c.b16 %v668, %v667
      %v846 = vpack.c.b16 %v670, %v669
      %v847 = vpack.c.b16 %v672, %v671
      %v848 = vpack.c.b16 %v674, %v673
      %v849 = vpack.c.b16 %v676, %v675
      %v850 = vpack.c.b16 %v678, %v677
      %v851 = vpack.c.b16 %v680, %v679
      %v852 = vpack.c.b16 %v682, %v681
      %v853 = vpack.c.b16 %v684, %v683
      %v854 = vpack.c.b16 %v686, %v685
      %v855 = vpack.c.b16 %v688, %v687
      %v856 = vpack.c.b16 %v690, %v689
      %v857 = vpack.c.b16 %v692, %v691
      %v858 = vpack.c.b16 %v694, %v693
      %v859 = vpack.c.b16 %v696, %v695
      %v860 = vpack.c.b16 %v698, %v697
      %v861 = vpack.c.b16 %v700, %v699
      %v862 = vpack.c.b16 %v702, %v701
      %v863 = vpack.c.b16 %v704, %v703
      %v864 = vpack.c.b16 %v706, %v705
      %v865 = vpack.c.b16 %v708, %v707
      %v866 = vpack.c.b16 %v710, %v709
      %v867 = vpack.c.b16 %v712, %v711
      %v868 = vpack.c.b16 %v714, %v713
      %v869 = vpack.c.b16 %v716, %v715
      %v870 = vpack.c.b16 %v718, %v717
      %v871 = vpack.c.b16 %v720, %v719
      %v872 = vpack.c.b16 %v722, %v721
      %v873 = vpack.c.b16 %v724, %v723
      %v874 = vpack.c.b16 %v726, %v725
      %v875 = vpack.c.b16 %v728, %v727
      %v876 = vpack.c.b16 %v730, %v729
      %v877 = vpack.c.b16 %v732, %v731
      %v878 = vpack.c.b16 %v734, %v733
      %v879 = vpack.c.b16 %v736, %v735
      %v880 = vpack.c.b16 %v738, %v737
      %v881 = vpack.c.b16 %v740, %v739
      %v882 = vpack.c.b16 %v742, %v741
      %v883 = vpack.c.b16 %v744, %v743
      %v884 = vpack.c.b16 %v746, %v745
      %v885 = vpack.c.b16 %v748, %v747
      %v886 = vpack.c.b16 %v750, %v749
      %v887 = vpack.c.b16 %v752, %v751
      %v888 = vpack.c.b16 %v754, %v753
      %v889 = vpack.c.b16 %v756, %v755
      %v890 = vpack.c.b16 %v758, %v757
      %v891 = vpack.c.b16 %v760, %v759
      %v892 = vpack.c.b16 %v762, %v761
      %v893 = vpack.c.b16 %v764, %v763
      %v894 = vpack.c.b16 %v766, %v765
      %v895 = vpack.c.b16 %v768, %v767
      %v896 = vpack.c.b16 %v770, %v769
      %v897 = vpack.c.b16 %v772, %v771
      %v898 = vpack.c.b16 %v774, %v773
      %v899 = vpack.c.b16 %v776, %v775
      %v900 = vpack.c.b16 %v778, %v777
      %v901 = vpack.c.b16 %v780, %v779
      %v902 = vpack.c.b16 %v782, %v781
      %v903 = vpack.c.b16 %v784, %v783
      %v904 = vpack.c.b16 %v786, %v785
      %v905 = vpack.c.b16 %v788, %v787
      %v906 = vpack.c.b16 %v790, %v789
      %v907 = vpack.c.b16 %v792, %v791
      %v908 = vpack.c.b16 %v794, %v793
      %v909 = vpack.c.b16 %v796, %v795
      %v910 = vpack.c.b16 %v798, %v797
      %v911 = vpack.c.b16 %v800, %v799
      %v912 = vpack.c.b16 %v802, %v801
      %v913 = vpack.c.b16 %v804, %v803
      %v914 = vpack.c.b16 %v806, %v805
      %v915 = vpack.c.b16 %v808, %v807
      %v916 = vpack.c.b16 %v810, %v809
      %v917 = vpack.c.b16 %v812, %v811
      %v918 = vpack.c.b16 %v814, %v813
      %v1039 = vunpack.c.l.b16 %v383
      %v1040 = vunpack.c.h.b16 %v383
      %v1041 = vunpack.c.l.b16 %v384
      %v1042 = vunpack.c.h.b16 %v384
      %v1043 = vunpack.c.l.b16 %v385
      %v1044 = vunpack.c.h.b16 %v385
      %v1045 = vunpack.c.l.b16 %v386
      %v1046 = vunpack.c.h.b16 %v386
      %v1047 = vunpack.c.l.b16 %v387
      %v1048 = vunpack.c.h.b16 %v387
      %v1049 = vunpack.c.l.b16 %v388
      %v1050 = vunpack.c.h.b16 %v388
      %v1051 = vunpack.c.l.b16 %v389
      %v1052 = vunpack.c.h.b16 %v389
      %v1053 = vunpack.c.l.b16 %v390
      %v1054 = vunpack.c.h.b16 %v390
      %v1055 = vunpack.c.l.b16 %v391
      %v1056 = vunpack.c.h.b16 %v391
      %v1057 = vunpack.c.l.b16 %v392
      %v1058 = vunpack.c.h.b16 %v392
      %v1059 = vunpack.c.l.b16 %v393
      %v1060 = vunpack.c.h.b16 %v393
      %v1061 = vunpack.c.l.b16 %v394
      %v1062 = vunpack.c.h.b16 %v394
      %v1063 = vunpack.c.l.b16 %v395
      %v1064 = vunpack.c.h.b16 %v395
      %v1065 = vunpack.c.l.b16 %v396
      %v1066 = vunpack.c.h.b16 %v396
      %v1067 = vunpack.c.l.b16 %v397
      %v1068 = vunpack.c.h.b16 %v397
      %v1069 = vunpack.c.l.b16 %v398
      %v1070 = vunpack.c.h.b16 %v398
      %v1071 = vpack.c.b16 %v1041, %v1039
      %v1072 = vpack.c.b16 %v1042, %v1040
      %v1073 = vpack.c.b16 %v1045, %v1043
      %v1074 = vpack.c.b16 %v1046, %v1044
      %v1075 = vpack.c.b16 %v1049, %v1047
      %v1076 = vpack.c.b16 %v1050, %v1048
      %v1077 = vpack.c.b16 %v1053, %v1051
      %v1078 = vpack.c.b16 %v1054, %v1052
      %v1079 = vpack.c.b16 %v1057, %v1055
      %v1080 = vpack.c.b16 %v1058, %v1056
      %v1081 = vpack.c.b16 %v1061, %v1059
      %v1082 = vpack.c.b16 %v1062, %v1060
      %v1083 = vpack.c.b16 %v1065, %v1063
      %v1084 = vpack.c.b16 %v1066, %v1064
      %v1085 = vpack.c.b16 %v1069, %v1067
      %v1086 = vpack.c.b16 %v1070, %v1068
      %1103 = vmatprep.subr.bf16.mxu0 %v1072
      %1104 = vmatpush1.bf16.msra.mxu0 %v1071
      %1105 = vmatprep.subr.bf16.mxu0 %v1074
      %1106 = vmatpush1.bf16.msra.mxu0 %v1073
      %1107 = vmatprep.subr.bf16.mxu0 %v1076
      %1108 = vmatpush1.bf16.msra.mxu0 %v1075
      %1109 = vmatprep.subr.bf16.mxu0 %v1078
      %1110 = vmatpush1.bf16.msra.mxu0 %v1077
      %1111 = vmatprep.subr.bf16.mxu0 %v1080
      %1112 = vmatpush1.bf16.msra.mxu0 %v1079
      %1113 = vmatprep.subr.bf16.mxu0 %v1082
      %1114 = vmatpush1.bf16.msra.mxu0 %v1081
      %1115 = vmatprep.subr.bf16.mxu0 %v1084
      %1116 = vmatpush1.bf16.msra.mxu0 %v1083
      %1117 = vmatprep.subr.bf16.mxu0 %v1086
      %1118 = vmatpush1.bf16.msra.mxu0 %v1085
      %1119 = vmatprep.subr.bf16.mxu0 0
      %1120 = vmatpush1.bf16.msra.mxu0 0
      %1121 = vmatprep.subr.bf16.mxu0 0
      %1122 = vmatpush1.bf16.msra.mxu0 0
      %1123 = vmatprep.subr.bf16.mxu0 0
      %1124 = vmatpush1.bf16.msra.mxu0 0
      %1125 = vmatprep.subr.bf16.mxu0 0
      %1126 = vmatpush1.bf16.msra.mxu0 0
      %1127 = vmatprep.subr.bf16.mxu0 0
      %1128 = vmatpush1.bf16.msra.mxu0 0
      %1129 = vmatprep.subr.bf16.mxu0 0
      %1130 = vmatpush1.bf16.msra.mxu0 0
      %1131 = vmatprep.subr.bf16.mxu0 0
      %1132 = vmatpush1.bf16.msra.mxu0 0
      %1133 = vmatprep.subr.bf16.mxu0 0
      %1134 = vmatpush1.bf16.msra.mxu0 0
      %1135 = vmatprep.mubr.bf16.mxu0 0
      %1136 = vmatmul.mubr.bf16.gmra.mrb[0].mxu0 %v815
      %v1137 = vpop.f32.mrb[0].mxu0
      %v1138 = vadd.f32 0.0, %v1137
      %v1139 = vpop.f32.mrb[0].mxu0
      %v1140 = vadd.f32 0.0, %v1139
      %v1141 = vpop.f32.mrb[0].mxu0
      %v1142 = vadd.f32 0.0, %v1141
      %v1143 = vpop.f32.mrb[0].mxu0
      %v1144 = vadd.f32 0.0, %v1143
      %1145 = vmatprep.mubr.bf16.mxu0 0
      %1146 = vmatmul.mubr.bf16.gmra.mrb[0].mxu0 %v816
      %v1147 = vpop.f32.mrb[0].mxu0
      %v1148 = vadd.f32 0.0, %v1147
      %v1149 = vpop.f32.mrb[0].mxu0
      %v1150 = vadd.f32 0.0, %v1149
      %v1151 = vpop.f32.mrb[0].mxu0
      %v1152 = vadd.f32 0.0, %v1151
      %v1153 = vpop.f32.mrb[0].mxu0
      %v1154 = vadd.f32 0.0, %v1153
      %1155 = vmatprep.mubr.bf16.mxu0 0
      %1156 = vmatmul.mubr.bf16.gmra.mrb[0].mxu0 %v817
      %v1157 = vpop.f32.mrb[0].mxu0
      %v1158 = vadd.f32 0.0, %v1157
      %v1159 = vpop.f32.mrb[0].mxu0
      %v1160 = vadd.f32 0.0, %v1159
      %v1161 = vpop.f32.mrb[0].mxu0
      %v1162 = vadd.f32 0.0, %v1161
      %v1163 = vpop.f32.mrb[0].mxu0
      %v1164 = vadd.f32 0.0, %v1163
      %1165 = vmatprep.mubr.bf16.mxu0 0
      %1166 = vmatmul.mubr.bf16.gmra.mrb[0].mxu0 %v818
      %v1167 = vpop.f32.mrb[0].mxu0
      %v1168 = vadd.f32 0.0, %v1167
      %v1169 = vpop.f32.mrb[0].mxu0
      %v1170 = vadd.f32 0.0, %v1169
      %v1171 = vpop.f32.mrb[0].mxu0
      %v1172 = vadd.f32 0.0, %v1171
      %v1173 = vpop.f32.mrb[0].mxu0
      %v1174 = vadd.f32 0.0, %v1173
      %1175 = vmatprep.mubr.bf16.mxu0 0
      %1176 = vmatmul.mubr.bf16.gmra.mrb[0].mxu0 %v819
      %v1177 = vpop.f32.mrb[0].mxu0
      %v1178 = vadd.f32 0.0, %v1177
      %v1179 = vpop.f32.mrb[0].mxu0
      %v1180 = vadd.f32 0.0, %v1179
      %v1181 = vpop.f32.mrb[0].mxu0
      %v1182 = vadd.f32 0.0, %v1181
      %v1183 = vpop.f32.mrb[0].mxu0
      %v1184 = vadd.f32 0.0, %v1183
      %1185 = vmatprep.mubr.bf16.mxu0 0
      %1186 = vmatmul.mubr.bf16.gmra.mrb[0].mxu0 %v820
      %v1187 = vpop.f32.mrb[0].mxu0
      %v1188 = vadd.f32 0.0, %v1187
      %v1189 = vpop.f32.mrb[0].mxu0
      %v1190 = vadd.f32 0.0, %v1189
      %v1191 = vpop.f32.mrb[0].mxu0
      %v1192 = vadd.f32 0.0, %v1191
      %v1193 = vpop.f32.mrb[0].mxu0
      %v1194 = vadd.f32 0.0, %v1193
      %1195 = vmatprep.mubr.bf16.mxu0 0
      %1196 = vmatmul.mubr.bf16.gmra.mrb[0].mxu0 %v821
      %v1197 = vpop.f32.mrb[0].mxu0
      %v1198 = vadd.f32 0.0, %v1197
      %v1199 = vpop.f32.mrb[0].mxu0
      %v1200 = vadd.f32 0.0, %v1199
      %v1201 = vpop.f32.mrb[0].mxu0
      %v1202 = vadd.f32 0.0, %v1201
      %v1203 = vpop.f32.mrb[0].mxu0
      %v1204 = vadd.f32 0.0, %v1203
      %1205 = vmatprep.mubr.bf16.mxu0 0
      %1206 = vmatmul.mubr.bf16.gmra.mrb[0].mxu0 %v822
      %v1207 = vpop.f32.mrb[0].mxu0
      %v1208 = vadd.f32 0.0, %v1207
      %v1209 = vpop.f32.mrb[0].mxu0
      %v1210 = vadd.f32 0.0, %v1209
      %v1211 = vpop.f32.mrb[0].mxu0
      %v1212 = vadd.f32 0.0, %v1211
      %v1213 = vpop.f32.mrb[0].mxu0
      %v1214 = vadd.f32 0.0, %v1213
      %1215 = vmatprep.mubr.bf16.mxu0 0
      %1216 = vmatmul.mubr.bf16.gmra.mrb[0].mxu0 %v823
      %v1217 = vpop.f32.mrb[0].mxu0
      %v1218 = vadd.f32 0.0, %v1217
      %v1219 = vpop.f32.mrb[0].mxu0
      %v1220 = vadd.f32 0.0, %v1219
      %v1221 = vpop.f32.mrb[0].mxu0
      %v1222 = vadd.f32 0.0, %v1221
      %v1223 = vpop.f32.mrb[0].mxu0
      %v1224 = vadd.f32 0.0, %v1223
      %1225 = vmatprep.mubr.bf16.mxu0 0
      %1226 = vmatmul.mubr.bf16.gmra.mrb[0].mxu0 %v824
      %v1227 = vpop.f32.mrb[0].mxu0
      %v1228 = vadd.f32 0.0, %v1227
      %v1229 = vpop.f32.mrb[0].mxu0
      %v1230 = vadd.f32 0.0, %v1229
      %v1231 = vpop.f32.mrb[0].mxu0
      %v1232 = vadd.f32 0.0, %v1231
      %v1233 = vpop.f32.mrb[0].mxu0
      %v1234 = vadd.f32 0.0, %v1233
      %1235 = vmatprep.mubr.bf16.mxu0 0
      %1236 = vmatmul.mubr.bf16.gmra.mrb[0].mxu0 %v825
      %v1237 = vpop.f32.mrb[0].mxu0
      %v1238 = vadd.f32 0.0, %v1237
      %v1239 = vpop.f32.mrb[0].mxu0
      %v1240 = vadd.f32 0.0, %v1239
      %v1241 = vpop.f32.mrb[0].mxu0
      %v1242 = vadd.f32 0.0, %v1241
      %v1243 = vpop.f32.mrb[0].mxu0
      %v1244 = vadd.f32 0.0, %v1243
      %1245 = vmatprep.mubr.bf16.mxu0 0
      %1246 = vmatmul.mubr.bf16.gmra.mrb[0].mxu0 %v826
      %v1247 = vpop.f32.mrb[0].mxu0
      %v1248 = vadd.f32 0.0, %v1247
      %v1249 = vpop.f32.mrb[0].mxu0
      %v1250 = vadd.f32 0.0, %v1249
      %v1251 = vpop.f32.mrb[0].mxu0
      %v1252 = vadd.f32 0.0, %v1251
      %v1253 = vpop.f32.mrb[0].mxu0
      %v1254 = vadd.f32 0.0, %v1253
      %1255 = vmatprep.mubr.bf16.mxu0 0
      %1256 = vmatmul.mubr.bf16.gmra.mrb[0].mxu0 %v827
      %v1257 = vpop.f32.mrb[0].mxu0
      %v1258 = vadd.f32 0.0, %v1257
      %v1259 = vpop.f32.mrb[0].mxu0
      %v1260 = vadd.f32 0.0, %v1259
      %v1261 = vpop.f32.mrb[0].mxu0
      %v1262 = vadd.f32 0.0, %v1261
      %v1263 = vpop.f32.mrb[0].mxu0
      %v1264 = vadd.f32 0.0, %v1263
      %1265 = vmatprep.mubr.bf16.mxu0 0
      %1266 = vmatmul.mubr.bf16.gmra.mrb[0].mxu0 %v828
      %v1267 = vpop.f32.mrb[0].mxu0
      %v1268 = vadd.f32 0.0, %v1267
      %v1269 = vpop.f32.mrb[0].mxu0
      %v1270 = vadd.f32 0.0, %v1269
      %v1271 = vpop.f32.mrb[0].mxu0
      %v1272 = vadd.f32 0.0, %v1271
      %v1273 = vpop.f32.mrb[0].mxu0
      %v1274 = vadd.f32 0.0, %v1273
      %1275 = vmatprep.mubr.bf16.mxu0 0
      %1276 = vmatmul.mubr.bf16.gmra.mrb[0].mxu0 %v829
      %v1277 = vpop.f32.mrb[0].mxu0
      %v1278 = vadd.f32 0.0, %v1277
      %v1279 = vpop.f32.mrb[0].mxu0
      %v1280 = vadd.f32 0.0, %v1279
      %v1281 = vpop.f32.mrb[0].mxu0
      %v1282 = vadd.f32 0.0, %v1281
      %v1283 = vpop.f32.mrb[0].mxu0
      %v1284 = vadd.f32 0.0, %v1283
      %1285 = vmatprep.mubr.bf16.mxu0 0
      %1286 = vmatmul.mubr.bf16.gmra.mrb[0].mxu0 %v830
      %v1287 = vpop.f32.mrb[0].mxu0
      %v1288 = vadd.f32 0.0, %v1287
      %v1289 = vpop.f32.mrb[0].mxu0
      %v1290 = vadd.f32 0.0, %v1289
      %v1291 = vpop.f32.mrb[0].mxu0
      %v1292 = vadd.f32 0.0, %v1291
      %v1293 = vpop.f32.mrb[0].mxu0
      %v1294 = vadd.f32 0.0, %v1293
      %1295 = vmatprep.mubr.bf16.mxu0 0
      %1296 = vmatmul.mubr.bf16.gmra.mrb[0].mxu0 %v831
      %v1297 = vpop.f32.mrb[0].mxu0
      %v1298 = vadd.f32 0.0, %v1297
      %v1299 = vpop.f32.mrb[0].mxu0
      %v1300 = vadd.f32 0.0, %v1299
      %v1301 = vpop.f32.mrb[0].mxu0
      %v1302 = vadd.f32 0.0, %v1301
      %v1303 = vpop.f32.mrb[0].mxu0
      %v1304 = vadd.f32 0.0, %v1303
      %1305 = vmatprep.mubr.bf16.mxu0 0
      %1306 = vmatmul.mubr.bf16.gmra.mrb[0].mxu0 %v832
      %v1307 = vpop.f32.mrb[0].mxu0
      %v1308 = vadd.f32 0.0, %v1307
      %v1309 = vpop.f32.mrb[0].mxu0
      %v1310 = vadd.f32 0.0, %v1309
      %v1311 = vpop.f32.mrb[0].mxu0
      %v1312 = vadd.f32 0.0, %v1311
      %v1313 = vpop.f32.mrb[0].mxu0
      %v1314 = vadd.f32 0.0, %v1313
      %1315 = vmatprep.mubr.bf16.mxu0 0
      %1316 = vmatmul.mubr.bf16.gmra.mrb[0].mxu0 %v833
      %v1317 = vpop.f32.mrb[0].mxu0
      %v1318 = vadd.f32 0.0, %v1317
      %v1319 = vpop.f32.mrb[0].mxu0
      %v1320 = vadd.f32 0.0, %v1319
      %v1321 = vpop.f32.mrb[0].mxu0
      %v1322 = vadd.f32 0.0, %v1321
      %v1323 = vpop.f32.mrb[0].mxu0
      %v1324 = vadd.f32 0.0, %v1323
      %1325 = vmatprep.mubr.bf16.mxu0 0
      %1326 = vmatmul.mubr.bf16.gmra.mrb[0].mxu0 %v834
      %v1327 = vpop.f32.mrb[0].mxu0
      %v1328 = vadd.f32 0.0, %v1327
      %v1329 = vpop.f32.mrb[0].mxu0
      %v1330 = vadd.f32 0.0, %v1329
      %v1331 = vpop.f32.mrb[0].mxu0
      %v1332 = vadd.f32 0.0, %v1331
      %v1333 = vpop.f32.mrb[0].mxu0
      %v1334 = vadd.f32 0.0, %v1333
      %1335 = vmatprep.mubr.bf16.mxu0 0
      %1336 = vmatmul.mubr.bf16.gmra.mrb[0].mxu0 %v835
      %v1337 = vpop.f32.mrb[0].mxu0
      %v1338 = vadd.f32 0.0, %v1337
      %v1339 = vpop.f32.mrb[0].mxu0
      %v1340 = vadd.f32 0.0, %v1339
      %v1341 = vpop.f32.mrb[0].mxu0
      %v1342 = vadd.f32 0.0, %v1341
      %v1343 = vpop.f32.mrb[0].mxu0
      %v1344 = vadd.f32 0.0, %v1343
      %1345 = vmatprep.mubr.bf16.mxu0 0
      %1346 = vmatmul.mubr.bf16.gmra.mrb[0].mxu0 %v836
      %v1347 = vpop.f32.mrb[0].mxu0
      %v1348 = vadd.f32 0.0, %v1347
      %v1349 = vpop.f32.mrb[0].mxu0
      %v1350 = vadd.f32 0.0, %v1349
      %v1351 = vpop.f32.mrb[0].mxu0
      %v1352 = vadd.f32 0.0, %v1351
      %v1353 = vpop.f32.mrb[0].mxu0
      %v1354 = vadd.f32 0.0, %v1353
      %1355 = vmatprep.mubr.bf16.mxu0 0
      %1356 = vmatmul.mubr.bf16.gmra.mrb[0].mxu0 %v837
      %v1357 = vpop.f32.mrb[0].mxu0
      %v1358 = vadd.f32 0.0, %v1357
      %v1359 = vpop.f32.mrb[0].mxu0
      %v1360 = vadd.f32 0.0, %v1359
      %v1361 = vpop.f32.mrb[0].mxu0
      %v1362 = vadd.f32 0.0, %v1361
      %v1363 = vpop.f32.mrb[0].mxu0
      %v1364 = vadd.f32 0.0, %v1363
      %1365 = vmatprep.mubr.bf16.mxu0 0
      %1366 = vmatmul.mubr.bf16.gmra.mrb[0].mxu0 %v838
      %v1367 = vpop.f32.mrb[0].mxu0
      %v1368 = vadd.f32 0.0, %v1367
      %v1369 = vpop.f32.mrb[0].mxu0
      %v1370 = vadd.f32 0.0, %v1369
      %v1371 = vpop.f32.mrb[0].mxu0
      %v1372 = vadd.f32 0.0, %v1371
      %v1373 = vpop.f32.mrb[0].mxu0
      %v1374 = vadd.f32 0.0, %v1373
      %1375 = vmatprep.mubr.bf16.mxu0 0
      %1376 = vmatmul.mubr.bf16.gmra.mrb[0].mxu0 %v839
      %v1377 = vpop.f32.mrb[0].mxu0
      %v1378 = vadd.f32 0.0, %v1377
      %v1379 = vpop.f32.mrb[0].mxu0
      %v1380 = vadd.f32 0.0, %v1379
      %v1381 = vpop.f32.mrb[0].mxu0
      %v1382 = vadd.f32 0.0, %v1381
      %v1383 = vpop.f32.mrb[0].mxu0
      %v1384 = vadd.f32 0.0, %v1383
      %1385 = vmatprep.mubr.bf16.mxu0 0
      %1386 = vmatmul.mubr.bf16.gmra.mrb[0].mxu0 %v840
      %v1387 = vpop.f32.mrb[0].mxu0
      %v1388 = vadd.f32 0.0, %v1387
      %v1389 = vpop.f32.mrb[0].mxu0
      %v1390 = vadd.f32 0.0, %v1389
      %v1391 = vpop.f32.mrb[0].mxu0
      %v1392 = vadd.f32 0.0, %v1391
      %v1393 = vpop.f32.mrb[0].mxu0
      %v1394 = vadd.f32 0.0, %v1393
      %1395 = vmatprep.mubr.bf16.mxu0 0
      %1396 = vmatmul.mubr.bf16.gmra.mrb[0].mxu0 %v841
      %v1397 = vpop.f32.mrb[0].mxu0
      %v1398 = vadd.f32 0.0, %v1397
      %v1399 = vpop.f32.mrb[0].mxu0
      %v1400 = vadd.f32 0.0, %v1399
      %v1401 = vpop.f32.mrb[0].mxu0
      %v1402 = vadd.f32 0.0, %v1401
      %v1403 = vpop.f32.mrb[0].mxu0
      %v1404 = vadd.f32 0.0, %v1403
      %1405 = vmatprep.mubr.bf16.mxu0 0
      %1406 = vmatmul.mubr.bf16.gmra.mrb[0].mxu0 %v842
      %v1407 = vpop.f32.mrb[0].mxu0
      %v1408 = vadd.f32 0.0, %v1407
      %v1409 = vpop.f32.mrb[0].mxu0
      %v1410 = vadd.f32 0.0, %v1409
      %v1411 = vpop.f32.mrb[0].mxu0
      %v1412 = vadd.f32 0.0, %v1411
      %v1413 = vpop.f32.mrb[0].mxu0
      %v1414 = vadd.f32 0.0, %v1413
      %1415 = vmatprep.mubr.bf16.mxu0 0
      %1416 = vmatmul.mubr.bf16.gmra.mrb[0].mxu0 %v843
      %v1417 = vpop.f32.mrb[0].mxu0
      %v1418 = vadd.f32 0.0, %v1417
      %v1419 = vpop.f32.mrb[0].mxu0
      %v1420 = vadd.f32 0.0, %v1419
      %v1421 = vpop.f32.mrb[0].mxu0
      %v1422 = vadd.f32 0.0, %v1421
      %v1423 = vpop.f32.mrb[0].mxu0
      %v1424 = vadd.f32 0.0, %v1423
      %1425 = vmatprep.mubr.bf16.mxu0 0
      %1426 = vmatmul.mubr.bf16.gmra.mrb[0].mxu0 %v844
      %v1427 = vpop.f32.mrb[0].mxu0
      %v1428 = vadd.f32 0.0, %v1427
      %v1429 = vpop.f32.mrb[0].mxu0
      %v1430 = vadd.f32 0.0, %v1429
      %v1431 = vpop.f32.mrb[0].mxu0
      %v1432 = vadd.f32 0.0, %v1431
      %v1433 = vpop.f32.mrb[0].mxu0
      %v1434 = vadd.f32 0.0, %v1433
      %1435 = vmatprep.mubr.bf16.mxu0 0
      %1436 = vmatmul.mubr.bf16.gmra.mrb[0].mxu0 %v845
      %v1437 = vpop.f32.mrb[0].mxu0
      %v1438 = vadd.f32 0.0, %v1437
      %v1439 = vpop.f32.mrb[0].mxu0
      %v1440 = vadd.f32 0.0, %v1439
      %v1441 = vpop.f32.mrb[0].mxu0
      %v1442 = vadd.f32 0.0, %v1441
      %v1443 = vpop.f32.mrb[0].mxu0
      %v1444 = vadd.f32 0.0, %v1443
      %1445 = vmatprep.mubr.bf16.mxu0 0
      %1446 = vmatmul.mubr.bf16.gmra.mrb[0].mxu0 %v846
      %v1447 = vpop.f32.mrb[0].mxu0
      %v1448 = vadd.f32 0.0, %v1447
      %v1449 = vpop.f32.mrb[0].mxu0
      %v1450 = vadd.f32 0.0, %v1449
      %v1451 = vpop.f32.mrb[0].mxu0
      %v1452 = vadd.f32 0.0, %v1451
      %v1453 = vpop.f32.mrb[0].mxu0
      %v1454 = vadd.f32 0.0, %v1453
      %1455 = vmatprep.mubr.bf16.mxu0 0
      %1456 = vmatmul.mubr.bf16.gmra.mrb[0].mxu0 %v847
      %v1457 = vpop.f32.mrb[0].mxu0
      %v1458 = vadd.f32 0.0, %v1457
      %v1459 = vpop.f32.mrb[0].mxu0
      %v1460 = vadd.f32 0.0, %v1459
      %v1461 = vpop.f32.mrb[0].mxu0
      %v1462 = vadd.f32 0.0, %v1461
      %v1463 = vpop.f32.mrb[0].mxu0
      %v1464 = vadd.f32 0.0, %v1463
      %1465 = vmatprep.mubr.bf16.mxu0 0
      %1466 = vmatmul.mubr.bf16.gmra.mrb[0].mxu0 %v848
      %v1467 = vpop.f32.mrb[0].mxu0
      %v1468 = vadd.f32 0.0, %v1467
      %v1469 = vpop.f32.mrb[0].mxu0
      %v1470 = vadd.f32 0.0, %v1469
      %v1471 = vpop.f32.mrb[0].mxu0
      %v1472 = vadd.f32 0.0, %v1471
      %v1473 = vpop.f32.mrb[0].mxu0
      %v1474 = vadd.f32 0.0, %v1473
      %1475 = vmatprep.mubr.bf16.mxu0 0
      %1476 = vmatmul.mubr.bf16.gmra.mrb[0].mxu0 %v849
      %v1477 = vpop.f32.mrb[0].mxu0
      %v1478 = vadd.f32 0.0, %v1477
      %v1479 = vpop.f32.mrb[0].mxu0
      %v1480 = vadd.f32 0.0, %v1479
      %v1481 = vpop.f32.mrb[0].mxu0
      %v1482 = vadd.f32 0.0, %v1481
      %v1483 = vpop.f32.mrb[0].mxu0
      %v1484 = vadd.f32 0.0, %v1483
      %1485 = vmatprep.mubr.bf16.mxu0 0
      %1486 = vmatmul.mubr.bf16.gmra.mrb[0].mxu0 %v850
      %v1487 = vpop.f32.mrb[0].mxu0
      %v1488 = vadd.f32 0.0, %v1487
      %v1489 = vpop.f32.mrb[0].mxu0
      %v1490 = vadd.f32 0.0, %v1489
      %v1491 = vpop.f32.mrb[0].mxu0
      %v1492 = vadd.f32 0.0, %v1491
      %v1493 = vpop.f32.mrb[0].mxu0
      %v1494 = vadd.f32 0.0, %v1493
      %1495 = vmatprep.mubr.bf16.mxu0 0
      %1496 = vmatmul.mubr.bf16.gmra.mrb[0].mxu0 %v851
      %v1497 = vpop.f32.mrb[0].mxu0
      %v1498 = vadd.f32 0.0, %v1497
      %v1499 = vpop.f32.mrb[0].mxu0
      %v1500 = vadd.f32 0.0, %v1499
      %v1501 = vpop.f32.mrb[0].mxu0
      %v1502 = vadd.f32 0.0, %v1501
      %v1503 = vpop.f32.mrb[0].mxu0
      %v1504 = vadd.f32 0.0, %v1503
      %1505 = vmatprep.mubr.bf16.mxu0 0
      %1506 = vmatmul.mubr.bf16.gmra.mrb[0].mxu0 %v852
      %v1507 = vpop.f32.mrb[0].mxu0
      %v1508 = vadd.f32 0.0, %v1507
      %v1509 = vpop.f32.mrb[0].mxu0
      %v1510 = vadd.f32 0.0, %v1509
      %v1511 = vpop.f32.mrb[0].mxu0
      %v1512 = vadd.f32 0.0, %v1511
      %v1513 = vpop.f32.mrb[0].mxu0
      %v1514 = vadd.f32 0.0, %v1513
      %1515 = vmatprep.mubr.bf16.mxu0 0
      %1516 = vmatmul.mubr.bf16.gmra.mrb[0].mxu0 %v853
      %v1517 = vpop.f32.mrb[0].mxu0
      %v1518 = vadd.f32 0.0, %v1517
      %v1519 = vpop.f32.mrb[0].mxu0
      %v1520 = vadd.f32 0.0, %v1519
      %v1521 = vpop.f32.mrb[0].mxu0
      %v1522 = vadd.f32 0.0, %v1521
      %v1523 = vpop.f32.mrb[0].mxu0
      %v1524 = vadd.f32 0.0, %v1523
      %1525 = vmatprep.mubr.bf16.mxu0 0
      %1526 = vmatmul.mubr.bf16.gmra.mrb[0].mxu0 %v854
      %v1527 = vpop.f32.mrb[0].mxu0
      %v1528 = vadd.f32 0.0, %v1527
      %v1529 = vpop.f32.mrb[0].mxu0
      %v1530 = vadd.f32 0.0, %v1529
      %v1531 = vpop.f32.mrb[0].mxu0
      %v1532 = vadd.f32 0.0, %v1531
      %v1533 = vpop.f32.mrb[0].mxu0
      %v1534 = vadd.f32 0.0, %v1533
      %1535 = vmatprep.mubr.bf16.mxu0 0
      %1536 = vmatmul.mubr.bf16.gmra.mrb[0].mxu0 %v855
      %v1537 = vpop.f32.mrb[0].mxu0
      %v1538 = vadd.f32 0.0, %v1537
      %v1539 = vpop.f32.mrb[0].mxu0
      %v1540 = vadd.f32 0.0, %v1539
      %v1541 = vpop.f32.mrb[0].mxu0
      %v1542 = vadd.f32 0.0, %v1541
      %v1543 = vpop.f32.mrb[0].mxu0
      %v1544 = vadd.f32 0.0, %v1543
      %1545 = vmatprep.mubr.bf16.mxu0 0
      %1546 = vmatmul.mubr.bf16.gmra.mrb[0].mxu0 %v856
      %v1547 = vpop.f32.mrb[0].mxu0
      %v1548 = vadd.f32 0.0, %v1547
      %v1549 = vpop.f32.mrb[0].mxu0
      %v1550 = vadd.f32 0.0, %v1549
      %v1551 = vpop.f32.mrb[0].mxu0
      %v1552 = vadd.f32 0.0, %v1551
      %v1553 = vpop.f32.mrb[0].mxu0
      %v1554 = vadd.f32 0.0, %v1553
      %1555 = vmatprep.mubr.bf16.mxu0 0
      %1556 = vmatmul.mubr.bf16.gmra.mrb[0].mxu0 %v857
      %v1557 = vpop.f32.mrb[0].mxu0
      %v1558 = vadd.f32 0.0, %v1557
      %v1559 = vpop.f32.mrb[0].mxu0
      %v1560 = vadd.f32 0.0, %v1559
      %v1561 = vpop.f32.mrb[0].mxu0
      %v1562 = vadd.f32 0.0, %v1561
      %v1563 = vpop.f32.mrb[0].mxu0
      %v1564 = vadd.f32 0.0, %v1563
      %1565 = vmatprep.mubr.bf16.mxu0 0
      %1566 = vmatmul.mubr.bf16.gmra.mrb[0].mxu0 %v858
      %v1567 = vpop.f32.mrb[0].mxu0
      %v1568 = vadd.f32 0.0, %v1567
      %v1569 = vpop.f32.mrb[0].mxu0
      %v1570 = vadd.f32 0.0, %v1569
      %v1571 = vpop.f32.mrb[0].mxu0
      %v1572 = vadd.f32 0.0, %v1571
      %v1573 = vpop.f32.mrb[0].mxu0
      %v1574 = vadd.f32 0.0, %v1573
      %1575 = vmatprep.mubr.bf16.mxu0 0
      %1576 = vmatmul.mubr.bf16.gmra.mrb[0].mxu0 %v859
      %v1577 = vpop.f32.mrb[0].mxu0
      %v1578 = vadd.f32 0.0, %v1577
      %v1579 = vpop.f32.mrb[0].mxu0
      %v1580 = vadd.f32 0.0, %v1579
      %v1581 = vpop.f32.mrb[0].mxu0
      %v1582 = vadd.f32 0.0, %v1581
      %v1583 = vpop.f32.mrb[0].mxu0
      %v1584 = vadd.f32 0.0, %v1583
      %1585 = vmatprep.mubr.bf16.mxu0 0
      %1586 = vmatmul.mubr.bf16.gmra.mrb[0].mxu0 %v860
      %v1587 = vpop.f32.mrb[0].mxu0
      %v1588 = vadd.f32 0.0, %v1587
      %v1589 = vpop.f32.mrb[0].mxu0
      %v1590 = vadd.f32 0.0, %v1589
      %v1591 = vpop.f32.mrb[0].mxu0
      %v1592 = vadd.f32 0.0, %v1591
      %v1593 = vpop.f32.mrb[0].mxu0
      %v1594 = vadd.f32 0.0, %v1593
      %1595 = vmatprep.mubr.bf16.mxu0 0
      %1596 = vmatmul.mubr.bf16.gmra.mrb[0].mxu0 %v861
      %v1597 = vpop.f32.mrb[0].mxu0
      %v1598 = vadd.f32 0.0, %v1597
      %v1599 = vpop.f32.mrb[0].mxu0
      %v1600 = vadd.f32 0.0, %v1599
      %v1601 = vpop.f32.mrb[0].mxu0
      %v1602 = vadd.f32 0.0, %v1601
      %v1603 = vpop.f32.mrb[0].mxu0
      %v1604 = vadd.f32 0.0, %v1603
      %1605 = vmatprep.mubr.bf16.mxu0 0
      %1606 = vmatmul.mubr.bf16.gmra.mrb[0].mxu0 %v862
      %v1607 = vpop.f32.mrb[0].mxu0
      %v1608 = vadd.f32 0.0, %v1607
      %v1609 = vpop.f32.mrb[0].mxu0
      %v1610 = vadd.f32 0.0, %v1609
      %v1611 = vpop.f32.mrb[0].mxu0
      %v1612 = vadd.f32 0.0, %v1611
      %v1613 = vpop.f32.mrb[0].mxu0
      %v1614 = vadd.f32 0.0, %v1613
      %1615 = vmatprep.mubr.bf16.mxu0 0
      %1616 = vmatmul.mubr.bf16.gmra.mrb[0].mxu0 %v863
      %v1617 = vpop.f32.mrb[0].mxu0
      %v1618 = vadd.f32 0.0, %v1617
      %v1619 = vpop.f32.mrb[0].mxu0
      %v1620 = vadd.f32 0.0, %v1619
      %v1621 = vpop.f32.mrb[0].mxu0
      %v1622 = vadd.f32 0.0, %v1621
      %v1623 = vpop.f32.mrb[0].mxu0
      %v1624 = vadd.f32 0.0, %v1623
      %1625 = vmatprep.mubr.bf16.mxu0 0
      %1626 = vmatmul.mubr.bf16.gmra.mrb[0].mxu0 %v864
      %v1627 = vpop.f32.mrb[0].mxu0
      %v1628 = vadd.f32 0.0, %v1627
      %v1629 = vpop.f32.mrb[0].mxu0
      %v1630 = vadd.f32 0.0, %v1629
      %v1631 = vpop.f32.mrb[0].mxu0
      %v1632 = vadd.f32 0.0, %v1631
      %v1633 = vpop.f32.mrb[0].mxu0
      %v1634 = vadd.f32 0.0, %v1633
      %1635 = vmatprep.mubr.bf16.mxu0 0
      %1636 = vmatmul.mubr.bf16.gmra.mrb[0].mxu0 %v865
      %v1637 = vpop.f32.mrb[0].mxu0
      %v1638 = vadd.f32 0.0, %v1637
      %v1639 = vpop.f32.mrb[0].mxu0
      %v1640 = vadd.f32 0.0, %v1639
      %v1641 = vpop.f32.mrb[0].mxu0
      %v1642 = vadd.f32 0.0, %v1641
      %v1643 = vpop.f32.mrb[0].mxu0
      %v1644 = vadd.f32 0.0, %v1643
      %1645 = vmatprep.mubr.bf16.mxu0 0
      %1646 = vmatmul.mubr.bf16.gmra.mrb[0].mxu0 %v866
      %v1647 = vpop.f32.mrb[0].mxu0
      %v1648 = vadd.f32 0.0, %v1647
      %v1649 = vpop.f32.mrb[0].mxu0
      %v1650 = vadd.f32 0.0, %v1649
      %v1651 = vpop.f32.mrb[0].mxu0
      %v1652 = vadd.f32 0.0, %v1651
      %v1653 = vpop.f32.mrb[0].mxu0
      %v1654 = vadd.f32 0.0, %v1653
      %1655 = vmatprep.mubr.bf16.mxu0 0
      %1656 = vmatmul.mubr.bf16.gmra.mrb[0].mxu0 %v867
      %v1657 = vpop.f32.mrb[0].mxu0
      %v1658 = vadd.f32 0.0, %v1657
      %v1659 = vpop.f32.mrb[0].mxu0
      %v1660 = vadd.f32 0.0, %v1659
      %v1661 = vpop.f32.mrb[0].mxu0
      %v1662 = vadd.f32 0.0, %v1661
      %v1663 = vpop.f32.mrb[0].mxu0
      %v1664 = vadd.f32 0.0, %v1663
      %1665 = vmatprep.mubr.bf16.mxu0 0
      %1666 = vmatmul.mubr.bf16.gmra.mrb[0].mxu0 %v868
      %v1667 = vpop.f32.mrb[0].mxu0
      %v1668 = vadd.f32 0.0, %v1667
      %v1669 = vpop.f32.mrb[0].mxu0
      %v1670 = vadd.f32 0.0, %v1669
      %v1671 = vpop.f32.mrb[0].mxu0
      %v1672 = vadd.f32 0.0, %v1671
      %v1673 = vpop.f32.mrb[0].mxu0
      %v1674 = vadd.f32 0.0, %v1673
      %1675 = vmatprep.mubr.bf16.mxu0 0
      %1676 = vmatmul.mubr.bf16.gmra.mrb[0].mxu0 %v869
      %v1677 = vpop.f32.mrb[0].mxu0
      %v1678 = vadd.f32 0.0, %v1677
      %v1679 = vpop.f32.mrb[0].mxu0
      %v1680 = vadd.f32 0.0, %v1679
      %v1681 = vpop.f32.mrb[0].mxu0
      %v1682 = vadd.f32 0.0, %v1681
      %v1683 = vpop.f32.mrb[0].mxu0
      %v1684 = vadd.f32 0.0, %v1683
      %1685 = vmatprep.mubr.bf16.mxu0 0
      %1686 = vmatmul.mubr.bf16.gmra.mrb[0].mxu0 %v870
      %v1687 = vpop.f32.mrb[0].mxu0
      %v1688 = vadd.f32 0.0, %v1687
      %v1689 = vpop.f32.mrb[0].mxu0
      %v1690 = vadd.f32 0.0, %v1689
      %v1691 = vpop.f32.mrb[0].mxu0
      %v1692 = vadd.f32 0.0, %v1691
      %v1693 = vpop.f32.mrb[0].mxu0
      %v1694 = vadd.f32 0.0, %v1693
      %1695 = vmatprep.mubr.bf16.mxu0 0
      %1696 = vmatmul.mubr.bf16.gmra.mrb[0].mxu0 %v871
      %v1697 = vpop.f32.mrb[0].mxu0
      %v1698 = vadd.f32 0.0, %v1697
      %v1699 = vpop.f32.mrb[0].mxu0
      %v1700 = vadd.f32 0.0, %v1699
      %v1701 = vpop.f32.mrb[0].mxu0
      %v1702 = vadd.f32 0.0, %v1701
      %v1703 = vpop.f32.mrb[0].mxu0
      %v1704 = vadd.f32 0.0, %v1703
      %1705 = vmatprep.mubr.bf16.mxu0 0
      %1706 = vmatmul.mubr.bf16.gmra.mrb[0].mxu0 %v872
      %v1707 = vpop.f32.mrb[0].mxu0
      %v1708 = vadd.f32 0.0, %v1707
      %v1709 = vpop.f32.mrb[0].mxu0
      %v1710 = vadd.f32 0.0, %v1709
      %v1711 = vpop.f32.mrb[0].mxu0
      %v1712 = vadd.f32 0.0, %v1711
      %v1713 = vpop.f32.mrb[0].mxu0
      %v1714 = vadd.f32 0.0, %v1713
      %1715 = vmatprep.mubr.bf16.mxu0 0
      %1716 = vmatmul.mubr.bf16.gmra.mrb[0].mxu0 %v873
      %v1717 = vpop.f32.mrb[0].mxu0
      %v1718 = vadd.f32 0.0, %v1717
      %v1719 = vpop.f32.mrb[0].mxu0
      %v1720 = vadd.f32 0.0, %v1719
      %v1721 = vpop.f32.mrb[0].mxu0
      %v1722 = vadd.f32 0.0, %v1721
      %v1723 = vpop.f32.mrb[0].mxu0
      %v1724 = vadd.f32 0.0, %v1723
      %1725 = vmatprep.mubr.bf16.mxu0 0
      %1726 = vmatmul.mubr.bf16.gmra.mrb[0].mxu0 %v874
      %v1727 = vpop.f32.mrb[0].mxu0
      %v1728 = vadd.f32 0.0, %v1727
      %v1729 = vpop.f32.mrb[0].mxu0
      %v1730 = vadd.f32 0.0, %v1729
      %v1731 = vpop.f32.mrb[0].mxu0
      %v1732 = vadd.f32 0.0, %v1731
      %v1733 = vpop.f32.mrb[0].mxu0
      %v1734 = vadd.f32 0.0, %v1733
      %1735 = vmatprep.mubr.bf16.mxu0 0
      %1736 = vmatmul.mubr.bf16.gmra.mrb[0].mxu0 %v875
      %v1737 = vpop.f32.mrb[0].mxu0
      %v1738 = vadd.f32 0.0, %v1737
      %v1739 = vpop.f32.mrb[0].mxu0
      %v1740 = vadd.f32 0.0, %v1739
      %v1741 = vpop.f32.mrb[0].mxu0
      %v1742 = vadd.f32 0.0, %v1741
      %v1743 = vpop.f32.mrb[0].mxu0
      %v1744 = vadd.f32 0.0, %v1743
      %1745 = vmatprep.mubr.bf16.mxu0 0
      %1746 = vmatmul.mubr.bf16.gmra.mrb[0].mxu0 %v876
      %v1747 = vpop.f32.mrb[0].mxu0
      %v1748 = vadd.f32 0.0, %v1747
      %v1749 = vpop.f32.mrb[0].mxu0
      %v1750 = vadd.f32 0.0, %v1749
      %v1751 = vpop.f32.mrb[0].mxu0
      %v1752 = vadd.f32 0.0, %v1751
      %v1753 = vpop.f32.mrb[0].mxu0
      %v1754 = vadd.f32 0.0, %v1753
      %1755 = vmatprep.mubr.bf16.mxu0 0
      %1756 = vmatmul.mubr.bf16.gmra.mrb[0].mxu0 %v877
      %v1757 = vpop.f32.mrb[0].mxu0
      %v1758 = vadd.f32 0.0, %v1757
      %v1759 = vpop.f32.mrb[0].mxu0
      %v1760 = vadd.f32 0.0, %v1759
      %v1761 = vpop.f32.mrb[0].mxu0
      %v1762 = vadd.f32 0.0, %v1761
      %v1763 = vpop.f32.mrb[0].mxu0
      %v1764 = vadd.f32 0.0, %v1763
      %1765 = vmatprep.mubr.bf16.mxu0 0
      %1766 = vmatmul.mubr.bf16.gmra.mrb[0].mxu0 %v878
      %v1767 = vpop.f32.mrb[0].mxu0
      %v1768 = vadd.f32 0.0, %v1767
      %v1769 = vpop.f32.mrb[0].mxu0
      %v1770 = vadd.f32 0.0, %v1769
      %v1771 = vpop.f32.mrb[0].mxu0
      %v1772 = vadd.f32 0.0, %v1771
      %v1773 = vpop.f32.mrb[0].mxu0
      %v1774 = vadd.f32 0.0, %v1773
      %1775 = vmatprep.mubr.bf16.mxu0 0
      %1776 = vmatmul.mubr.bf16.gmra.mrb[0].mxu0 %v879
      %v1777 = vpop.f32.mrb[0].mxu0
      %v1778 = vadd.f32 0.0, %v1777
      %v1779 = vpop.f32.mrb[0].mxu0
      %v1780 = vadd.f32 0.0, %v1779
      %v1781 = vpop.f32.mrb[0].mxu0
      %v1782 = vadd.f32 0.0, %v1781
      %v1783 = vpop.f32.mrb[0].mxu0
      %v1784 = vadd.f32 0.0, %v1783
      %1785 = vmatprep.mubr.bf16.mxu0 0
      %1786 = vmatmul.mubr.bf16.gmra.mrb[0].mxu0 %v880
      %v1787 = vpop.f32.mrb[0].mxu0
      %v1788 = vadd.f32 0.0, %v1787
      %v1789 = vpop.f32.mrb[0].mxu0
      %v1790 = vadd.f32 0.0, %v1789
      %v1791 = vpop.f32.mrb[0].mxu0
      %v1792 = vadd.f32 0.0, %v1791
      %v1793 = vpop.f32.mrb[0].mxu0
      %v1794 = vadd.f32 0.0, %v1793
      %1795 = vmatprep.mubr.bf16.mxu0 0
      %1796 = vmatmul.mubr.bf16.gmra.mrb[0].mxu0 %v881
      %v1797 = vpop.f32.mrb[0].mxu0
      %v1798 = vadd.f32 0.0, %v1797
      %v1799 = vpop.f32.mrb[0].mxu0
      %v1800 = vadd.f32 0.0, %v1799
      %v1801 = vpop.f32.mrb[0].mxu0
      %v1802 = vadd.f32 0.0, %v1801
      %v1803 = vpop.f32.mrb[0].mxu0
      %v1804 = vadd.f32 0.0, %v1803
      %1805 = vmatprep.mubr.bf16.mxu0 0
      %1806 = vmatmul.mubr.bf16.gmra.mrb[0].mxu0 %v882
      %v1807 = vpop.f32.mrb[0].mxu0
      %v1808 = vadd.f32 0.0, %v1807
      %v1809 = vpop.f32.mrb[0].mxu0
      %v1810 = vadd.f32 0.0, %v1809
      %v1811 = vpop.f32.mrb[0].mxu0
      %v1812 = vadd.f32 0.0, %v1811
      %v1813 = vpop.f32.mrb[0].mxu0
      %v1814 = vadd.f32 0.0, %v1813
      %1815 = vmatprep.mubr.bf16.mxu0 0
      %1816 = vmatmul.mubr.bf16.gmra.mrb[0].mxu0 %v883
      %v1817 = vpop.f32.mrb[0].mxu0
      %v1818 = vadd.f32 0.0, %v1817
      %v1819 = vpop.f32.mrb[0].mxu0
      %v1820 = vadd.f32 0.0, %v1819
      %v1821 = vpop.f32.mrb[0].mxu0
      %v1822 = vadd.f32 0.0, %v1821
      %v1823 = vpop.f32.mrb[0].mxu0
      %v1824 = vadd.f32 0.0, %v1823
      %1825 = vmatprep.mubr.bf16.mxu0 0
      %1826 = vmatmul.mubr.bf16.gmra.mrb[0].mxu0 %v884
      %v1827 = vpop.f32.mrb[0].mxu0
      %v1828 = vadd.f32 0.0, %v1827
      %v1829 = vpop.f32.mrb[0].mxu0
      %v1830 = vadd.f32 0.0, %v1829
      %v1831 = vpop.f32.mrb[0].mxu0
      %v1832 = vadd.f32 0.0, %v1831
      %v1833 = vpop.f32.mrb[0].mxu0
      %v1834 = vadd.f32 0.0, %v1833
      %1835 = vmatprep.mubr.bf16.mxu0 0
      %1836 = vmatmul.mubr.bf16.gmra.mrb[0].mxu0 %v885
      %v1837 = vpop.f32.mrb[0].mxu0
      %v1838 = vadd.f32 0.0, %v1837
      %v1839 = vpop.f32.mrb[0].mxu0
      %v1840 = vadd.f32 0.0, %v1839
      %v1841 = vpop.f32.mrb[0].mxu0
      %v1842 = vadd.f32 0.0, %v1841
      %v1843 = vpop.f32.mrb[0].mxu0
      %v1844 = vadd.f32 0.0, %v1843
      %1845 = vmatprep.mubr.bf16.mxu0 0
      %1846 = vmatmul.mubr.bf16.gmra.mrb[0].mxu0 %v886
      %v1847 = vpop.f32.mrb[0].mxu0
      %v1848 = vadd.f32 0.0, %v1847
      %v1849 = vpop.f32.mrb[0].mxu0
      %v1850 = vadd.f32 0.0, %v1849
      %v1851 = vpop.f32.mrb[0].mxu0
      %v1852 = vadd.f32 0.0, %v1851
      %v1853 = vpop.f32.mrb[0].mxu0
      %v1854 = vadd.f32 0.0, %v1853
      %1855 = vmatprep.mubr.bf16.mxu0 0
      %1856 = vmatmul.mubr.bf16.gmra.mrb[0].mxu0 %v887
      %v1857 = vpop.f32.mrb[0].mxu0
      %v1858 = vadd.f32 0.0, %v1857
      %v1859 = vpop.f32.mrb[0].mxu0
      %v1860 = vadd.f32 0.0, %v1859
      %v1861 = vpop.f32.mrb[0].mxu0
      %v1862 = vadd.f32 0.0, %v1861
      %v1863 = vpop.f32.mrb[0].mxu0
      %v1864 = vadd.f32 0.0, %v1863
      %1865 = vmatprep.mubr.bf16.mxu0 0
      %1866 = vmatmul.mubr.bf16.gmra.mrb[0].mxu0 %v888
      %v1867 = vpop.f32.mrb[0].mxu0
      %v1868 = vadd.f32 0.0, %v1867
      %v1869 = vpop.f32.mrb[0].mxu0
      %v1870 = vadd.f32 0.0, %v1869
      %v1871 = vpop.f32.mrb[0].mxu0
      %v1872 = vadd.f32 0.0, %v1871
      %v1873 = vpop.f32.mrb[0].mxu0
      %v1874 = vadd.f32 0.0, %v1873
      %1875 = vmatprep.mubr.bf16.mxu0 0
      %1876 = vmatmul.mubr.bf16.gmra.mrb[0].mxu0 %v889
      %v1877 = vpop.f32.mrb[0].mxu0
      %v1878 = vadd.f32 0.0, %v1877
      %v1879 = vpop.f32.mrb[0].mxu0
      %v1880 = vadd.f32 0.0, %v1879
      %v1881 = vpop.f32.mrb[0].mxu0
      %v1882 = vadd.f32 0.0, %v1881
      %v1883 = vpop.f32.mrb[0].mxu0
      %v1884 = vadd.f32 0.0, %v1883
      %1885 = vmatprep.mubr.bf16.mxu0 0
      %1886 = vmatmul.mubr.bf16.gmra.mrb[0].mxu0 %v890
      %v1887 = vpop.f32.mrb[0].mxu0
      %v1888 = vadd.f32 0.0, %v1887
      %v1889 = vpop.f32.mrb[0].mxu0
      %v1890 = vadd.f32 0.0, %v1889
      %v1891 = vpop.f32.mrb[0].mxu0
      %v1892 = vadd.f32 0.0, %v1891
      %v1893 = vpop.f32.mrb[0].mxu0
      %v1894 = vadd.f32 0.0, %v1893
      %1895 = vmatprep.mubr.bf16.mxu0 0
      %1896 = vmatmul.mubr.bf16.gmra.mrb[0].mxu0 %v891
      %v1897 = vpop.f32.mrb[0].mxu0
      %v1898 = vadd.f32 0.0, %v1897
      %v1899 = vpop.f32.mrb[0].mxu0
      %v1900 = vadd.f32 0.0, %v1899
      %v1901 = vpop.f32.mrb[0].mxu0
      %v1902 = vadd.f32 0.0, %v1901
      %v1903 = vpop.f32.mrb[0].mxu0
      %v1904 = vadd.f32 0.0, %v1903
      %1905 = vmatprep.mubr.bf16.mxu0 0
      %1906 = vmatmul.mubr.bf16.gmra.mrb[0].mxu0 %v892
      %v1907 = vpop.f32.mrb[0].mxu0
      %v1908 = vadd.f32 0.0, %v1907
      %v1909 = vpop.f32.mrb[0].mxu0
      %v1910 = vadd.f32 0.0, %v1909
      %v1911 = vpop.f32.mrb[0].mxu0
      %v1912 = vadd.f32 0.0, %v1911
      %v1913 = vpop.f32.mrb[0].mxu0
      %v1914 = vadd.f32 0.0, %v1913
      %1915 = vmatprep.mubr.bf16.mxu0 0
      %1916 = vmatmul.mubr.bf16.gmra.mrb[0].mxu0 %v893
      %v1917 = vpop.f32.mrb[0].mxu0
      %v1918 = vadd.f32 0.0, %v1917
      %v1919 = vpop.f32.mrb[0].mxu0
      %v1920 = vadd.f32 0.0, %v1919
      %v1921 = vpop.f32.mrb[0].mxu0
      %v1922 = vadd.f32 0.0, %v1921
      %v1923 = vpop.f32.mrb[0].mxu0
      %v1924 = vadd.f32 0.0, %v1923
      %1925 = vmatprep.mubr.bf16.mxu0 0
      %1926 = vmatmul.mubr.bf16.gmra.mrb[0].mxu0 %v894
      %v1927 = vpop.f32.mrb[0].mxu0
      %v1928 = vadd.f32 0.0, %v1927
      %v1929 = vpop.f32.mrb[0].mxu0
      %v1930 = vadd.f32 0.0, %v1929
      %v1931 = vpop.f32.mrb[0].mxu0
      %v1932 = vadd.f32 0.0, %v1931
      %v1933 = vpop.f32.mrb[0].mxu0
      %v1934 = vadd.f32 0.0, %v1933
      %1935 = vmatprep.mubr.bf16.mxu0 0
      %1936 = vmatmul.mubr.bf16.gmra.mrb[0].mxu0 %v895
      %v1937 = vpop.f32.mrb[0].mxu0
      %v1938 = vadd.f32 0.0, %v1937
      %v1939 = vpop.f32.mrb[0].mxu0
      %v1940 = vadd.f32 0.0, %v1939
      %v1941 = vpop.f32.mrb[0].mxu0
      %v1942 = vadd.f32 0.0, %v1941
      %v1943 = vpop.f32.mrb[0].mxu0
      %v1944 = vadd.f32 0.0, %v1943
      %1945 = vmatprep.mubr.bf16.mxu0 0
      %1946 = vmatmul.mubr.bf16.gmra.mrb[0].mxu0 %v896
      %v1947 = vpop.f32.mrb[0].mxu0
      %v1948 = vadd.f32 0.0, %v1947
      %v1949 = vpop.f32.mrb[0].mxu0
      %v1950 = vadd.f32 0.0, %v1949
      %v1951 = vpop.f32.mrb[0].mxu0
      %v1952 = vadd.f32 0.0, %v1951
      %v1953 = vpop.f32.mrb[0].mxu0
      %v1954 = vadd.f32 0.0, %v1953
      %1955 = vmatprep.mubr.bf16.mxu0 0
      %1956 = vmatmul.mubr.bf16.gmra.mrb[0].mxu0 %v897
      %v1957 = vpop.f32.mrb[0].mxu0
      %v1958 = vadd.f32 0.0, %v1957
      %v1959 = vpop.f32.mrb[0].mxu0
      %v1960 = vadd.f32 0.0, %v1959
      %v1961 = vpop.f32.mrb[0].mxu0
      %v1962 = vadd.f32 0.0, %v1961
      %v1963 = vpop.f32.mrb[0].mxu0
      %v1964 = vadd.f32 0.0, %v1963
      %1965 = vmatprep.mubr.bf16.mxu0 0
      %1966 = vmatmul.mubr.bf16.gmra.mrb[0].mxu0 %v898
      %v1967 = vpop.f32.mrb[0].mxu0
      %v1968 = vadd.f32 0.0, %v1967
      %v1969 = vpop.f32.mrb[0].mxu0
      %v1970 = vadd.f32 0.0, %v1969
      %v1971 = vpop.f32.mrb[0].mxu0
      %v1972 = vadd.f32 0.0, %v1971
      %v1973 = vpop.f32.mrb[0].mxu0
      %v1974 = vadd.f32 0.0, %v1973
      %1975 = vmatprep.mubr.bf16.mxu0 0
      %1976 = vmatmul.mubr.bf16.gmra.mrb[0].mxu0 %v899
      %v1977 = vpop.f32.mrb[0].mxu0
      %v1978 = vadd.f32 0.0, %v1977
      %v1979 = vpop.f32.mrb[0].mxu0
      %v1980 = vadd.f32 0.0, %v1979
      %v1981 = vpop.f32.mrb[0].mxu0
      %v1982 = vadd.f32 0.0, %v1981
      %v1983 = vpop.f32.mrb[0].mxu0
      %v1984 = vadd.f32 0.0, %v1983
      %1985 = vmatprep.mubr.bf16.mxu0 0
      %1986 = vmatmul.mubr.bf16.gmra.mrb[0].mxu0 %v900
      %v1987 = vpop.f32.mrb[0].mxu0
      %v1988 = vadd.f32 0.0, %v1987
      %v1989 = vpop.f32.mrb[0].mxu0
      %v1990 = vadd.f32 0.0, %v1989
      %v1991 = vpop.f32.mrb[0].mxu0
      %v1992 = vadd.f32 0.0, %v1991
      %v1993 = vpop.f32.mrb[0].mxu0
      %v1994 = vadd.f32 0.0, %v1993
      %1995 = vmatprep.mubr.bf16.mxu0 0
      %1996 = vmatmul.mubr.bf16.gmra.mrb[0].mxu0 %v901
      %v1997 = vpop.f32.mrb[0].mxu0
      %v1998 = vadd.f32 0.0, %v1997
      %v1999 = vpop.f32.mrb[0].mxu0
      %v2000 = vadd.f32 0.0, %v1999
      %v2001 = vpop.f32.mrb[0].mxu0
      %v2002 = vadd.f32 0.0, %v2001
      %v2003 = vpop.f32.mrb[0].mxu0
      %v2004 = vadd.f32 0.0, %v2003
      %2005 = vmatprep.mubr.bf16.mxu0 0
      %2006 = vmatmul.mubr.bf16.gmra.mrb[0].mxu0 %v902
      %v2007 = vpop.f32.mrb[0].mxu0
      %v2008 = vadd.f32 0.0, %v2007
      %v2009 = vpop.f32.mrb[0].mxu0
      %v2010 = vadd.f32 0.0, %v2009
      %v2011 = vpop.f32.mrb[0].mxu0
      %v2012 = vadd.f32 0.0, %v2011
      %v2013 = vpop.f32.mrb[0].mxu0
      %v2014 = vadd.f32 0.0, %v2013
      %2015 = vmatprep.mubr.bf16.mxu0 0
      %2016 = vmatmul.mubr.bf16.gmra.mrb[0].mxu0 %v903
      %v2017 = vpop.f32.mrb[0].mxu0
      %v2018 = vadd.f32 0.0, %v2017
      %v2019 = vpop.f32.mrb[0].mxu0
      %v2020 = vadd.f32 0.0, %v2019
      %v2021 = vpop.f32.mrb[0].mxu0
      %v2022 = vadd.f32 0.0, %v2021
      %v2023 = vpop.f32.mrb[0].mxu0
      %v2024 = vadd.f32 0.0, %v2023
      %2025 = vmatprep.mubr.bf16.mxu0 0
      %2026 = vmatmul.mubr.bf16.gmra.mrb[0].mxu0 %v904
      %v2027 = vpop.f32.mrb[0].mxu0
      %v2028 = vadd.f32 0.0, %v2027
      %v2029 = vpop.f32.mrb[0].mxu0
      %v2030 = vadd.f32 0.0, %v2029
      %v2031 = vpop.f32.mrb[0].mxu0
      %v2032 = vadd.f32 0.0, %v2031
      %v2033 = vpop.f32.mrb[0].mxu0
      %v2034 = vadd.f32 0.0, %v2033
      %2035 = vmatprep.mubr.bf16.mxu0 0
      %2036 = vmatmul.mubr.bf16.gmra.mrb[0].mxu0 %v905
      %v2037 = vpop.f32.mrb[0].mxu0
      %v2038 = vadd.f32 0.0, %v2037
      %v2039 = vpop.f32.mrb[0].mxu0
      %v2040 = vadd.f32 0.0, %v2039
      %v2041 = vpop.f32.mrb[0].mxu0
      %v2042 = vadd.f32 0.0, %v2041
      %v2043 = vpop.f32.mrb[0].mxu0
      %v2044 = vadd.f32 0.0, %v2043
      %2045 = vmatprep.mubr.bf16.mxu0 0
      %2046 = vmatmul.mubr.bf16.gmra.mrb[0].mxu0 %v906
      %v2047 = vpop.f32.mrb[0].mxu0
      %v2048 = vadd.f32 0.0, %v2047
      %v2049 = vpop.f32.mrb[0].mxu0
      %v2050 = vadd.f32 0.0, %v2049
      %v2051 = vpop.f32.mrb[0].mxu0
      %v2052 = vadd.f32 0.0, %v2051
      %v2053 = vpop.f32.mrb[0].mxu0
      %v2054 = vadd.f32 0.0, %v2053
      %2055 = vmatprep.mubr.bf16.mxu0 0
      %2056 = vmatmul.mubr.bf16.gmra.mrb[0].mxu0 %v907
      %v2057 = vpop.f32.mrb[0].mxu0
      %v2058 = vadd.f32 0.0, %v2057
      %v2059 = vpop.f32.mrb[0].mxu0
      %v2060 = vadd.f32 0.0, %v2059
      %v2061 = vpop.f32.mrb[0].mxu0
      %v2062 = vadd.f32 0.0, %v2061
      %v2063 = vpop.f32.mrb[0].mxu0
      %v2064 = vadd.f32 0.0, %v2063
      %2065 = vmatprep.mubr.bf16.mxu0 0
      %2066 = vmatmul.mubr.bf16.gmra.mrb[0].mxu0 %v908
      %v2067 = vpop.f32.mrb[0].mxu0
      %v2068 = vadd.f32 0.0, %v2067
      %v2069 = vpop.f32.mrb[0].mxu0
      %v2070 = vadd.f32 0.0, %v2069
      %v2071 = vpop.f32.mrb[0].mxu0
      %v2072 = vadd.f32 0.0, %v2071
      %v2073 = vpop.f32.mrb[0].mxu0
      %v2074 = vadd.f32 0.0, %v2073
      %2075 = vmatprep.mubr.bf16.mxu0 0
      %2076 = vmatmul.mubr.bf16.gmra.mrb[0].mxu0 %v909
      %v2077 = vpop.f32.mrb[0].mxu0
      %v2078 = vadd.f32 0.0, %v2077
      %v2079 = vpop.f32.mrb[0].mxu0
      %v2080 = vadd.f32 0.0, %v2079
      %v2081 = vpop.f32.mrb[0].mxu0
      %v2082 = vadd.f32 0.0, %v2081
      %v2083 = vpop.f32.mrb[0].mxu0
      %v2084 = vadd.f32 0.0, %v2083
      %2085 = vmatprep.mubr.bf16.mxu0 0
      %2086 = vmatmul.mubr.bf16.gmra.mrb[0].mxu0 %v910
      %v2087 = vpop.f32.mrb[0].mxu0
      %v2088 = vadd.f32 0.0, %v2087
      %v2089 = vpop.f32.mrb[0].mxu0
      %v2090 = vadd.f32 0.0, %v2089
      %v2091 = vpop.f32.mrb[0].mxu0
      %v2092 = vadd.f32 0.0, %v2091
      %v2093 = vpop.f32.mrb[0].mxu0
      %v2094 = vadd.f32 0.0, %v2093
      %2095 = vmatprep.mubr.bf16.mxu0 0
      %2096 = vmatmul.mubr.bf16.gmra.mrb[0].mxu0 %v911
      %v2097 = vpop.f32.mrb[0].mxu0
      %v2098 = vadd.f32 0.0, %v2097
      %v2099 = vpop.f32.mrb[0].mxu0
      %v2100 = vadd.f32 0.0, %v2099
      %v2101 = vpop.f32.mrb[0].mxu0
      %v2102 = vadd.f32 0.0, %v2101
      %v2103 = vpop.f32.mrb[0].mxu0
      %v2104 = vadd.f32 0.0, %v2103
      %2105 = vmatprep.mubr.bf16.mxu0 0
      %2106 = vmatmul.mubr.bf16.gmra.mrb[0].mxu0 %v912
      %v2107 = vpop.f32.mrb[0].mxu0
      %v2108 = vadd.f32 0.0, %v2107
      %v2109 = vpop.f32.mrb[0].mxu0
      %v2110 = vadd.f32 0.0, %v2109
      %v2111 = vpop.f32.mrb[0].mxu0
      %v2112 = vadd.f32 0.0, %v2111
      %v2113 = vpop.f32.mrb[0].mxu0
      %v2114 = vadd.f32 0.0, %v2113
      %2115 = vmatprep.mubr.bf16.mxu0 0
      %2116 = vmatmul.mubr.bf16.gmra.mrb[0].mxu0 %v913
      %v2117 = vpop.f32.mrb[0].mxu0
      %v2118 = vadd.f32 0.0, %v2117
      %v2119 = vpop.f32.mrb[0].mxu0
      %v2120 = vadd.f32 0.0, %v2119
      %v2121 = vpop.f32.mrb[0].mxu0
      %v2122 = vadd.f32 0.0, %v2121
      %v2123 = vpop.f32.mrb[0].mxu0
      %v2124 = vadd.f32 0.0, %v2123
      %2125 = vmatprep.mubr.bf16.mxu0 0
      %2126 = vmatmul.mubr.bf16.gmra.mrb[0].mxu0 %v914
      %v2127 = vpop.f32.mrb[0].mxu0
      %v2128 = vadd.f32 0.0, %v2127
      %v2129 = vpop.f32.mrb[0].mxu0
      %v2130 = vadd.f32 0.0, %v2129
      %v2131 = vpop.f32.mrb[0].mxu0
      %v2132 = vadd.f32 0.0, %v2131
      %v2133 = vpop.f32.mrb[0].mxu0
      %v2134 = vadd.f32 0.0, %v2133
      %2135 = vmatprep.mubr.bf16.mxu0 0
      %2136 = vmatmul.mubr.bf16.gmra.mrb[0].mxu0 %v915
      %v2137 = vpop.f32.mrb[0].mxu0
      %v2138 = vadd.f32 0.0, %v2137
      %v2139 = vpop.f32.mrb[0].mxu0
      %v2140 = vadd.f32 0.0, %v2139
      %v2141 = vpop.f32.mrb[0].mxu0
      %v2142 = vadd.f32 0.0, %v2141
      %v2143 = vpop.f32.mrb[0].mxu0
      %v2144 = vadd.f32 0.0, %v2143
      %2145 = vmatprep.mubr.bf16.mxu0 0
      %2146 = vmatmul.mubr.bf16.gmra.mrb[0].mxu0 %v916
      %v2147 = vpop.f32.mrb[0].mxu0
      %v2148 = vadd.f32 0.0, %v2147
      %v2149 = vpop.f32.mrb[0].mxu0
      %v2150 = vadd.f32 0.0, %v2149
      %v2151 = vpop.f32.mrb[0].mxu0
      %v2152 = vadd.f32 0.0, %v2151
      %v2153 = vpop.f32.mrb[0].mxu0
      %v2154 = vadd.f32 0.0, %v2153
      %2155 = vmatprep.mubr.bf16.mxu0 0
      %2156 = vmatmul.mubr.bf16.gmra.mrb[0].mxu0 %v917
      %v2157 = vpop.f32.mrb[0].mxu0
      %v2158 = vadd.f32 0.0, %v2157
      %v2159 = vpop.f32.mrb[0].mxu0
      %v2160 = vadd.f32 0.0, %v2159
      %v2161 = vpop.f32.mrb[0].mxu0
      %v2162 = vadd.f32 0.0, %v2161
      %v2163 = vpop.f32.mrb[0].mxu0
      %v2164 = vadd.f32 0.0, %v2163
      %2165 = vmatprep.mubr.bf16.mxu0 0
      %2166 = vmatmul.mubr.bf16.gmra.mrb[0].mxu0 %v918
      %v2167 = vpop.f32.mrb[0].mxu0
      %v2168 = vadd.f32 0.0, %v2167
      %v2169 = vpop.f32.mrb[0].mxu0
      %v2170 = vadd.f32 0.0, %v2169
      %v2171 = vpop.f32.mrb[0].mxu0
      %v2172 = vadd.f32 0.0, %v2171
      %v2173 = vpop.f32.mrb[0].mxu0
      %v2174 = vadd.f32 0.0, %v2173
      %2175 = vdwg.mxu0
      %v2176 = vmul.f32 %v1138, %v1138
      %v2177 = vmul.f32 %v1140, %v1140
      %v2178 = vmul.f32 %v1142, %v1142
      %v2179 = vmul.f32 %v1144, %v1144
      %v2180 = vmul.f32 %v1148, %v1148
      %v2181 = vmul.f32 %v1150, %v1150
      %v2182 = vmul.f32 %v1152, %v1152
      %v2183 = vmul.f32 %v1154, %v1154
      %v2184 = vmul.f32 %v1158, %v1158
      %v2185 = vmul.f32 %v1160, %v1160
      %v2186 = vmul.f32 %v1162, %v1162
      %v2187 = vmul.f32 %v1164, %v1164
      %v2188 = vmul.f32 %v1168, %v1168
      %v2189 = vmul.f32 %v1170, %v1170
      %v2190 = vmul.f32 %v1172, %v1172
      %v2191 = vmul.f32 %v1174, %v1174
      %v2192 = vmul.f32 %v1178, %v1178
      %v2193 = vmul.f32 %v1180, %v1180
      %v2194 = vmul.f32 %v1182, %v1182
      %v2195 = vmul.f32 %v1184, %v1184
      %v2196 = vmul.f32 %v1188, %v1188
      %v2197 = vmul.f32 %v1190, %v1190
      %v2198 = vmul.f32 %v1192, %v1192
      %v2199 = vmul.f32 %v1194, %v1194
      %v2200 = vmul.f32 %v1198, %v1198
      %v2201 = vmul.f32 %v1200, %v1200
      %v2202 = vmul.f32 %v1202, %v1202
      %v2203 = vmul.f32 %v1204, %v1204
      %v2204 = vmul.f32 %v1208, %v1208
      %v2205 = vmul.f32 %v1210, %v1210
      %v2206 = vmul.f32 %v1212, %v1212
      %v2207 = vmul.f32 %v1214, %v1214
      %v2208 = vmul.f32 %v1218, %v1218
      %v2209 = vmul.f32 %v1220, %v1220
      %v2210 = vmul.f32 %v1222, %v1222
      %v2211 = vmul.f32 %v1224, %v1224
      %v2212 = vmul.f32 %v1228, %v1228
      %v2213 = vmul.f32 %v1230, %v1230
      %v2214 = vmul.f32 %v1232, %v1232
      %v2215 = vmul.f32 %v1234, %v1234
      %v2216 = vmul.f32 %v1238, %v1238
      %v2217 = vmul.f32 %v1240, %v1240
      %v2218 = vmul.f32 %v1242, %v1242
      %v2219 = vmul.f32 %v1244, %v1244
      %v2220 = vmul.f32 %v1248, %v1248
      %v2221 = vmul.f32 %v1250, %v1250
      %v2222 = vmul.f32 %v1252, %v1252
      %v2223 = vmul.f32 %v1254, %v1254
      %v2224 = vmul.f32 %v1258, %v1258
      %v2225 = vmul.f32 %v1260, %v1260
      %v2226 = vmul.f32 %v1262, %v1262
      %v2227 = vmul.f32 %v1264, %v1264
      %v2228 = vmul.f32 %v1268, %v1268
      %v2229 = vmul.f32 %v1270, %v1270
      %v2230 = vmul.f32 %v1272, %v1272
      %v2231 = vmul.f32 %v1274, %v1274
      %v2232 = vmul.f32 %v1278, %v1278
      %v2233 = vmul.f32 %v1280, %v1280
      %v2234 = vmul.f32 %v1282, %v1282
      %v2235 = vmul.f32 %v1284, %v1284
      %v2236 = vmul.f32 %v1288, %v1288
      %v2237 = vmul.f32 %v1290, %v1290
      %v2238 = vmul.f32 %v1292, %v1292
      %v2239 = vmul.f32 %v1294, %v1294
      %v2240 = vmul.f32 %v1298, %v1298
      %v2241 = vmul.f32 %v1300, %v1300
      %v2242 = vmul.f32 %v1302, %v1302
      %v2243 = vmul.f32 %v1304, %v1304
      %v2244 = vmul.f32 %v1308, %v1308
      %v2245 = vmul.f32 %v1310, %v1310
      %v2246 = vmul.f32 %v1312, %v1312
      %v2247 = vmul.f32 %v1314, %v1314
      %v2248 = vmul.f32 %v1318, %v1318
      %v2249 = vmul.f32 %v1320, %v1320
      %v2250 = vmul.f32 %v1322, %v1322
      %v2251 = vmul.f32 %v1324, %v1324
      %v2252 = vmul.f32 %v1328, %v1328
      %v2253 = vmul.f32 %v1330, %v1330
      %v2254 = vmul.f32 %v1332, %v1332
      %v2255 = vmul.f32 %v1334, %v1334
      %v2256 = vmul.f32 %v1338, %v1338
      %v2257 = vmul.f32 %v1340, %v1340
      %v2258 = vmul.f32 %v1342, %v1342
      %v2259 = vmul.f32 %v1344, %v1344
      %v2260 = vmul.f32 %v1348, %v1348
      %v2261 = vmul.f32 %v1350, %v1350
      %v2262 = vmul.f32 %v1352, %v1352
      %v2263 = vmul.f32 %v1354, %v1354
      %v2264 = vmul.f32 %v1358, %v1358
      %v2265 = vmul.f32 %v1360, %v1360
      %v2266 = vmul.f32 %v1362, %v1362
      %v2267 = vmul.f32 %v1364, %v1364
      %v2268 = vmul.f32 %v1368, %v1368
      %v2269 = vmul.f32 %v1370, %v1370
      %v2270 = vmul.f32 %v1372, %v1372
      %v2271 = vmul.f32 %v1374, %v1374
      %v2272 = vmul.f32 %v1378, %v1378
      %v2273 = vmul.f32 %v1380, %v1380
      %v2274 = vmul.f32 %v1382, %v1382
      %v2275 = vmul.f32 %v1384, %v1384
      %v2276 = vmul.f32 %v1388, %v1388
      %v2277 = vmul.f32 %v1390, %v1390
      %v2278 = vmul.f32 %v1392, %v1392
      %v2279 = vmul.f32 %v1394, %v1394
      %v2280 = vmul.f32 %v1398, %v1398
      %v2281 = vmul.f32 %v1400, %v1400
      %v2282 = vmul.f32 %v1402, %v1402
      %v2283 = vmul.f32 %v1404, %v1404
      %v2284 = vmul.f32 %v1408, %v1408
      %v2285 = vmul.f32 %v1410, %v1410
      %v2286 = vmul.f32 %v1412, %v1412
      %v2287 = vmul.f32 %v1414, %v1414
      %v2288 = vmul.f32 %v1418, %v1418
      %v2289 = vmul.f32 %v1420, %v1420
      %v2290 = vmul.f32 %v1422, %v1422
      %v2291 = vmul.f32 %v1424, %v1424
      %v2292 = vmul.f32 %v1428, %v1428
      %v2293 = vmul.f32 %v1430, %v1430
      %v2294 = vmul.f32 %v1432, %v1432
      %v2295 = vmul.f32 %v1434, %v1434
      %v2296 = vmul.f32 %v1438, %v1438
      %v2297 = vmul.f32 %v1440, %v1440
      %v2298 = vmul.f32 %v1442, %v1442
      %v2299 = vmul.f32 %v1444, %v1444
      %v2300 = vmul.f32 %v1448, %v1448
      %v2301 = vmul.f32 %v1450, %v1450
      %v2302 = vmul.f32 %v1452, %v1452
      %v2303 = vmul.f32 %v1454, %v1454
      %v2304 = vmul.f32 %v1458, %v1458
      %v2305 = vmul.f32 %v1460, %v1460
      %v2306 = vmul.f32 %v1462, %v1462
      %v2307 = vmul.f32 %v1464, %v1464
      %v2308 = vmul.f32 %v1468, %v1468
      %v2309 = vmul.f32 %v1470, %v1470
      %v2310 = vmul.f32 %v1472, %v1472
      %v2311 = vmul.f32 %v1474, %v1474
      %v2312 = vmul.f32 %v1478, %v1478
      %v2313 = vmul.f32 %v1480, %v1480
      %v2314 = vmul.f32 %v1482, %v1482
      %v2315 = vmul.f32 %v1484, %v1484
      %v2316 = vmul.f32 %v1488, %v1488
      %v2317 = vmul.f32 %v1490, %v1490
      %v2318 = vmul.f32 %v1492, %v1492
      %v2319 = vmul.f32 %v1494, %v1494
      %v2320 = vmul.f32 %v1498, %v1498
      %v2321 = vmul.f32 %v1500, %v1500
      %v2322 = vmul.f32 %v1502, %v1502
      %v2323 = vmul.f32 %v1504, %v1504
      %v2324 = vmul.f32 %v1508, %v1508
      %v2325 = vmul.f32 %v1510, %v1510
      %v2326 = vmul.f32 %v1512, %v1512
      %v2327 = vmul.f32 %v1514, %v1514
      %v2328 = vmul.f32 %v1518, %v1518
      %v2329 = vmul.f32 %v1520, %v1520
      %v2330 = vmul.f32 %v1522, %v1522
      %v2331 = vmul.f32 %v1524, %v1524
      %v2332 = vmul.f32 %v1528, %v1528
      %v2333 = vmul.f32 %v1530, %v1530
      %v2334 = vmul.f32 %v1532, %v1532
      %v2335 = vmul.f32 %v1534, %v1534
      %v2336 = vmul.f32 %v1538, %v1538
      %v2337 = vmul.f32 %v1540, %v1540
      %v2338 = vmul.f32 %v1542, %v1542
      %v2339 = vmul.f32 %v1544, %v1544
      %v2340 = vmul.f32 %v1548, %v1548
      %v2341 = vmul.f32 %v1550, %v1550
      %v2342 = vmul.f32 %v1552, %v1552
      %v2343 = vmul.f32 %v1554, %v1554
      %v2344 = vmul.f32 %v1558, %v1558
      %v2345 = vmul.f32 %v1560, %v1560
      %v2346 = vmul.f32 %v1562, %v1562
      %v2347 = vmul.f32 %v1564, %v1564
      %v2348 = vmul.f32 %v1568, %v1568
      %v2349 = vmul.f32 %v1570, %v1570
      %v2350 = vmul.f32 %v1572, %v1572
      %v2351 = vmul.f32 %v1574, %v1574
      %v2352 = vmul.f32 %v1578, %v1578
      %v2353 = vmul.f32 %v1580, %v1580
      %v2354 = vmul.f32 %v1582, %v1582
      %v2355 = vmul.f32 %v1584, %v1584
      %v2356 = vmul.f32 %v1588, %v1588
      %v2357 = vmul.f32 %v1590, %v1590
      %v2358 = vmul.f32 %v1592, %v1592
      %v2359 = vmul.f32 %v1594, %v1594
      %v2360 = vmul.f32 %v1598, %v1598
      %v2361 = vmul.f32 %v1600, %v1600
      %v2362 = vmul.f32 %v1602, %v1602
      %v2363 = vmul.f32 %v1604, %v1604
      %v2364 = vmul.f32 %v1608, %v1608
      %v2365 = vmul.f32 %v1610, %v1610
      %v2366 = vmul.f32 %v1612, %v1612
      %v2367 = vmul.f32 %v1614, %v1614
      %v2368 = vmul.f32 %v1618, %v1618
      %v2369 = vmul.f32 %v1620, %v1620
      %v2370 = vmul.f32 %v1622, %v1622
      %v2371 = vmul.f32 %v1624, %v1624
      %v2372 = vmul.f32 %v1628, %v1628
      %v2373 = vmul.f32 %v1630, %v1630
      %v2374 = vmul.f32 %v1632, %v1632
      %v2375 = vmul.f32 %v1634, %v1634
      %v2376 = vmul.f32 %v1638, %v1638
      %v2377 = vmul.f32 %v1640, %v1640
      %v2378 = vmul.f32 %v1642, %v1642
      %v2379 = vmul.f32 %v1644, %v1644
      %v2380 = vmul.f32 %v1648, %v1648
      %v2381 = vmul.f32 %v1650, %v1650
      %v2382 = vmul.f32 %v1652, %v1652
      %v2383 = vmul.f32 %v1654, %v1654
      %v2384 = vmul.f32 %v1658, %v1658
      %v2385 = vmul.f32 %v1660, %v1660
      %v2386 = vmul.f32 %v1662, %v1662
      %v2387 = vmul.f32 %v1664, %v1664
      %v2388 = vmul.f32 %v1668, %v1668
      %v2389 = vmul.f32 %v1670, %v1670
      %v2390 = vmul.f32 %v1672, %v1672
      %v2391 = vmul.f32 %v1674, %v1674
      %v2392 = vmul.f32 %v1678, %v1678
      %v2393 = vmul.f32 %v1680, %v1680
      %v2394 = vmul.f32 %v1682, %v1682
      %v2395 = vmul.f32 %v1684, %v1684
      %v2396 = vmul.f32 %v1688, %v1688
      %v2397 = vmul.f32 %v1690, %v1690
      %v2398 = vmul.f32 %v1692, %v1692
      %v2399 = vmul.f32 %v1694, %v1694
      %v2400 = vmul.f32 %v1698, %v1698
      %v2401 = vmul.f32 %v1700, %v1700
      %v2402 = vmul.f32 %v1702, %v1702
      %v2403 = vmul.f32 %v1704, %v1704
      %v2404 = vmul.f32 %v1708, %v1708
      %v2405 = vmul.f32 %v1710, %v1710
      %v2406 = vmul.f32 %v1712, %v1712
      %v2407 = vmul.f32 %v1714, %v1714
      %v2408 = vmul.f32 %v1718, %v1718
      %v2409 = vmul.f32 %v1720, %v1720
      %v2410 = vmul.f32 %v1722, %v1722
      %v2411 = vmul.f32 %v1724, %v1724
      %v2412 = vmul.f32 %v1728, %v1728
      %v2413 = vmul.f32 %v1730, %v1730
      %v2414 = vmul.f32 %v1732, %v1732
      %v2415 = vmul.f32 %v1734, %v1734
      %v2416 = vmul.f32 %v1738, %v1738
      %v2417 = vmul.f32 %v1740, %v1740
      %v2418 = vmul.f32 %v1742, %v1742
      %v2419 = vmul.f32 %v1744, %v1744
      %v2420 = vmul.f32 %v1748, %v1748
      %v2421 = vmul.f32 %v1750, %v1750
      %v2422 = vmul.f32 %v1752, %v1752
      %v2423 = vmul.f32 %v1754, %v1754
      %v2424 = vmul.f32 %v1758, %v1758
      %v2425 = vmul.f32 %v1760, %v1760
      %v2426 = vmul.f32 %v1762, %v1762
      %v2427 = vmul.f32 %v1764, %v1764
      %v2428 = vmul.f32 %v1768, %v1768
      %v2429 = vmul.f32 %v1770, %v1770
      %v2430 = vmul.f32 %v1772, %v1772
      %v2431 = vmul.f32 %v1774, %v1774
      %v2432 = vmul.f32 %v1778, %v1778
      %v2433 = vmul.f32 %v1780, %v1780
      %v2434 = vmul.f32 %v1782, %v1782
      %v2435 = vmul.f32 %v1784, %v1784
      %v2436 = vmul.f32 %v1788, %v1788
      %v2437 = vmul.f32 %v1790, %v1790
      %v2438 = vmul.f32 %v1792, %v1792
      %v2439 = vmul.f32 %v1794, %v1794
      %v2440 = vmul.f32 %v1798, %v1798
      %v2441 = vmul.f32 %v1800, %v1800
      %v2442 = vmul.f32 %v1802, %v1802
      %v2443 = vmul.f32 %v1804, %v1804
      %v2444 = vmul.f32 %v1808, %v1808
      %v2445 = vmul.f32 %v1810, %v1810
      %v2446 = vmul.f32 %v1812, %v1812
      %v2447 = vmul.f32 %v1814, %v1814
      %v2448 = vmul.f32 %v1818, %v1818
      %v2449 = vmul.f32 %v1820, %v1820
      %v2450 = vmul.f32 %v1822, %v1822
      %v2451 = vmul.f32 %v1824, %v1824
      %v2452 = vmul.f32 %v1828, %v1828
      %v2453 = vmul.f32 %v1830, %v1830
      %v2454 = vmul.f32 %v1832, %v1832
      %v2455 = vmul.f32 %v1834, %v1834
      %v2456 = vmul.f32 %v1838, %v1838
      %v2457 = vmul.f32 %v1840, %v1840
      %v2458 = vmul.f32 %v1842, %v1842
      %v2459 = vmul.f32 %v1844, %v1844
      %v2460 = vmul.f32 %v1848, %v1848
      %v2461 = vmul.f32 %v1850, %v1850
      %v2462 = vmul.f32 %v1852, %v1852
      %v2463 = vmul.f32 %v1854, %v1854
      %v2464 = vmul.f32 %v1858, %v1858
      %v2465 = vmul.f32 %v1860, %v1860
      %v2466 = vmul.f32 %v1862, %v1862
      %v2467 = vmul.f32 %v1864, %v1864
      %v2468 = vmul.f32 %v1868, %v1868
      %v2469 = vmul.f32 %v1870, %v1870
      %v2470 = vmul.f32 %v1872, %v1872
      %v2471 = vmul.f32 %v1874, %v1874
      %v2472 = vmul.f32 %v1878, %v1878
      %v2473 = vmul.f32 %v1880, %v1880
      %v2474 = vmul.f32 %v1882, %v1882
      %v2475 = vmul.f32 %v1884, %v1884
      %v2476 = vmul.f32 %v1888, %v1888
      %v2477 = vmul.f32 %v1890, %v1890
      %v2478 = vmul.f32 %v1892, %v1892
      %v2479 = vmul.f32 %v1894, %v1894
      %v2480 = vmul.f32 %v1898, %v1898
      %v2481 = vmul.f32 %v1900, %v1900
      %v2482 = vmul.f32 %v1902, %v1902
      %v2483 = vmul.f32 %v1904, %v1904
      %v2484 = vmul.f32 %v1908, %v1908
      %v2485 = vmul.f32 %v1910, %v1910
      %v2486 = vmul.f32 %v1912, %v1912
      %v2487 = vmul.f32 %v1914, %v1914
      %v2488 = vmul.f32 %v1918, %v1918
      %v2489 = vmul.f32 %v1920, %v1920
      %v2490 = vmul.f32 %v1922, %v1922
      %v2491 = vmul.f32 %v1924, %v1924
      %v2492 = vmul.f32 %v1928, %v1928
      %v2493 = vmul.f32 %v1930, %v1930
      %v2494 = vmul.f32 %v1932, %v1932
      %v2495 = vmul.f32 %v1934, %v1934
      %v2496 = vmul.f32 %v1938, %v1938
      %v2497 = vmul.f32 %v1940, %v1940
      %v2498 = vmul.f32 %v1942, %v1942
      %v2499 = vmul.f32 %v1944, %v1944
      %v2500 = vmul.f32 %v1948, %v1948
      %v2501 = vmul.f32 %v1950, %v1950
      %v2502 = vmul.f32 %v1952, %v1952
      %v2503 = vmul.f32 %v1954, %v1954
      %v2504 = vmul.f32 %v1958, %v1958
      %v2505 = vmul.f32 %v1960, %v1960
      %v2506 = vmul.f32 %v1962, %v1962
      %v2507 = vmul.f32 %v1964, %v1964
      %v2508 = vmul.f32 %v1968, %v1968
      %v2509 = vmul.f32 %v1970, %v1970
      %v2510 = vmul.f32 %v1972, %v1972
      %v2511 = vmul.f32 %v1974, %v1974
      %v2512 = vmul.f32 %v1978, %v1978
      %v2513 = vmul.f32 %v1980, %v1980
      %v2514 = vmul.f32 %v1982, %v1982
      %v2515 = vmul.f32 %v1984, %v1984
      %v2516 = vmul.f32 %v1988, %v1988
      %v2517 = vmul.f32 %v1990, %v1990
      %v2518 = vmul.f32 %v1992, %v1992
      %v2519 = vmul.f32 %v1994, %v1994
      %v2520 = vmul.f32 %v1998, %v1998
      %v2521 = vmul.f32 %v2000, %v2000
      %v2522 = vmul.f32 %v2002, %v2002
      %v2523 = vmul.f32 %v2004, %v2004
      %v2524 = vmul.f32 %v2008, %v2008
      %v2525 = vmul.f32 %v2010, %v2010
      %v2526 = vmul.f32 %v2012, %v2012
      %v2527 = vmul.f32 %v2014, %v2014
      %v2528 = vmul.f32 %v2018, %v2018
      %v2529 = vmul.f32 %v2020, %v2020
      %v2530 = vmul.f32 %v2022, %v2022
      %v2531 = vmul.f32 %v2024, %v2024
      %v2532 = vmul.f32 %v2028, %v2028
      %v2533 = vmul.f32 %v2030, %v2030
      %v2534 = vmul.f32 %v2032, %v2032
      %v2535 = vmul.f32 %v2034, %v2034
      %v2536 = vmul.f32 %v2038, %v2038
      %v2537 = vmul.f32 %v2040, %v2040
      %v2538 = vmul.f32 %v2042, %v2042
      %v2539 = vmul.f32 %v2044, %v2044
      %v2540 = vmul.f32 %v2048, %v2048
      %v2541 = vmul.f32 %v2050, %v2050
      %v2542 = vmul.f32 %v2052, %v2052
      %v2543 = vmul.f32 %v2054, %v2054
      %v2544 = vmul.f32 %v2058, %v2058
      %v2545 = vmul.f32 %v2060, %v2060
      %v2546 = vmul.f32 %v2062, %v2062
      %v2547 = vmul.f32 %v2064, %v2064
      %v2548 = vmul.f32 %v2068, %v2068
      %v2549 = vmul.f32 %v2070, %v2070
      %v2550 = vmul.f32 %v2072, %v2072
      %v2551 = vmul.f32 %v2074, %v2074
      %v2552 = vmul.f32 %v2078, %v2078
      %v2553 = vmul.f32 %v2080, %v2080
      %v2554 = vmul.f32 %v2082, %v2082
      %v2555 = vmul.f32 %v2084, %v2084
      %v2556 = vmul.f32 %v2088, %v2088
      %v2557 = vmul.f32 %v2090, %v2090
      %v2558 = vmul.f32 %v2092, %v2092
      %v2559 = vmul.f32 %v2094, %v2094
      %v2560 = vmul.f32 %v2098, %v2098
      %v2561 = vmul.f32 %v2100, %v2100
      %v2562 = vmul.f32 %v2102, %v2102
      %v2563 = vmul.f32 %v2104, %v2104
      %v2564 = vmul.f32 %v2108, %v2108
      %v2565 = vmul.f32 %v2110, %v2110
      %v2566 = vmul.f32 %v2112, %v2112
      %v2567 = vmul.f32 %v2114, %v2114
      %v2568 = vmul.f32 %v2118, %v2118
      %v2569 = vmul.f32 %v2120, %v2120
      %v2570 = vmul.f32 %v2122, %v2122
      %v2571 = vmul.f32 %v2124, %v2124
      %v2572 = vmul.f32 %v2128, %v2128
      %v2573 = vmul.f32 %v2130, %v2130
      %v2574 = vmul.f32 %v2132, %v2132
      %v2575 = vmul.f32 %v2134, %v2134
      %v2576 = vmul.f32 %v2138, %v2138
      %v2577 = vmul.f32 %v2140, %v2140
      %v2578 = vmul.f32 %v2142, %v2142
      %v2579 = vmul.f32 %v2144, %v2144
      %v2580 = vmul.f32 %v2148, %v2148
      %v2581 = vmul.f32 %v2150, %v2150
      %v2582 = vmul.f32 %v2152, %v2152
      %v2583 = vmul.f32 %v2154, %v2154
      %v2584 = vmul.f32 %v2158, %v2158
      %v2585 = vmul.f32 %v2160, %v2160
      %v2586 = vmul.f32 %v2162, %v2162
      %v2587 = vmul.f32 %v2164, %v2164
      %v2588 = vmul.f32 %v2168, %v2168
      %v2589 = vmul.f32 %v2170, %v2170
      %v2590 = vmul.f32 %v2172, %v2172
      %v2591 = vmul.f32 %v2174, %v2174
      %v2592 = vadd.f32 %v2176, %v2177
      %v2593 = vadd.f32 %v2178, %v2179
      %v2594 = vadd.f32 %v2180, %v2181
      %v2595 = vadd.f32 %v2182, %v2183
      %v2596 = vadd.f32 %v2184, %v2185
      %v2597 = vadd.f32 %v2186, %v2187
      %v2598 = vadd.f32 %v2188, %v2189
      %v2599 = vadd.f32 %v2190, %v2191
      %v2600 = vadd.f32 %v2192, %v2193
      %v2601 = vadd.f32 %v2194, %v2195
      %v2602 = vadd.f32 %v2196, %v2197
      %v2603 = vadd.f32 %v2198, %v2199
      %v2604 = vadd.f32 %v2200, %v2201
      %v2605 = vadd.f32 %v2202, %v2203
      %v2606 = vadd.f32 %v2204, %v2205
      %v2607 = vadd.f32 %v2206, %v2207
      %v2608 = vadd.f32 %v2208, %v2209
      %v2609 = vadd.f32 %v2210, %v2211
      %v2610 = vadd.f32 %v2212, %v2213
      %v2611 = vadd.f32 %v2214, %v2215
      %v2612 = vadd.f32 %v2216, %v2217
      %v2613 = vadd.f32 %v2218, %v2219
      %v2614 = vadd.f32 %v2220, %v2221
      %v2615 = vadd.f32 %v2222, %v2223
      %v2616 = vadd.f32 %v2224, %v2225
      %v2617 = vadd.f32 %v2226, %v2227
      %v2618 = vadd.f32 %v2228, %v2229
      %v2619 = vadd.f32 %v2230, %v2231
      %v2620 = vadd.f32 %v2232, %v2233
      %v2621 = vadd.f32 %v2234, %v2235
      %v2622 = vadd.f32 %v2236, %v2237
      %v2623 = vadd.f32 %v2238, %v2239
      %v2624 = vadd.f32 %v2240, %v2241
      %v2625 = vadd.f32 %v2242, %v2243
      %v2626 = vadd.f32 %v2244, %v2245
      %v2627 = vadd.f32 %v2246, %v2247
      %v2628 = vadd.f32 %v2248, %v2249
      %v2629 = vadd.f32 %v2250, %v2251
      %v2630 = vadd.f32 %v2252, %v2253
      %v2631 = vadd.f32 %v2254, %v2255
      %v2632 = vadd.f32 %v2256, %v2257
      %v2633 = vadd.f32 %v2258, %v2259
      %v2634 = vadd.f32 %v2260, %v2261
      %v2635 = vadd.f32 %v2262, %v2263
      %v2636 = vadd.f32 %v2264, %v2265
      %v2637 = vadd.f32 %v2266, %v2267
      %v2638 = vadd.f32 %v2268, %v2269
      %v2639 = vadd.f32 %v2270, %v2271
      %v2640 = vadd.f32 %v2272, %v2273
      %v2641 = vadd.f32 %v2274, %v2275
      %v2642 = vadd.f32 %v2276, %v2277
      %v2643 = vadd.f32 %v2278, %v2279
      %v2644 = vadd.f32 %v2280, %v2281
      %v2645 = vadd.f32 %v2282, %v2283
      %v2646 = vadd.f32 %v2284, %v2285
      %v2647 = vadd.f32 %v2286, %v2287
      %v2648 = vadd.f32 %v2288, %v2289
      %v2649 = vadd.f32 %v2290, %v2291
      %v2650 = vadd.f32 %v2292, %v2293
      %v2651 = vadd.f32 %v2294, %v2295
      %v2652 = vadd.f32 %v2296, %v2297
      %v2653 = vadd.f32 %v2298, %v2299
      %v2654 = vadd.f32 %v2300, %v2301
      %v2655 = vadd.f32 %v2302, %v2303
      %v2656 = vadd.f32 %v2304, %v2305
      %v2657 = vadd.f32 %v2306, %v2307
      %v2658 = vadd.f32 %v2308, %v2309
      %v2659 = vadd.f32 %v2310, %v2311
      %v2660 = vadd.f32 %v2312, %v2313
      %v2661 = vadd.f32 %v2314, %v2315
      %v2662 = vadd.f32 %v2316, %v2317
      %v2663 = vadd.f32 %v2318, %v2319
      %v2664 = vadd.f32 %v2320, %v2321
      %v2665 = vadd.f32 %v2322, %v2323
      %v2666 = vadd.f32 %v2324, %v2325
      %v2667 = vadd.f32 %v2326, %v2327
      %v2668 = vadd.f32 %v2328, %v2329
      %v2669 = vadd.f32 %v2330, %v2331
      %v2670 = vadd.f32 %v2332, %v2333
      %v2671 = vadd.f32 %v2334, %v2335
      %v2672 = vadd.f32 %v2336, %v2337
      %v2673 = vadd.f32 %v2338, %v2339
      %v2674 = vadd.f32 %v2340, %v2341
      %v2675 = vadd.f32 %v2342, %v2343
      %v2676 = vadd.f32 %v2344, %v2345
      %v2677 = vadd.f32 %v2346, %v2347
      %v2678 = vadd.f32 %v2348, %v2349
      %v2679 = vadd.f32 %v2350, %v2351
      %v2680 = vadd.f32 %v2352, %v2353
      %v2681 = vadd.f32 %v2354, %v2355
      %v2682 = vadd.f32 %v2356, %v2357
      %v2683 = vadd.f32 %v2358, %v2359
      %v2684 = vadd.f32 %v2360, %v2361
      %v2685 = vadd.f32 %v2362, %v2363
      %v2686 = vadd.f32 %v2364, %v2365
      %v2687 = vadd.f32 %v2366, %v2367
      %v2688 = vadd.f32 %v2368, %v2369
      %v2689 = vadd.f32 %v2370, %v2371
      %v2690 = vadd.f32 %v2372, %v2373
      %v2691 = vadd.f32 %v2374, %v2375
      %v2692 = vadd.f32 %v2376, %v2377
      %v2693 = vadd.f32 %v2378, %v2379
      %v2694 = vadd.f32 %v2380, %v2381
      %v2695 = vadd.f32 %v2382, %v2383
      %v2696 = vadd.f32 %v2384, %v2385
      %v2697 = vadd.f32 %v2386, %v2387
      %v2698 = vadd.f32 %v2388, %v2389
      %v2699 = vadd.f32 %v2390, %v2391
      %v2700 = vadd.f32 %v2392, %v2393
      %v2701 = vadd.f32 %v2394, %v2395
      %v2702 = vadd.f32 %v2396, %v2397
      %v2703 = vadd.f32 %v2398, %v2399
      %v2704 = vadd.f32 %v2400, %v2401
      %v2705 = vadd.f32 %v2402, %v2403
      %v2706 = vadd.f32 %v2404, %v2405
      %v2707 = vadd.f32 %v2406, %v2407
      %v2708 = vadd.f32 %v2408, %v2409
      %v2709 = vadd.f32 %v2410, %v2411
      %v2710 = vadd.f32 %v2412, %v2413
      %v2711 = vadd.f32 %v2414, %v2415
      %v2712 = vadd.f32 %v2416, %v2417
      %v2713 = vadd.f32 %v2418, %v2419
      %v2714 = vadd.f32 %v2420, %v2421
      %v2715 = vadd.f32 %v2422, %v2423
      %v2716 = vadd.f32 %v2424, %v2425
      %v2717 = vadd.f32 %v2426, %v2427
      %v2718 = vadd.f32 %v2428, %v2429
      %v2719 = vadd.f32 %v2430, %v2431
      %v2720 = vadd.f32 %v2432, %v2433
      %v2721 = vadd.f32 %v2434, %v2435
      %v2722 = vadd.f32 %v2436, %v2437
      %v2723 = vadd.f32 %v2438, %v2439
      %v2724 = vadd.f32 %v2440, %v2441
      %v2725 = vadd.f32 %v2442, %v2443
      %v2726 = vadd.f32 %v2444, %v2445
      %v2727 = vadd.f32 %v2446, %v2447
      %v2728 = vadd.f32 %v2448, %v2449
      %v2729 = vadd.f32 %v2450, %v2451
      %v2730 = vadd.f32 %v2452, %v2453
      %v2731 = vadd.f32 %v2454, %v2455
      %v2732 = vadd.f32 %v2456, %v2457
      %v2733 = vadd.f32 %v2458, %v2459
      %v2734 = vadd.f32 %v2460, %v2461
      %v2735 = vadd.f32 %v2462, %v2463
      %v2736 = vadd.f32 %v2464, %v2465
      %v2737 = vadd.f32 %v2466, %v2467
      %v2738 = vadd.f32 %v2468, %v2469
      %v2739 = vadd.f32 %v2470, %v2471
      %v2740 = vadd.f32 %v2472, %v2473
      %v2741 = vadd.f32 %v2474, %v2475
      %v2742 = vadd.f32 %v2476, %v2477
      %v2743 = vadd.f32 %v2478, %v2479
      %v2744 = vadd.f32 %v2480, %v2481
      %v2745 = vadd.f32 %v2482, %v2483
      %v2746 = vadd.f32 %v2484, %v2485
      %v2747 = vadd.f32 %v2486, %v2487
      %v2748 = vadd.f32 %v2488, %v2489
      %v2749 = vadd.f32 %v2490, %v2491
      %v2750 = vadd.f32 %v2492, %v2493
      %v2751 = vadd.f32 %v2494, %v2495
      %v2752 = vadd.f32 %v2496, %v2497
      %v2753 = vadd.f32 %v2498, %v2499
      %v2754 = vadd.f32 %v2500, %v2501
      %v2755 = vadd.f32 %v2502, %v2503
      %v2756 = vadd.f32 %v2504, %v2505
      %v2757 = vadd.f32 %v2506, %v2507
      %v2758 = vadd.f32 %v2508, %v2509
      %v2759 = vadd.f32 %v2510, %v2511
      %v2760 = vadd.f32 %v2512, %v2513
      %v2761 = vadd.f32 %v2514, %v2515
      %v2762 = vadd.f32 %v2516, %v2517
      %v2763 = vadd.f32 %v2518, %v2519
      %v2764 = vadd.f32 %v2520, %v2521
      %v2765 = vadd.f32 %v2522, %v2523
      %v2766 = vadd.f32 %v2524, %v2525
      %v2767 = vadd.f32 %v2526, %v2527
      %v2768 = vadd.f32 %v2528, %v2529
      %v2769 = vadd.f32 %v2530, %v2531
      %v2770 = vadd.f32 %v2532, %v2533
      %v2771 = vadd.f32 %v2534, %v2535
      %v2772 = vadd.f32 %v2536, %v2537
      %v2773 = vadd.f32 %v2538, %v2539
      %v2774 = vadd.f32 %v2540, %v2541
      %v2775 = vadd.f32 %v2542, %v2543
      %v2776 = vadd.f32 %v2544, %v2545
      %v2777 = vadd.f32 %v2546, %v2547
      %v2778 = vadd.f32 %v2548, %v2549
      %v2779 = vadd.f32 %v2550, %v2551
      %v2780 = vadd.f32 %v2552, %v2553
      %v2781 = vadd.f32 %v2554, %v2555
      %v2782 = vadd.f32 %v2556, %v2557
      %v2783 = vadd.f32 %v2558, %v2559
      %v2784 = vadd.f32 %v2560, %v2561
      %v2785 = vadd.f32 %v2562, %v2563
      %v2786 = vadd.f32 %v2564, %v2565
      %v2787 = vadd.f32 %v2566, %v2567
      %v2788 = vadd.f32 %v2568, %v2569
      %v2789 = vadd.f32 %v2570, %v2571
      %v2790 = vadd.f32 %v2572, %v2573
      %v2791 = vadd.f32 %v2574, %v2575
      %v2792 = vadd.f32 %v2576, %v2577
      %v2793 = vadd.f32 %v2578, %v2579
      %v2794 = vadd.f32 %v2580, %v2581
      %v2795 = vadd.f32 %v2582, %v2583
      %v2796 = vadd.f32 %v2584, %v2585
      %v2797 = vadd.f32 %v2586, %v2587
      %v2798 = vadd.f32 %v2588, %v2589
      %v2799 = vadd.f32 %v2590, %v2591
      %v2800 = vrsqrt.pop %v2592
      %v2801 = vmul.f32 %v2592, %v2800
      %vm2802 = vcmp.eq.f32.partialorder %v2592, inf
      %v2803 = vsel %vm2802, %v2592, %v2801
      %vm2804 = vcmp.eq.f32.partialorder %v2592, 0.0
      %v2805 = vand.u32 %v2592, 2147483648
      %v2806 = vsel %vm2804, %v2805, %v2803
      %v2807 = vrsqrt.pop %v2593
      %v2808 = vmul.f32 %v2593, %v2807
      %vm2809 = vcmp.eq.f32.partialorder %v2593, inf
      %v2810 = vsel %vm2809, %v2593, %v2808
      %vm2811 = vcmp.eq.f32.partialorder %v2593, 0.0
      %v2812 = vand.u32 %v2593, 2147483648
      %v2813 = vsel %vm2811, %v2812, %v2810
      %v2814 = vrsqrt.pop %v2594
      %v2815 = vmul.f32 %v2594, %v2814
      %vm2816 = vcmp.eq.f32.partialorder %v2594, inf
      %v2817 = vsel %vm2816, %v2594, %v2815
      %vm2818 = vcmp.eq.f32.partialorder %v2594, 0.0
      %v2819 = vand.u32 %v2594, 2147483648
      %v2820 = vsel %vm2818, %v2819, %v2817
      %v2821 = vrsqrt.pop %v2595
      %v2822 = vmul.f32 %v2595, %v2821
      %vm2823 = vcmp.eq.f32.partialorder %v2595, inf
      %v2824 = vsel %vm2823, %v2595, %v2822
      %vm2825 = vcmp.eq.f32.partialorder %v2595, 0.0
      %v2826 = vand.u32 %v2595, 2147483648
      %v2827 = vsel %vm2825, %v2826, %v2824
      %v2828 = vrsqrt.pop %v2596
      %v2829 = vmul.f32 %v2596, %v2828
      %vm2830 = vcmp.eq.f32.partialorder %v2596, inf
      %v2831 = vsel %vm2830, %v2596, %v2829
      %vm2832 = vcmp.eq.f32.partialorder %v2596, 0.0
      %v2833 = vand.u32 %v2596, 2147483648
      %v2834 = vsel %vm2832, %v2833, %v2831
      %v2835 = vrsqrt.pop %v2597
      %v2836 = vmul.f32 %v2597, %v2835
      %vm2837 = vcmp.eq.f32.partialorder %v2597, inf
      %v2838 = vsel %vm2837, %v2597, %v2836
      %vm2839 = vcmp.eq.f32.partialorder %v2597, 0.0
      %v2840 = vand.u32 %v2597, 2147483648
      %v2841 = vsel %vm2839, %v2840, %v2838
      %v2842 = vrsqrt.pop %v2598
      %v2843 = vmul.f32 %v2598, %v2842
      %vm2844 = vcmp.eq.f32.partialorder %v2598, inf
      %v2845 = vsel %vm2844, %v2598, %v2843
      %vm2846 = vcmp.eq.f32.partialorder %v2598, 0.0
      %v2847 = vand.u32 %v2598, 2147483648
      %v2848 = vsel %vm2846, %v2847, %v2845
      %v2849 = vrsqrt.pop %v2599
      %v2850 = vmul.f32 %v2599, %v2849
      %vm2851 = vcmp.eq.f32.partialorder %v2599, inf
      %v2852 = vsel %vm2851, %v2599, %v2850
      %vm2853 = vcmp.eq.f32.partialorder %v2599, 0.0
      %v2854 = vand.u32 %v2599, 2147483648
      %v2855 = vsel %vm2853, %v2854, %v2852
      %v2856 = vrsqrt.pop %v2600
      %v2857 = vmul.f32 %v2600, %v2856
      %vm2858 = vcmp.eq.f32.partialorder %v2600, inf
      %v2859 = vsel %vm2858, %v2600, %v2857
      %vm2860 = vcmp.eq.f32.partialorder %v2600, 0.0
      %v2861 = vand.u32 %v2600, 2147483648
      %v2862 = vsel %vm2860, %v2861, %v2859
      %v2863 = vrsqrt.pop %v2601
      %v2864 = vmul.f32 %v2601, %v2863
      %vm2865 = vcmp.eq.f32.partialorder %v2601, inf
      %v2866 = vsel %vm2865, %v2601, %v2864
      %vm2867 = vcmp.eq.f32.partialorder %v2601, 0.0
      %v2868 = vand.u32 %v2601, 2147483648
      %v2869 = vsel %vm2867, %v2868, %v2866
      %v2870 = vrsqrt.pop %v2602
      %v2871 = vmul.f32 %v2602, %v2870
      %vm2872 = vcmp.eq.f32.partialorder %v2602, inf
      %v2873 = vsel %vm2872, %v2602, %v2871
      %vm2874 = vcmp.eq.f32.partialorder %v2602, 0.0
      %v2875 = vand.u32 %v2602, 2147483648
      %v2876 = vsel %vm2874, %v2875, %v2873
      %v2877 = vrsqrt.pop %v2603
      %v2878 = vmul.f32 %v2603, %v2877
      %vm2879 = vcmp.eq.f32.partialorder %v2603, inf
      %v2880 = vsel %vm2879, %v2603, %v2878
      %vm2881 = vcmp.eq.f32.partialorder %v2603, 0.0
      %v2882 = vand.u32 %v2603, 2147483648
      %v2883 = vsel %vm2881, %v2882, %v2880
      %v2884 = vrsqrt.pop %v2604
      %v2885 = vmul.f32 %v2604, %v2884
      %vm2886 = vcmp.eq.f32.partialorder %v2604, inf
      %v2887 = vsel %vm2886, %v2604, %v2885
      %vm2888 = vcmp.eq.f32.partialorder %v2604, 0.0
      %v2889 = vand.u32 %v2604, 2147483648
      %v2890 = vsel %vm2888, %v2889, %v2887
      %v2891 = vrsqrt.pop %v2605
      %v2892 = vmul.f32 %v2605, %v2891
      %vm2893 = vcmp.eq.f32.partialorder %v2605, inf
      %v2894 = vsel %vm2893, %v2605, %v2892
      %vm2895 = vcmp.eq.f32.partialorder %v2605, 0.0
      %v2896 = vand.u32 %v2605, 2147483648
      %v2897 = vsel %vm2895, %v2896, %v2894
      %v2898 = vrsqrt.pop %v2606
      %v2899 = vmul.f32 %v2606, %v2898
      %vm2900 = vcmp.eq.f32.partialorder %v2606, inf
      %v2901 = vsel %vm2900, %v2606, %v2899
      %vm2902 = vcmp.eq.f32.partialorder %v2606, 0.0
      %v2903 = vand.u32 %v2606, 2147483648
      %v2904 = vsel %vm2902, %v2903, %v2901
      %v2905 = vrsqrt.pop %v2607
      %v2906 = vmul.f32 %v2607, %v2905
      %vm2907 = vcmp.eq.f32.partialorder %v2607, inf
      %v2908 = vsel %vm2907, %v2607, %v2906
      %vm2909 = vcmp.eq.f32.partialorder %v2607, 0.0
      %v2910 = vand.u32 %v2607, 2147483648
      %v2911 = vsel %vm2909, %v2910, %v2908
      %v2912 = vrsqrt.pop %v2608
      %v2913 = vmul.f32 %v2608, %v2912
      %vm2914 = vcmp.eq.f32.partialorder %v2608, inf
      %v2915 = vsel %vm2914, %v2608, %v2913
      %vm2916 = vcmp.eq.f32.partialorder %v2608, 0.0
      %v2917 = vand.u32 %v2608, 2147483648
      %v2918 = vsel %vm2916, %v2917, %v2915
      %v2919 = vrsqrt.pop %v2609
      %v2920 = vmul.f32 %v2609, %v2919
      %vm2921 = vcmp.eq.f32.partialorder %v2609, inf
      %v2922 = vsel %vm2921, %v2609, %v2920
      %vm2923 = vcmp.eq.f32.partialorder %v2609, 0.0
      %v2924 = vand.u32 %v2609, 2147483648
      %v2925 = vsel %vm2923, %v2924, %v2922
      %v2926 = vrsqrt.pop %v2610
      %v2927 = vmul.f32 %v2610, %v2926
      %vm2928 = vcmp.eq.f32.partialorder %v2610, inf
      %v2929 = vsel %vm2928, %v2610, %v2927
      %vm2930 = vcmp.eq.f32.partialorder %v2610, 0.0
      %v2931 = vand.u32 %v2610, 2147483648
      %v2932 = vsel %vm2930, %v2931, %v2929
      %v2933 = vrsqrt.pop %v2611
      %v2934 = vmul.f32 %v2611, %v2933
      %vm2935 = vcmp.eq.f32.partialorder %v2611, inf
      %v2936 = vsel %vm2935, %v2611, %v2934
      %vm2937 = vcmp.eq.f32.partialorder %v2611, 0.0
      %v2938 = vand.u32 %v2611, 2147483648
      %v2939 = vsel %vm2937, %v2938, %v2936
      %v2940 = vrsqrt.pop %v2612
      %v2941 = vmul.f32 %v2612, %v2940
      %vm2942 = vcmp.eq.f32.partialorder %v2612, inf
      %v2943 = vsel %vm2942, %v2612, %v2941
      %vm2944 = vcmp.eq.f32.partialorder %v2612, 0.0
      %v2945 = vand.u32 %v2612, 2147483648
      %v2946 = vsel %vm2944, %v2945, %v2943
      %v2947 = vrsqrt.pop %v2613
      %v2948 = vmul.f32 %v2613, %v2947
      %vm2949 = vcmp.eq.f32.partialorder %v2613, inf
      %v2950 = vsel %vm2949, %v2613, %v2948
      %vm2951 = vcmp.eq.f32.partialorder %v2613, 0.0
      %v2952 = vand.u32 %v2613, 2147483648
      %v2953 = vsel %vm2951, %v2952, %v2950
      %v2954 = vrsqrt.pop %v2614
      %v2955 = vmul.f32 %v2614, %v2954
      %vm2956 = vcmp.eq.f32.partialorder %v2614, inf
      %v2957 = vsel %vm2956, %v2614, %v2955
      %vm2958 = vcmp.eq.f32.partialorder %v2614, 0.0
      %v2959 = vand.u32 %v2614, 2147483648
      %v2960 = vsel %vm2958, %v2959, %v2957
      %v2961 = vrsqrt.pop %v2615
      %v2962 = vmul.f32 %v2615, %v2961
      %vm2963 = vcmp.eq.f32.partialorder %v2615, inf
      %v2964 = vsel %vm2963, %v2615, %v2962
      %vm2965 = vcmp.eq.f32.partialorder %v2615, 0.0
      %v2966 = vand.u32 %v2615, 2147483648
      %v2967 = vsel %vm2965, %v2966, %v2964
      %v2968 = vrsqrt.pop %v2616
      %v2969 = vmul.f32 %v2616, %v2968
      %vm2970 = vcmp.eq.f32.partialorder %v2616, inf
      %v2971 = vsel %vm2970, %v2616, %v2969
      %vm2972 = vcmp.eq.f32.partialorder %v2616, 0.0
      %v2973 = vand.u32 %v2616, 2147483648
      %v2974 = vsel %vm2972, %v2973, %v2971
      %v2975 = vrsqrt.pop %v2617
      %v2976 = vmul.f32 %v2617, %v2975
      %vm2977 = vcmp.eq.f32.partialorder %v2617, inf
      %v2978 = vsel %vm2977, %v2617, %v2976
      %vm2979 = vcmp.eq.f32.partialorder %v2617, 0.0
      %v2980 = vand.u32 %v2617, 2147483648
      %v2981 = vsel %vm2979, %v2980, %v2978
      %v2982 = vrsqrt.pop %v2618
      %v2983 = vmul.f32 %v2618, %v2982
      %vm2984 = vcmp.eq.f32.partialorder %v2618, inf
      %v2985 = vsel %vm2984, %v2618, %v2983
      %vm2986 = vcmp.eq.f32.partialorder %v2618, 0.0
      %v2987 = vand.u32 %v2618, 2147483648
      %v2988 = vsel %vm2986, %v2987, %v2985
      %v2989 = vrsqrt.pop %v2619
      %v2990 = vmul.f32 %v2619, %v2989
      %vm2991 = vcmp.eq.f32.partialorder %v2619, inf
      %v2992 = vsel %vm2991, %v2619, %v2990
      %vm2993 = vcmp.eq.f32.partialorder %v2619, 0.0
      %v2994 = vand.u32 %v2619, 2147483648
      %v2995 = vsel %vm2993, %v2994, %v2992
      %v2996 = vrsqrt.pop %v2620
      %v2997 = vmul.f32 %v2620, %v2996
      %vm2998 = vcmp.eq.f32.partialorder %v2620, inf
      %v2999 = vsel %vm2998, %v2620, %v2997
      %vm3000 = vcmp.eq.f32.partialorder %v2620, 0.0
      %v3001 = vand.u32 %v2620, 2147483648
      %v3002 = vsel %vm3000, %v3001, %v2999
      %v3003 = vrsqrt.pop %v2621
      %v3004 = vmul.f32 %v2621, %v3003
      %vm3005 = vcmp.eq.f32.partialorder %v2621, inf
      %v3006 = vsel %vm3005, %v2621, %v3004
      %vm3007 = vcmp.eq.f32.partialorder %v2621, 0.0
      %v3008 = vand.u32 %v2621, 2147483648
      %v3009 = vsel %vm3007, %v3008, %v3006
      %v3010 = vrsqrt.pop %v2622
      %v3011 = vmul.f32 %v2622, %v3010
      %vm3012 = vcmp.eq.f32.partialorder %v2622, inf
      %v3013 = vsel %vm3012, %v2622, %v3011
      %vm3014 = vcmp.eq.f32.partialorder %v2622, 0.0
      %v3015 = vand.u32 %v2622, 2147483648
      %v3016 = vsel %vm3014, %v3015, %v3013
      %v3017 = vrsqrt.pop %v2623
      %v3018 = vmul.f32 %v2623, %v3017
      %vm3019 = vcmp.eq.f32.partialorder %v2623, inf
      %v3020 = vsel %vm3019, %v2623, %v3018
      %vm3021 = vcmp.eq.f32.partialorder %v2623, 0.0
      %v3022 = vand.u32 %v2623, 2147483648
      %v3023 = vsel %vm3021, %v3022, %v3020
      %v3024 = vrsqrt.pop %v2624
      %v3025 = vmul.f32 %v2624, %v3024
      %vm3026 = vcmp.eq.f32.partialorder %v2624, inf
      %v3027 = vsel %vm3026, %v2624, %v3025
      %vm3028 = vcmp.eq.f32.partialorder %v2624, 0.0
      %v3029 = vand.u32 %v2624, 2147483648
      %v3030 = vsel %vm3028, %v3029, %v3027
      %v3031 = vrsqrt.pop %v2625
      %v3032 = vmul.f32 %v2625, %v3031
      %vm3033 = vcmp.eq.f32.partialorder %v2625, inf
      %v3034 = vsel %vm3033, %v2625, %v3032
      %vm3035 = vcmp.eq.f32.partialorder %v2625, 0.0
      %v3036 = vand.u32 %v2625, 2147483648
      %v3037 = vsel %vm3035, %v3036, %v3034
      %v3038 = vrsqrt.pop %v2626
      %v3039 = vmul.f32 %v2626, %v3038
      %vm3040 = vcmp.eq.f32.partialorder %v2626, inf
      %v3041 = vsel %vm3040, %v2626, %v3039
      %vm3042 = vcmp.eq.f32.partialorder %v2626, 0.0
      %v3043 = vand.u32 %v2626, 2147483648
      %v3044 = vsel %vm3042, %v3043, %v3041
      %v3045 = vrsqrt.pop %v2627
      %v3046 = vmul.f32 %v2627, %v3045
      %vm3047 = vcmp.eq.f32.partialorder %v2627, inf
      %v3048 = vsel %vm3047, %v2627, %v3046
      %vm3049 = vcmp.eq.f32.partialorder %v2627, 0.0
      %v3050 = vand.u32 %v2627, 2147483648
      %v3051 = vsel %vm3049, %v3050, %v3048
      %v3052 = vrsqrt.pop %v2628
      %v3053 = vmul.f32 %v2628, %v3052
      %vm3054 = vcmp.eq.f32.partialorder %v2628, inf
      %v3055 = vsel %vm3054, %v2628, %v3053
      %vm3056 = vcmp.eq.f32.partialorder %v2628, 0.0
      %v3057 = vand.u32 %v2628, 2147483648
      %v3058 = vsel %vm3056, %v3057, %v3055
      %v3059 = vrsqrt.pop %v2629
      %v3060 = vmul.f32 %v2629, %v3059
      %vm3061 = vcmp.eq.f32.partialorder %v2629, inf
      %v3062 = vsel %vm3061, %v2629, %v3060
      %vm3063 = vcmp.eq.f32.partialorder %v2629, 0.0
      %v3064 = vand.u32 %v2629, 2147483648
      %v3065 = vsel %vm3063, %v3064, %v3062
      %v3066 = vrsqrt.pop %v2630
      %v3067 = vmul.f32 %v2630, %v3066
      %vm3068 = vcmp.eq.f32.partialorder %v2630, inf
      %v3069 = vsel %vm3068, %v2630, %v3067
      %vm3070 = vcmp.eq.f32.partialorder %v2630, 0.0
      %v3071 = vand.u32 %v2630, 2147483648
      %v3072 = vsel %vm3070, %v3071, %v3069
      %v3073 = vrsqrt.pop %v2631
      %v3074 = vmul.f32 %v2631, %v3073
      %vm3075 = vcmp.eq.f32.partialorder %v2631, inf
      %v3076 = vsel %vm3075, %v2631, %v3074
      %vm3077 = vcmp.eq.f32.partialorder %v2631, 0.0
      %v3078 = vand.u32 %v2631, 2147483648
      %v3079 = vsel %vm3077, %v3078, %v3076
      %v3080 = vrsqrt.pop %v2632
      %v3081 = vmul.f32 %v2632, %v3080
      %vm3082 = vcmp.eq.f32.partialorder %v2632, inf
      %v3083 = vsel %vm3082, %v2632, %v3081
      %vm3084 = vcmp.eq.f32.partialorder %v2632, 0.0
      %v3085 = vand.u32 %v2632, 2147483648
      %v3086 = vsel %vm3084, %v3085, %v3083
      %v3087 = vrsqrt.pop %v2633
      %v3088 = vmul.f32 %v2633, %v3087
      %vm3089 = vcmp.eq.f32.partialorder %v2633, inf
      %v3090 = vsel %vm3089, %v2633, %v3088
      %vm3091 = vcmp.eq.f32.partialorder %v2633, 0.0
      %v3092 = vand.u32 %v2633, 2147483648
      %v3093 = vsel %vm3091, %v3092, %v3090
      %v3094 = vrsqrt.pop %v2634
      %v3095 = vmul.f32 %v2634, %v3094
      %vm3096 = vcmp.eq.f32.partialorder %v2634, inf
      %v3097 = vsel %vm3096, %v2634, %v3095
      %vm3098 = vcmp.eq.f32.partialorder %v2634, 0.0
      %v3099 = vand.u32 %v2634, 2147483648
      %v3100 = vsel %vm3098, %v3099, %v3097
      %v3101 = vrsqrt.pop %v2635
      %v3102 = vmul.f32 %v2635, %v3101
      %vm3103 = vcmp.eq.f32.partialorder %v2635, inf
      %v3104 = vsel %vm3103, %v2635, %v3102
      %vm3105 = vcmp.eq.f32.partialorder %v2635, 0.0
      %v3106 = vand.u32 %v2635, 2147483648
      %v3107 = vsel %vm3105, %v3106, %v3104
      %v3108 = vrsqrt.pop %v2636
      %v3109 = vmul.f32 %v2636, %v3108
      %vm3110 = vcmp.eq.f32.partialorder %v2636, inf
      %v3111 = vsel %vm3110, %v2636, %v3109
      %vm3112 = vcmp.eq.f32.partialorder %v2636, 0.0
      %v3113 = vand.u32 %v2636, 2147483648
      %v3114 = vsel %vm3112, %v3113, %v3111
      %v3115 = vrsqrt.pop %v2637
      %v3116 = vmul.f32 %v2637, %v3115
      %vm3117 = vcmp.eq.f32.partialorder %v2637, inf
      %v3118 = vsel %vm3117, %v2637, %v3116
      %vm3119 = vcmp.eq.f32.partialorder %v2637, 0.0
      %v3120 = vand.u32 %v2637, 2147483648
      %v3121 = vsel %vm3119, %v3120, %v3118
      %v3122 = vrsqrt.pop %v2638
      %v3123 = vmul.f32 %v2638, %v3122
      %vm3124 = vcmp.eq.f32.partialorder %v2638, inf
      %v3125 = vsel %vm3124, %v2638, %v3123
      %vm3126 = vcmp.eq.f32.partialorder %v2638, 0.0
      %v3127 = vand.u32 %v2638, 2147483648
      %v3128 = vsel %vm3126, %v3127, %v3125
      %v3129 = vrsqrt.pop %v2639
      %v3130 = vmul.f32 %v2639, %v3129
      %vm3131 = vcmp.eq.f32.partialorder %v2639, inf
      %v3132 = vsel %vm3131, %v2639, %v3130
      %vm3133 = vcmp.eq.f32.partialorder %v2639, 0.0
      %v3134 = vand.u32 %v2639, 2147483648
      %v3135 = vsel %vm3133, %v3134, %v3132
      %v3136 = vrsqrt.pop %v2640
      %v3137 = vmul.f32 %v2640, %v3136
      %vm3138 = vcmp.eq.f32.partialorder %v2640, inf
      %v3139 = vsel %vm3138, %v2640, %v3137
      %vm3140 = vcmp.eq.f32.partialorder %v2640, 0.0
      %v3141 = vand.u32 %v2640, 2147483648
      %v3142 = vsel %vm3140, %v3141, %v3139
      %v3143 = vrsqrt.pop %v2641
      %v3144 = vmul.f32 %v2641, %v3143
      %vm3145 = vcmp.eq.f32.partialorder %v2641, inf
      %v3146 = vsel %vm3145, %v2641, %v3144
      %vm3147 = vcmp.eq.f32.partialorder %v2641, 0.0
      %v3148 = vand.u32 %v2641, 2147483648
      %v3149 = vsel %vm3147, %v3148, %v3146
      %v3150 = vrsqrt.pop %v2642
      %v3151 = vmul.f32 %v2642, %v3150
      %vm3152 = vcmp.eq.f32.partialorder %v2642, inf
      %v3153 = vsel %vm3152, %v2642, %v3151
      %vm3154 = vcmp.eq.f32.partialorder %v2642, 0.0
      %v3155 = vand.u32 %v2642, 2147483648
      %v3156 = vsel %vm3154, %v3155, %v3153
      %v3157 = vrsqrt.pop %v2643
      %v3158 = vmul.f32 %v2643, %v3157
      %vm3159 = vcmp.eq.f32.partialorder %v2643, inf
      %v3160 = vsel %vm3159, %v2643, %v3158
      %vm3161 = vcmp.eq.f32.partialorder %v2643, 0.0
      %v3162 = vand.u32 %v2643, 2147483648
      %v3163 = vsel %vm3161, %v3162, %v3160
      %v3164 = vrsqrt.pop %v2644
      %v3165 = vmul.f32 %v2644, %v3164
      %vm3166 = vcmp.eq.f32.partialorder %v2644, inf
      %v3167 = vsel %vm3166, %v2644, %v3165
      %vm3168 = vcmp.eq.f32.partialorder %v2644, 0.0
      %v3169 = vand.u32 %v2644, 2147483648
      %v3170 = vsel %vm3168, %v3169, %v3167
      %v3171 = vrsqrt.pop %v2645
      %v3172 = vmul.f32 %v2645, %v3171
      %vm3173 = vcmp.eq.f32.partialorder %v2645, inf
      %v3174 = vsel %vm3173, %v2645, %v3172
      %vm3175 = vcmp.eq.f32.partialorder %v2645, 0.0
      %v3176 = vand.u32 %v2645, 2147483648
      %v3177 = vsel %vm3175, %v3176, %v3174
      %v3178 = vrsqrt.pop %v2646
      %v3179 = vmul.f32 %v2646, %v3178
      %vm3180 = vcmp.eq.f32.partialorder %v2646, inf
      %v3181 = vsel %vm3180, %v2646, %v3179
      %vm3182 = vcmp.eq.f32.partialorder %v2646, 0.0
      %v3183 = vand.u32 %v2646, 2147483648
      %v3184 = vsel %vm3182, %v3183, %v3181
      %v3185 = vrsqrt.pop %v2647
      %v3186 = vmul.f32 %v2647, %v3185
      %vm3187 = vcmp.eq.f32.partialorder %v2647, inf
      %v3188 = vsel %vm3187, %v2647, %v3186
      %vm3189 = vcmp.eq.f32.partialorder %v2647, 0.0
      %v3190 = vand.u32 %v2647, 2147483648
      %v3191 = vsel %vm3189, %v3190, %v3188
      %v3192 = vrsqrt.pop %v2648
      %v3193 = vmul.f32 %v2648, %v3192
      %vm3194 = vcmp.eq.f32.partialorder %v2648, inf
      %v3195 = vsel %vm3194, %v2648, %v3193
      %vm3196 = vcmp.eq.f32.partialorder %v2648, 0.0
      %v3197 = vand.u32 %v2648, 2147483648
      %v3198 = vsel %vm3196, %v3197, %v3195
      %v3199 = vrsqrt.pop %v2649
      %v3200 = vmul.f32 %v2649, %v3199
      %vm3201 = vcmp.eq.f32.partialorder %v2649, inf
      %v3202 = vsel %vm3201, %v2649, %v3200
      %vm3203 = vcmp.eq.f32.partialorder %v2649, 0.0
      %v3204 = vand.u32 %v2649, 2147483648
      %v3205 = vsel %vm3203, %v3204, %v3202
      %v3206 = vrsqrt.pop %v2650
      %v3207 = vmul.f32 %v2650, %v3206
      %vm3208 = vcmp.eq.f32.partialorder %v2650, inf
      %v3209 = vsel %vm3208, %v2650, %v3207
      %vm3210 = vcmp.eq.f32.partialorder %v2650, 0.0
      %v3211 = vand.u32 %v2650, 2147483648
      %v3212 = vsel %vm3210, %v3211, %v3209
      %v3213 = vrsqrt.pop %v2651
      %v3214 = vmul.f32 %v2651, %v3213
      %vm3215 = vcmp.eq.f32.partialorder %v2651, inf
      %v3216 = vsel %vm3215, %v2651, %v3214
      %vm3217 = vcmp.eq.f32.partialorder %v2651, 0.0
      %v3218 = vand.u32 %v2651, 2147483648
      %v3219 = vsel %vm3217, %v3218, %v3216
      %v3220 = vrsqrt.pop %v2652
      %v3221 = vmul.f32 %v2652, %v3220
      %vm3222 = vcmp.eq.f32.partialorder %v2652, inf
      %v3223 = vsel %vm3222, %v2652, %v3221
      %vm3224 = vcmp.eq.f32.partialorder %v2652, 0.0
      %v3225 = vand.u32 %v2652, 2147483648
      %v3226 = vsel %vm3224, %v3225, %v3223
      %v3227 = vrsqrt.pop %v2653
      %v3228 = vmul.f32 %v2653, %v3227
      %vm3229 = vcmp.eq.f32.partialorder %v2653, inf
      %v3230 = vsel %vm3229, %v2653, %v3228
      %vm3231 = vcmp.eq.f32.partialorder %v2653, 0.0
      %v3232 = vand.u32 %v2653, 2147483648
      %v3233 = vsel %vm3231, %v3232, %v3230
      %v3234 = vrsqrt.pop %v2654
      %v3235 = vmul.f32 %v2654, %v3234
      %vm3236 = vcmp.eq.f32.partialorder %v2654, inf
      %v3237 = vsel %vm3236, %v2654, %v3235
      %vm3238 = vcmp.eq.f32.partialorder %v2654, 0.0
      %v3239 = vand.u32 %v2654, 2147483648
      %v3240 = vsel %vm3238, %v3239, %v3237
      %v3241 = vrsqrt.pop %v2655
      %v3242 = vmul.f32 %v2655, %v3241
      %vm3243 = vcmp.eq.f32.partialorder %v2655, inf
      %v3244 = vsel %vm3243, %v2655, %v3242
      %vm3245 = vcmp.eq.f32.partialorder %v2655, 0.0
      %v3246 = vand.u32 %v2655, 2147483648
      %v3247 = vsel %vm3245, %v3246, %v3244
      %v3248 = vrsqrt.pop %v2656
      %v3249 = vmul.f32 %v2656, %v3248
      %vm3250 = vcmp.eq.f32.partialorder %v2656, inf
      %v3251 = vsel %vm3250, %v2656, %v3249
      %vm3252 = vcmp.eq.f32.partialorder %v2656, 0.0
      %v3253 = vand.u32 %v2656, 2147483648
      %v3254 = vsel %vm3252, %v3253, %v3251
      %v3255 = vrsqrt.pop %v2657
      %v3256 = vmul.f32 %v2657, %v3255
      %vm3257 = vcmp.eq.f32.partialorder %v2657, inf
      %v3258 = vsel %vm3257, %v2657, %v3256
      %vm3259 = vcmp.eq.f32.partialorder %v2657, 0.0
      %v3260 = vand.u32 %v2657, 2147483648
      %v3261 = vsel %vm3259, %v3260, %v3258
      %v3262 = vrsqrt.pop %v2658
      %v3263 = vmul.f32 %v2658, %v3262
      %vm3264 = vcmp.eq.f32.partialorder %v2658, inf
      %v3265 = vsel %vm3264, %v2658, %v3263
      %vm3266 = vcmp.eq.f32.partialorder %v2658, 0.0
      %v3267 = vand.u32 %v2658, 2147483648
      %v3268 = vsel %vm3266, %v3267, %v3265
      %v3269 = vrsqrt.pop %v2659
      %v3270 = vmul.f32 %v2659, %v3269
      %vm3271 = vcmp.eq.f32.partialorder %v2659, inf
      %v3272 = vsel %vm3271, %v2659, %v3270
      %vm3273 = vcmp.eq.f32.partialorder %v2659, 0.0
      %v3274 = vand.u32 %v2659, 2147483648
      %v3275 = vsel %vm3273, %v3274, %v3272
      %v3276 = vrsqrt.pop %v2660
      %v3277 = vmul.f32 %v2660, %v3276
      %vm3278 = vcmp.eq.f32.partialorder %v2660, inf
      %v3279 = vsel %vm3278, %v2660, %v3277
      %vm3280 = vcmp.eq.f32.partialorder %v2660, 0.0
      %v3281 = vand.u32 %v2660, 2147483648
      %v3282 = vsel %vm3280, %v3281, %v3279
      %v3283 = vrsqrt.pop %v2661
      %v3284 = vmul.f32 %v2661, %v3283
      %vm3285 = vcmp.eq.f32.partialorder %v2661, inf
      %v3286 = vsel %vm3285, %v2661, %v3284
      %vm3287 = vcmp.eq.f32.partialorder %v2661, 0.0
      %v3288 = vand.u32 %v2661, 2147483648
      %v3289 = vsel %vm3287, %v3288, %v3286
      %v3290 = vrsqrt.pop %v2662
      %v3291 = vmul.f32 %v2662, %v3290
      %vm3292 = vcmp.eq.f32.partialorder %v2662, inf
      %v3293 = vsel %vm3292, %v2662, %v3291
      %vm3294 = vcmp.eq.f32.partialorder %v2662, 0.0
      %v3295 = vand.u32 %v2662, 2147483648
      %v3296 = vsel %vm3294, %v3295, %v3293
      %v3297 = vrsqrt.pop %v2663
      %v3298 = vmul.f32 %v2663, %v3297
      %vm3299 = vcmp.eq.f32.partialorder %v2663, inf
      %v3300 = vsel %vm3299, %v2663, %v3298
      %vm3301 = vcmp.eq.f32.partialorder %v2663, 0.0
      %v3302 = vand.u32 %v2663, 2147483648
      %v3303 = vsel %vm3301, %v3302, %v3300
      %v3304 = vrsqrt.pop %v2664
      %v3305 = vmul.f32 %v2664, %v3304
      %vm3306 = vcmp.eq.f32.partialorder %v2664, inf
      %v3307 = vsel %vm3306, %v2664, %v3305
      %vm3308 = vcmp.eq.f32.partialorder %v2664, 0.0
      %v3309 = vand.u32 %v2664, 2147483648
      %v3310 = vsel %vm3308, %v3309, %v3307
      %v3311 = vrsqrt.pop %v2665
      %v3312 = vmul.f32 %v2665, %v3311
      %vm3313 = vcmp.eq.f32.partialorder %v2665, inf
      %v3314 = vsel %vm3313, %v2665, %v3312
      %vm3315 = vcmp.eq.f32.partialorder %v2665, 0.0
      %v3316 = vand.u32 %v2665, 2147483648
      %v3317 = vsel %vm3315, %v3316, %v3314
      %v3318 = vrsqrt.pop %v2666
      %v3319 = vmul.f32 %v2666, %v3318
      %vm3320 = vcmp.eq.f32.partialorder %v2666, inf
      %v3321 = vsel %vm3320, %v2666, %v3319
      %vm3322 = vcmp.eq.f32.partialorder %v2666, 0.0
      %v3323 = vand.u32 %v2666, 2147483648
      %v3324 = vsel %vm3322, %v3323, %v3321
      %v3325 = vrsqrt.pop %v2667
      %v3326 = vmul.f32 %v2667, %v3325
      %vm3327 = vcmp.eq.f32.partialorder %v2667, inf
      %v3328 = vsel %vm3327, %v2667, %v3326
      %vm3329 = vcmp.eq.f32.partialorder %v2667, 0.0
      %v3330 = vand.u32 %v2667, 2147483648
      %v3331 = vsel %vm3329, %v3330, %v3328
      %v3332 = vrsqrt.pop %v2668
      %v3333 = vmul.f32 %v2668, %v3332
      %vm3334 = vcmp.eq.f32.partialorder %v2668, inf
      %v3335 = vsel %vm3334, %v2668, %v3333
      %vm3336 = vcmp.eq.f32.partialorder %v2668, 0.0
      %v3337 = vand.u32 %v2668, 2147483648
      %v3338 = vsel %vm3336, %v3337, %v3335
      %v3339 = vrsqrt.pop %v2669
      %v3340 = vmul.f32 %v2669, %v3339
      %vm3341 = vcmp.eq.f32.partialorder %v2669, inf
      %v3342 = vsel %vm3341, %v2669, %v3340
      %vm3343 = vcmp.eq.f32.partialorder %v2669, 0.0
      %v3344 = vand.u32 %v2669, 2147483648
      %v3345 = vsel %vm3343, %v3344, %v3342
      %v3346 = vrsqrt.pop %v2670
      %v3347 = vmul.f32 %v2670, %v3346
      %vm3348 = vcmp.eq.f32.partialorder %v2670, inf
      %v3349 = vsel %vm3348, %v2670, %v3347
      %vm3350 = vcmp.eq.f32.partialorder %v2670, 0.0
      %v3351 = vand.u32 %v2670, 2147483648
      %v3352 = vsel %vm3350, %v3351, %v3349
      %v3353 = vrsqrt.pop %v2671
      %v3354 = vmul.f32 %v2671, %v3353
      %vm3355 = vcmp.eq.f32.partialorder %v2671, inf
      %v3356 = vsel %vm3355, %v2671, %v3354
      %vm3357 = vcmp.eq.f32.partialorder %v2671, 0.0
      %v3358 = vand.u32 %v2671, 2147483648
      %v3359 = vsel %vm3357, %v3358, %v3356
      %v3360 = vrsqrt.pop %v2672
      %v3361 = vmul.f32 %v2672, %v3360
      %vm3362 = vcmp.eq.f32.partialorder %v2672, inf
      %v3363 = vsel %vm3362, %v2672, %v3361
      %vm3364 = vcmp.eq.f32.partialorder %v2672, 0.0
      %v3365 = vand.u32 %v2672, 2147483648
      %v3366 = vsel %vm3364, %v3365, %v3363
      %v3367 = vrsqrt.pop %v2673
      %v3368 = vmul.f32 %v2673, %v3367
      %vm3369 = vcmp.eq.f32.partialorder %v2673, inf
      %v3370 = vsel %vm3369, %v2673, %v3368
      %vm3371 = vcmp.eq.f32.partialorder %v2673, 0.0
      %v3372 = vand.u32 %v2673, 2147483648
      %v3373 = vsel %vm3371, %v3372, %v3370
      %v3374 = vrsqrt.pop %v2674
      %v3375 = vmul.f32 %v2674, %v3374
      %vm3376 = vcmp.eq.f32.partialorder %v2674, inf
      %v3377 = vsel %vm3376, %v2674, %v3375
      %vm3378 = vcmp.eq.f32.partialorder %v2674, 0.0
      %v3379 = vand.u32 %v2674, 2147483648
      %v3380 = vsel %vm3378, %v3379, %v3377
      %v3381 = vrsqrt.pop %v2675
      %v3382 = vmul.f32 %v2675, %v3381
      %vm3383 = vcmp.eq.f32.partialorder %v2675, inf
      %v3384 = vsel %vm3383, %v2675, %v3382
      %vm3385 = vcmp.eq.f32.partialorder %v2675, 0.0
      %v3386 = vand.u32 %v2675, 2147483648
      %v3387 = vsel %vm3385, %v3386, %v3384
      %v3388 = vrsqrt.pop %v2676
      %v3389 = vmul.f32 %v2676, %v3388
      %vm3390 = vcmp.eq.f32.partialorder %v2676, inf
      %v3391 = vsel %vm3390, %v2676, %v3389
      %vm3392 = vcmp.eq.f32.partialorder %v2676, 0.0
      %v3393 = vand.u32 %v2676, 2147483648
      %v3394 = vsel %vm3392, %v3393, %v3391
      %v3395 = vrsqrt.pop %v2677
      %v3396 = vmul.f32 %v2677, %v3395
      %vm3397 = vcmp.eq.f32.partialorder %v2677, inf
      %v3398 = vsel %vm3397, %v2677, %v3396
      %vm3399 = vcmp.eq.f32.partialorder %v2677, 0.0
      %v3400 = vand.u32 %v2677, 2147483648
      %v3401 = vsel %vm3399, %v3400, %v3398
      %v3402 = vrsqrt.pop %v2678
      %v3403 = vmul.f32 %v2678, %v3402
      %vm3404 = vcmp.eq.f32.partialorder %v2678, inf
      %v3405 = vsel %vm3404, %v2678, %v3403
      %vm3406 = vcmp.eq.f32.partialorder %v2678, 0.0
      %v3407 = vand.u32 %v2678, 2147483648
      %v3408 = vsel %vm3406, %v3407, %v3405
      %v3409 = vrsqrt.pop %v2679
      %v3410 = vmul.f32 %v2679, %v3409
      %vm3411 = vcmp.eq.f32.partialorder %v2679, inf
      %v3412 = vsel %vm3411, %v2679, %v3410
      %vm3413 = vcmp.eq.f32.partialorder %v2679, 0.0
      %v3414 = vand.u32 %v2679, 2147483648
      %v3415 = vsel %vm3413, %v3414, %v3412
      %v3416 = vrsqrt.pop %v2680
      %v3417 = vmul.f32 %v2680, %v3416
      %vm3418 = vcmp.eq.f32.partialorder %v2680, inf
      %v3419 = vsel %vm3418, %v2680, %v3417
      %vm3420 = vcmp.eq.f32.partialorder %v2680, 0.0
      %v3421 = vand.u32 %v2680, 2147483648
      %v3422 = vsel %vm3420, %v3421, %v3419
      %v3423 = vrsqrt.pop %v2681
      %v3424 = vmul.f32 %v2681, %v3423
      %vm3425 = vcmp.eq.f32.partialorder %v2681, inf
      %v3426 = vsel %vm3425, %v2681, %v3424
      %vm3427 = vcmp.eq.f32.partialorder %v2681, 0.0
      %v3428 = vand.u32 %v2681, 2147483648
      %v3429 = vsel %vm3427, %v3428, %v3426
      %v3430 = vrsqrt.pop %v2682
      %v3431 = vmul.f32 %v2682, %v3430
      %vm3432 = vcmp.eq.f32.partialorder %v2682, inf
      %v3433 = vsel %vm3432, %v2682, %v3431
      %vm3434 = vcmp.eq.f32.partialorder %v2682, 0.0
      %v3435 = vand.u32 %v2682, 2147483648
      %v3436 = vsel %vm3434, %v3435, %v3433
      %v3437 = vrsqrt.pop %v2683
      %v3438 = vmul.f32 %v2683, %v3437
      %vm3439 = vcmp.eq.f32.partialorder %v2683, inf
      %v3440 = vsel %vm3439, %v2683, %v3438
      %vm3441 = vcmp.eq.f32.partialorder %v2683, 0.0
      %v3442 = vand.u32 %v2683, 2147483648
      %v3443 = vsel %vm3441, %v3442, %v3440
      %v3444 = vrsqrt.pop %v2684
      %v3445 = vmul.f32 %v2684, %v3444
      %vm3446 = vcmp.eq.f32.partialorder %v2684, inf
      %v3447 = vsel %vm3446, %v2684, %v3445
      %vm3448 = vcmp.eq.f32.partialorder %v2684, 0.0
      %v3449 = vand.u32 %v2684, 2147483648
      %v3450 = vsel %vm3448, %v3449, %v3447
      %v3451 = vrsqrt.pop %v2685
      %v3452 = vmul.f32 %v2685, %v3451
      %vm3453 = vcmp.eq.f32.partialorder %v2685, inf
      %v3454 = vsel %vm3453, %v2685, %v3452
      %vm3455 = vcmp.eq.f32.partialorder %v2685, 0.0
      %v3456 = vand.u32 %v2685, 2147483648
      %v3457 = vsel %vm3455, %v3456, %v3454
      %v3458 = vrsqrt.pop %v2686
      %v3459 = vmul.f32 %v2686, %v3458
      %vm3460 = vcmp.eq.f32.partialorder %v2686, inf
      %v3461 = vsel %vm3460, %v2686, %v3459
      %vm3462 = vcmp.eq.f32.partialorder %v2686, 0.0
      %v3463 = vand.u32 %v2686, 2147483648
      %v3464 = vsel %vm3462, %v3463, %v3461
      %v3465 = vrsqrt.pop %v2687
      %v3466 = vmul.f32 %v2687, %v3465
      %vm3467 = vcmp.eq.f32.partialorder %v2687, inf
      %v3468 = vsel %vm3467, %v2687, %v3466
      %vm3469 = vcmp.eq.f32.partialorder %v2687, 0.0
      %v3470 = vand.u32 %v2687, 2147483648
      %v3471 = vsel %vm3469, %v3470, %v3468
      %v3472 = vrsqrt.pop %v2688
      %v3473 = vmul.f32 %v2688, %v3472
      %vm3474 = vcmp.eq.f32.partialorder %v2688, inf
      %v3475 = vsel %vm3474, %v2688, %v3473
      %vm3476 = vcmp.eq.f32.partialorder %v2688, 0.0
      %v3477 = vand.u32 %v2688, 2147483648
      %v3478 = vsel %vm3476, %v3477, %v3475
      %v3479 = vrsqrt.pop %v2689
      %v3480 = vmul.f32 %v2689, %v3479
      %vm3481 = vcmp.eq.f32.partialorder %v2689, inf
      %v3482 = vsel %vm3481, %v2689, %v3480
      %vm3483 = vcmp.eq.f32.partialorder %v2689, 0.0
      %v3484 = vand.u32 %v2689, 2147483648
      %v3485 = vsel %vm3483, %v3484, %v3482
      %v3486 = vrsqrt.pop %v2690
      %v3487 = vmul.f32 %v2690, %v3486
      %vm3488 = vcmp.eq.f32.partialorder %v2690, inf
      %v3489 = vsel %vm3488, %v2690, %v3487
      %vm3490 = vcmp.eq.f32.partialorder %v2690, 0.0
      %v3491 = vand.u32 %v2690, 2147483648
      %v3492 = vsel %vm3490, %v3491, %v3489
      %v3493 = vrsqrt.pop %v2691
      %v3494 = vmul.f32 %v2691, %v3493
      %vm3495 = vcmp.eq.f32.partialorder %v2691, inf
      %v3496 = vsel %vm3495, %v2691, %v3494
      %vm3497 = vcmp.eq.f32.partialorder %v2691, 0.0
      %v3498 = vand.u32 %v2691, 2147483648
      %v3499 = vsel %vm3497, %v3498, %v3496
      %v3500 = vrsqrt.pop %v2692
      %v3501 = vmul.f32 %v2692, %v3500
      %vm3502 = vcmp.eq.f32.partialorder %v2692, inf
      %v3503 = vsel %vm3502, %v2692, %v3501
      %vm3504 = vcmp.eq.f32.partialorder %v2692, 0.0
      %v3505 = vand.u32 %v2692, 2147483648
      %v3506 = vsel %vm3504, %v3505, %v3503
      %v3507 = vrsqrt.pop %v2693
      %v3508 = vmul.f32 %v2693, %v3507
      %vm3509 = vcmp.eq.f32.partialorder %v2693, inf
      %v3510 = vsel %vm3509, %v2693, %v3508
      %vm3511 = vcmp.eq.f32.partialorder %v2693, 0.0
      %v3512 = vand.u32 %v2693, 2147483648
      %v3513 = vsel %vm3511, %v3512, %v3510
      %v3514 = vrsqrt.pop %v2694
      %v3515 = vmul.f32 %v2694, %v3514
      %vm3516 = vcmp.eq.f32.partialorder %v2694, inf
      %v3517 = vsel %vm3516, %v2694, %v3515
      %vm3518 = vcmp.eq.f32.partialorder %v2694, 0.0
      %v3519 = vand.u32 %v2694, 2147483648
      %v3520 = vsel %vm3518, %v3519, %v3517
      %v3521 = vrsqrt.pop %v2695
      %v3522 = vmul.f32 %v2695, %v3521
      %vm3523 = vcmp.eq.f32.partialorder %v2695, inf
      %v3524 = vsel %vm3523, %v2695, %v3522
      %vm3525 = vcmp.eq.f32.partialorder %v2695, 0.0
      %v3526 = vand.u32 %v2695, 2147483648
      %v3527 = vsel %vm3525, %v3526, %v3524
      %v3528 = vrsqrt.pop %v2696
      %v3529 = vmul.f32 %v2696, %v3528
      %vm3530 = vcmp.eq.f32.partialorder %v2696, inf
      %v3531 = vsel %vm3530, %v2696, %v3529
      %vm3532 = vcmp.eq.f32.partialorder %v2696, 0.0
      %v3533 = vand.u32 %v2696, 2147483648
      %v3534 = vsel %vm3532, %v3533, %v3531
      %v3535 = vrsqrt.pop %v2697
      %v3536 = vmul.f32 %v2697, %v3535
      %vm3537 = vcmp.eq.f32.partialorder %v2697, inf
      %v3538 = vsel %vm3537, %v2697, %v3536
      %vm3539 = vcmp.eq.f32.partialorder %v2697, 0.0
      %v3540 = vand.u32 %v2697, 2147483648
      %v3541 = vsel %vm3539, %v3540, %v3538
      %v3542 = vrsqrt.pop %v2698
      %v3543 = vmul.f32 %v2698, %v3542
      %vm3544 = vcmp.eq.f32.partialorder %v2698, inf
      %v3545 = vsel %vm3544, %v2698, %v3543
      %vm3546 = vcmp.eq.f32.partialorder %v2698, 0.0
      %v3547 = vand.u32 %v2698, 2147483648
      %v3548 = vsel %vm3546, %v3547, %v3545
      %v3549 = vrsqrt.pop %v2699
      %v3550 = vmul.f32 %v2699, %v3549
      %vm3551 = vcmp.eq.f32.partialorder %v2699, inf
      %v3552 = vsel %vm3551, %v2699, %v3550
      %vm3553 = vcmp.eq.f32.partialorder %v2699, 0.0
      %v3554 = vand.u32 %v2699, 2147483648
      %v3555 = vsel %vm3553, %v3554, %v3552
      %v3556 = vrsqrt.pop %v2700
      %v3557 = vmul.f32 %v2700, %v3556
      %vm3558 = vcmp.eq.f32.partialorder %v2700, inf
      %v3559 = vsel %vm3558, %v2700, %v3557
      %vm3560 = vcmp.eq.f32.partialorder %v2700, 0.0
      %v3561 = vand.u32 %v2700, 2147483648
      %v3562 = vsel %vm3560, %v3561, %v3559
      %v3563 = vrsqrt.pop %v2701
      %v3564 = vmul.f32 %v2701, %v3563
      %vm3565 = vcmp.eq.f32.partialorder %v2701, inf
      %v3566 = vsel %vm3565, %v2701, %v3564
      %vm3567 = vcmp.eq.f32.partialorder %v2701, 0.0
      %v3568 = vand.u32 %v2701, 2147483648
      %v3569 = vsel %vm3567, %v3568, %v3566
      %v3570 = vrsqrt.pop %v2702
      %v3571 = vmul.f32 %v2702, %v3570
      %vm3572 = vcmp.eq.f32.partialorder %v2702, inf
      %v3573 = vsel %vm3572, %v2702, %v3571
      %vm3574 = vcmp.eq.f32.partialorder %v2702, 0.0
      %v3575 = vand.u32 %v2702, 2147483648
      %v3576 = vsel %vm3574, %v3575, %v3573
      %v3577 = vrsqrt.pop %v2703
      %v3578 = vmul.f32 %v2703, %v3577
      %vm3579 = vcmp.eq.f32.partialorder %v2703, inf
      %v3580 = vsel %vm3579, %v2703, %v3578
      %vm3581 = vcmp.eq.f32.partialorder %v2703, 0.0
      %v3582 = vand.u32 %v2703, 2147483648
      %v3583 = vsel %vm3581, %v3582, %v3580
      %v3584 = vrsqrt.pop %v2704
      %v3585 = vmul.f32 %v2704, %v3584
      %vm3586 = vcmp.eq.f32.partialorder %v2704, inf
      %v3587 = vsel %vm3586, %v2704, %v3585
      %vm3588 = vcmp.eq.f32.partialorder %v2704, 0.0
      %v3589 = vand.u32 %v2704, 2147483648
      %v3590 = vsel %vm3588, %v3589, %v3587
      %v3591 = vrsqrt.pop %v2705
      %v3592 = vmul.f32 %v2705, %v3591
      %vm3593 = vcmp.eq.f32.partialorder %v2705, inf
      %v3594 = vsel %vm3593, %v2705, %v3592
      %vm3595 = vcmp.eq.f32.partialorder %v2705, 0.0
      %v3596 = vand.u32 %v2705, 2147483648
      %v3597 = vsel %vm3595, %v3596, %v3594
      %v3598 = vrsqrt.pop %v2706
      %v3599 = vmul.f32 %v2706, %v3598
      %vm3600 = vcmp.eq.f32.partialorder %v2706, inf
      %v3601 = vsel %vm3600, %v2706, %v3599
      %vm3602 = vcmp.eq.f32.partialorder %v2706, 0.0
      %v3603 = vand.u32 %v2706, 2147483648
      %v3604 = vsel %vm3602, %v3603, %v3601
      %v3605 = vrsqrt.pop %v2707
      %v3606 = vmul.f32 %v2707, %v3605
      %vm3607 = vcmp.eq.f32.partialorder %v2707, inf
      %v3608 = vsel %vm3607, %v2707, %v3606
      %vm3609 = vcmp.eq.f32.partialorder %v2707, 0.0
      %v3610 = vand.u32 %v2707, 2147483648
      %v3611 = vsel %vm3609, %v3610, %v3608
      %v3612 = vrsqrt.pop %v2708
      %v3613 = vmul.f32 %v2708, %v3612
      %vm3614 = vcmp.eq.f32.partialorder %v2708, inf
      %v3615 = vsel %vm3614, %v2708, %v3613
      %vm3616 = vcmp.eq.f32.partialorder %v2708, 0.0
      %v3617 = vand.u32 %v2708, 2147483648
      %v3618 = vsel %vm3616, %v3617, %v3615
      %v3619 = vrsqrt.pop %v2709
      %v3620 = vmul.f32 %v2709, %v3619
      %vm3621 = vcmp.eq.f32.partialorder %v2709, inf
      %v3622 = vsel %vm3621, %v2709, %v3620
      %vm3623 = vcmp.eq.f32.partialorder %v2709, 0.0
      %v3624 = vand.u32 %v2709, 2147483648
      %v3625 = vsel %vm3623, %v3624, %v3622
      %v3626 = vrsqrt.pop %v2710
      %v3627 = vmul.f32 %v2710, %v3626
      %vm3628 = vcmp.eq.f32.partialorder %v2710, inf
      %v3629 = vsel %vm3628, %v2710, %v3627
      %vm3630 = vcmp.eq.f32.partialorder %v2710, 0.0
      %v3631 = vand.u32 %v2710, 2147483648
      %v3632 = vsel %vm3630, %v3631, %v3629
      %v3633 = vrsqrt.pop %v2711
      %v3634 = vmul.f32 %v2711, %v3633
      %vm3635 = vcmp.eq.f32.partialorder %v2711, inf
      %v3636 = vsel %vm3635, %v2711, %v3634
      %vm3637 = vcmp.eq.f32.partialorder %v2711, 0.0
      %v3638 = vand.u32 %v2711, 2147483648
      %v3639 = vsel %vm3637, %v3638, %v3636
      %v3640 = vrsqrt.pop %v2712
      %v3641 = vmul.f32 %v2712, %v3640
      %vm3642 = vcmp.eq.f32.partialorder %v2712, inf
      %v3643 = vsel %vm3642, %v2712, %v3641
      %vm3644 = vcmp.eq.f32.partialorder %v2712, 0.0
      %v3645 = vand.u32 %v2712, 2147483648
      %v3646 = vsel %vm3644, %v3645, %v3643
      %v3647 = vrsqrt.pop %v2713
      %v3648 = vmul.f32 %v2713, %v3647
      %vm3649 = vcmp.eq.f32.partialorder %v2713, inf
      %v3650 = vsel %vm3649, %v2713, %v3648
      %vm3651 = vcmp.eq.f32.partialorder %v2713, 0.0
      %v3652 = vand.u32 %v2713, 2147483648
      %v3653 = vsel %vm3651, %v3652, %v3650
      %v3654 = vrsqrt.pop %v2714
      %v3655 = vmul.f32 %v2714, %v3654
      %vm3656 = vcmp.eq.f32.partialorder %v2714, inf
      %v3657 = vsel %vm3656, %v2714, %v3655
      %vm3658 = vcmp.eq.f32.partialorder %v2714, 0.0
      %v3659 = vand.u32 %v2714, 2147483648
      %v3660 = vsel %vm3658, %v3659, %v3657
      %v3661 = vrsqrt.pop %v2715
      %v3662 = vmul.f32 %v2715, %v3661
      %vm3663 = vcmp.eq.f32.partialorder %v2715, inf
      %v3664 = vsel %vm3663, %v2715, %v3662
      %vm3665 = vcmp.eq.f32.partialorder %v2715, 0.0
      %v3666 = vand.u32 %v2715, 2147483648
      %v3667 = vsel %vm3665, %v3666, %v3664
      %v3668 = vrsqrt.pop %v2716
      %v3669 = vmul.f32 %v2716, %v3668
      %vm3670 = vcmp.eq.f32.partialorder %v2716, inf
      %v3671 = vsel %vm3670, %v2716, %v3669
      %vm3672 = vcmp.eq.f32.partialorder %v2716, 0.0
      %v3673 = vand.u32 %v2716, 2147483648
      %v3674 = vsel %vm3672, %v3673, %v3671
      %v3675 = vrsqrt.pop %v2717
      %v3676 = vmul.f32 %v2717, %v3675
      %vm3677 = vcmp.eq.f32.partialorder %v2717, inf
      %v3678 = vsel %vm3677, %v2717, %v3676
      %vm3679 = vcmp.eq.f32.partialorder %v2717, 0.0
      %v3680 = vand.u32 %v2717, 2147483648
      %v3681 = vsel %vm3679, %v3680, %v3678
      %v3682 = vrsqrt.pop %v2718
      %v3683 = vmul.f32 %v2718, %v3682
      %vm3684 = vcmp.eq.f32.partialorder %v2718, inf
      %v3685 = vsel %vm3684, %v2718, %v3683
      %vm3686 = vcmp.eq.f32.partialorder %v2718, 0.0
      %v3687 = vand.u32 %v2718, 2147483648
      %v3688 = vsel %vm3686, %v3687, %v3685
      %v3689 = vrsqrt.pop %v2719
      %v3690 = vmul.f32 %v2719, %v3689
      %vm3691 = vcmp.eq.f32.partialorder %v2719, inf
      %v3692 = vsel %vm3691, %v2719, %v3690
      %vm3693 = vcmp.eq.f32.partialorder %v2719, 0.0
      %v3694 = vand.u32 %v2719, 2147483648
      %v3695 = vsel %vm3693, %v3694, %v3692
      %v3696 = vrsqrt.pop %v2720
      %v3697 = vmul.f32 %v2720, %v3696
      %vm3698 = vcmp.eq.f32.partialorder %v2720, inf
      %v3699 = vsel %vm3698, %v2720, %v3697
      %vm3700 = vcmp.eq.f32.partialorder %v2720, 0.0
      %v3701 = vand.u32 %v2720, 2147483648
      %v3702 = vsel %vm3700, %v3701, %v3699
      %v3703 = vrsqrt.pop %v2721
      %v3704 = vmul.f32 %v2721, %v3703
      %vm3705 = vcmp.eq.f32.partialorder %v2721, inf
      %v3706 = vsel %vm3705, %v2721, %v3704
      %vm3707 = vcmp.eq.f32.partialorder %v2721, 0.0
      %v3708 = vand.u32 %v2721, 2147483648
      %v3709 = vsel %vm3707, %v3708, %v3706
      %v3710 = vrsqrt.pop %v2722
      %v3711 = vmul.f32 %v2722, %v3710
      %vm3712 = vcmp.eq.f32.partialorder %v2722, inf
      %v3713 = vsel %vm3712, %v2722, %v3711
      %vm3714 = vcmp.eq.f32.partialorder %v2722, 0.0
      %v3715 = vand.u32 %v2722, 2147483648
      %v3716 = vsel %vm3714, %v3715, %v3713
      %v3717 = vrsqrt.pop %v2723
      %v3718 = vmul.f32 %v2723, %v3717
      %vm3719 = vcmp.eq.f32.partialorder %v2723, inf
      %v3720 = vsel %vm3719, %v2723, %v3718
      %vm3721 = vcmp.eq.f32.partialorder %v2723, 0.0
      %v3722 = vand.u32 %v2723, 2147483648
      %v3723 = vsel %vm3721, %v3722, %v3720
      %v3724 = vrsqrt.pop %v2724
      %v3725 = vmul.f32 %v2724, %v3724
      %vm3726 = vcmp.eq.f32.partialorder %v2724, inf
      %v3727 = vsel %vm3726, %v2724, %v3725
      %vm3728 = vcmp.eq.f32.partialorder %v2724, 0.0
      %v3729 = vand.u32 %v2724, 2147483648
      %v3730 = vsel %vm3728, %v3729, %v3727
      %v3731 = vrsqrt.pop %v2725
      %v3732 = vmul.f32 %v2725, %v3731
      %vm3733 = vcmp.eq.f32.partialorder %v2725, inf
      %v3734 = vsel %vm3733, %v2725, %v3732
      %vm3735 = vcmp.eq.f32.partialorder %v2725, 0.0
      %v3736 = vand.u32 %v2725, 2147483648
      %v3737 = vsel %vm3735, %v3736, %v3734
      %v3738 = vrsqrt.pop %v2726
      %v3739 = vmul.f32 %v2726, %v3738
      %vm3740 = vcmp.eq.f32.partialorder %v2726, inf
      %v3741 = vsel %vm3740, %v2726, %v3739
      %vm3742 = vcmp.eq.f32.partialorder %v2726, 0.0
      %v3743 = vand.u32 %v2726, 2147483648
      %v3744 = vsel %vm3742, %v3743, %v3741
      %v3745 = vrsqrt.pop %v2727
      %v3746 = vmul.f32 %v2727, %v3745
      %vm3747 = vcmp.eq.f32.partialorder %v2727, inf
      %v3748 = vsel %vm3747, %v2727, %v3746
      %vm3749 = vcmp.eq.f32.partialorder %v2727, 0.0
      %v3750 = vand.u32 %v2727, 2147483648
      %v3751 = vsel %vm3749, %v3750, %v3748
      %v3752 = vrsqrt.pop %v2728
      %v3753 = vmul.f32 %v2728, %v3752
      %vm3754 = vcmp.eq.f32.partialorder %v2728, inf
      %v3755 = vsel %vm3754, %v2728, %v3753
      %vm3756 = vcmp.eq.f32.partialorder %v2728, 0.0
      %v3757 = vand.u32 %v2728, 2147483648
      %v3758 = vsel %vm3756, %v3757, %v3755
      %v3759 = vrsqrt.pop %v2729
      %v3760 = vmul.f32 %v2729, %v3759
      %vm3761 = vcmp.eq.f32.partialorder %v2729, inf
      %v3762 = vsel %vm3761, %v2729, %v3760
      %vm3763 = vcmp.eq.f32.partialorder %v2729, 0.0
      %v3764 = vand.u32 %v2729, 2147483648
      %v3765 = vsel %vm3763, %v3764, %v3762
      %v3766 = vrsqrt.pop %v2730
      %v3767 = vmul.f32 %v2730, %v3766
      %vm3768 = vcmp.eq.f32.partialorder %v2730, inf
      %v3769 = vsel %vm3768, %v2730, %v3767
      %vm3770 = vcmp.eq.f32.partialorder %v2730, 0.0
      %v3771 = vand.u32 %v2730, 2147483648
      %v3772 = vsel %vm3770, %v3771, %v3769
      %v3773 = vrsqrt.pop %v2731
      %v3774 = vmul.f32 %v2731, %v3773
      %vm3775 = vcmp.eq.f32.partialorder %v2731, inf
      %v3776 = vsel %vm3775, %v2731, %v3774
      %vm3777 = vcmp.eq.f32.partialorder %v2731, 0.0
      %v3778 = vand.u32 %v2731, 2147483648
      %v3779 = vsel %vm3777, %v3778, %v3776
      %v3780 = vrsqrt.pop %v2732
      %v3781 = vmul.f32 %v2732, %v3780
      %vm3782 = vcmp.eq.f32.partialorder %v2732, inf
      %v3783 = vsel %vm3782, %v2732, %v3781
      %vm3784 = vcmp.eq.f32.partialorder %v2732, 0.0
      %v3785 = vand.u32 %v2732, 2147483648
      %v3786 = vsel %vm3784, %v3785, %v3783
      %v3787 = vrsqrt.pop %v2733
      %v3788 = vmul.f32 %v2733, %v3787
      %vm3789 = vcmp.eq.f32.partialorder %v2733, inf
      %v3790 = vsel %vm3789, %v2733, %v3788
      %vm3791 = vcmp.eq.f32.partialorder %v2733, 0.0
      %v3792 = vand.u32 %v2733, 2147483648
      %v3793 = vsel %vm3791, %v3792, %v3790
      %v3794 = vrsqrt.pop %v2734
      %v3795 = vmul.f32 %v2734, %v3794
      %vm3796 = vcmp.eq.f32.partialorder %v2734, inf
      %v3797 = vsel %vm3796, %v2734, %v3795
      %vm3798 = vcmp.eq.f32.partialorder %v2734, 0.0
      %v3799 = vand.u32 %v2734, 2147483648
      %v3800 = vsel %vm3798, %v3799, %v3797
      %v3801 = vrsqrt.pop %v2735
      %v3802 = vmul.f32 %v2735, %v3801
      %vm3803 = vcmp.eq.f32.partialorder %v2735, inf
      %v3804 = vsel %vm3803, %v2735, %v3802
      %vm3805 = vcmp.eq.f32.partialorder %v2735, 0.0
      %v3806 = vand.u32 %v2735, 2147483648
      %v3807 = vsel %vm3805, %v3806, %v3804
      %v3808 = vrsqrt.pop %v2736
      %v3809 = vmul.f32 %v2736, %v3808
      %vm3810 = vcmp.eq.f32.partialorder %v2736, inf
      %v3811 = vsel %vm3810, %v2736, %v3809
      %vm3812 = vcmp.eq.f32.partialorder %v2736, 0.0
      %v3813 = vand.u32 %v2736, 2147483648
      %v3814 = vsel %vm3812, %v3813, %v3811
      %v3815 = vrsqrt.pop %v2737
      %v3816 = vmul.f32 %v2737, %v3815
      %vm3817 = vcmp.eq.f32.partialorder %v2737, inf
      %v3818 = vsel %vm3817, %v2737, %v3816
      %vm3819 = vcmp.eq.f32.partialorder %v2737, 0.0
      %v3820 = vand.u32 %v2737, 2147483648
      %v3821 = vsel %vm3819, %v3820, %v3818
      %v3822 = vrsqrt.pop %v2738
      %v3823 = vmul.f32 %v2738, %v3822
      %vm3824 = vcmp.eq.f32.partialorder %v2738, inf
      %v3825 = vsel %vm3824, %v2738, %v3823
      %vm3826 = vcmp.eq.f32.partialorder %v2738, 0.0
      %v3827 = vand.u32 %v2738, 2147483648
      %v3828 = vsel %vm3826, %v3827, %v3825
      %v3829 = vrsqrt.pop %v2739
      %v3830 = vmul.f32 %v2739, %v3829
      %vm3831 = vcmp.eq.f32.partialorder %v2739, inf
      %v3832 = vsel %vm3831, %v2739, %v3830
      %vm3833 = vcmp.eq.f32.partialorder %v2739, 0.0
      %v3834 = vand.u32 %v2739, 2147483648
      %v3835 = vsel %vm3833, %v3834, %v3832
      %v3836 = vrsqrt.pop %v2740
      %v3837 = vmul.f32 %v2740, %v3836
      %vm3838 = vcmp.eq.f32.partialorder %v2740, inf
      %v3839 = vsel %vm3838, %v2740, %v3837
      %vm3840 = vcmp.eq.f32.partialorder %v2740, 0.0
      %v3841 = vand.u32 %v2740, 2147483648
      %v3842 = vsel %vm3840, %v3841, %v3839
      %v3843 = vrsqrt.pop %v2741
      %v3844 = vmul.f32 %v2741, %v3843
      %vm3845 = vcmp.eq.f32.partialorder %v2741, inf
      %v3846 = vsel %vm3845, %v2741, %v3844
      %vm3847 = vcmp.eq.f32.partialorder %v2741, 0.0
      %v3848 = vand.u32 %v2741, 2147483648
      %v3849 = vsel %vm3847, %v3848, %v3846
      %v3850 = vrsqrt.pop %v2742
      %v3851 = vmul.f32 %v2742, %v3850
      %vm3852 = vcmp.eq.f32.partialorder %v2742, inf
      %v3853 = vsel %vm3852, %v2742, %v3851
      %vm3854 = vcmp.eq.f32.partialorder %v2742, 0.0
      %v3855 = vand.u32 %v2742, 2147483648
      %v3856 = vsel %vm3854, %v3855, %v3853
      %v3857 = vrsqrt.pop %v2743
      %v3858 = vmul.f32 %v2743, %v3857
      %vm3859 = vcmp.eq.f32.partialorder %v2743, inf
      %v3860 = vsel %vm3859, %v2743, %v3858
      %vm3861 = vcmp.eq.f32.partialorder %v2743, 0.0
      %v3862 = vand.u32 %v2743, 2147483648
      %v3863 = vsel %vm3861, %v3862, %v3860
      %v3864 = vrsqrt.pop %v2744
      %v3865 = vmul.f32 %v2744, %v3864
      %vm3866 = vcmp.eq.f32.partialorder %v2744, inf
      %v3867 = vsel %vm3866, %v2744, %v3865
      %vm3868 = vcmp.eq.f32.partialorder %v2744, 0.0
      %v3869 = vand.u32 %v2744, 2147483648
      %v3870 = vsel %vm3868, %v3869, %v3867
      %v3871 = vrsqrt.pop %v2745
      %v3872 = vmul.f32 %v2745, %v3871
      %vm3873 = vcmp.eq.f32.partialorder %v2745, inf
      %v3874 = vsel %vm3873, %v2745, %v3872
      %vm3875 = vcmp.eq.f32.partialorder %v2745, 0.0
      %v3876 = vand.u32 %v2745, 2147483648
      %v3877 = vsel %vm3875, %v3876, %v3874
      %v3878 = vrsqrt.pop %v2746
      %v3879 = vmul.f32 %v2746, %v3878
      %vm3880 = vcmp.eq.f32.partialorder %v2746, inf
      %v3881 = vsel %vm3880, %v2746, %v3879
      %vm3882 = vcmp.eq.f32.partialorder %v2746, 0.0
      %v3883 = vand.u32 %v2746, 2147483648
      %v3884 = vsel %vm3882, %v3883, %v3881
      %v3885 = vrsqrt.pop %v2747
      %v3886 = vmul.f32 %v2747, %v3885
      %vm3887 = vcmp.eq.f32.partialorder %v2747, inf
      %v3888 = vsel %vm3887, %v2747, %v3886
      %vm3889 = vcmp.eq.f32.partialorder %v2747, 0.0
      %v3890 = vand.u32 %v2747, 2147483648
      %v3891 = vsel %vm3889, %v3890, %v3888
      %v3892 = vrsqrt.pop %v2748
      %v3893 = vmul.f32 %v2748, %v3892
      %vm3894 = vcmp.eq.f32.partialorder %v2748, inf
      %v3895 = vsel %vm3894, %v2748, %v3893
      %vm3896 = vcmp.eq.f32.partialorder %v2748, 0.0
      %v3897 = vand.u32 %v2748, 2147483648
      %v3898 = vsel %vm3896, %v3897, %v3895
      %v3899 = vrsqrt.pop %v2749
      %v3900 = vmul.f32 %v2749, %v3899
      %vm3901 = vcmp.eq.f32.partialorder %v2749, inf
      %v3902 = vsel %vm3901, %v2749, %v3900
      %vm3903 = vcmp.eq.f32.partialorder %v2749, 0.0
      %v3904 = vand.u32 %v2749, 2147483648
      %v3905 = vsel %vm3903, %v3904, %v3902
      %v3906 = vrsqrt.pop %v2750
      %v3907 = vmul.f32 %v2750, %v3906
      %vm3908 = vcmp.eq.f32.partialorder %v2750, inf
      %v3909 = vsel %vm3908, %v2750, %v3907
      %vm3910 = vcmp.eq.f32.partialorder %v2750, 0.0
      %v3911 = vand.u32 %v2750, 2147483648
      %v3912 = vsel %vm3910, %v3911, %v3909
      %v3913 = vrsqrt.pop %v2751
      %v3914 = vmul.f32 %v2751, %v3913
      %vm3915 = vcmp.eq.f32.partialorder %v2751, inf
      %v3916 = vsel %vm3915, %v2751, %v3914
      %vm3917 = vcmp.eq.f32.partialorder %v2751, 0.0
      %v3918 = vand.u32 %v2751, 2147483648
      %v3919 = vsel %vm3917, %v3918, %v3916
      %v3920 = vrsqrt.pop %v2752
      %v3921 = vmul.f32 %v2752, %v3920
      %vm3922 = vcmp.eq.f32.partialorder %v2752, inf
      %v3923 = vsel %vm3922, %v2752, %v3921
      %vm3924 = vcmp.eq.f32.partialorder %v2752, 0.0
      %v3925 = vand.u32 %v2752, 2147483648
      %v3926 = vsel %vm3924, %v3925, %v3923
      %v3927 = vrsqrt.pop %v2753
      %v3928 = vmul.f32 %v2753, %v3927
      %vm3929 = vcmp.eq.f32.partialorder %v2753, inf
      %v3930 = vsel %vm3929, %v2753, %v3928
      %vm3931 = vcmp.eq.f32.partialorder %v2753, 0.0
      %v3932 = vand.u32 %v2753, 2147483648
      %v3933 = vsel %vm3931, %v3932, %v3930
      %v3934 = vrsqrt.pop %v2754
      %v3935 = vmul.f32 %v2754, %v3934
      %vm3936 = vcmp.eq.f32.partialorder %v2754, inf
      %v3937 = vsel %vm3936, %v2754, %v3935
      %vm3938 = vcmp.eq.f32.partialorder %v2754, 0.0
      %v3939 = vand.u32 %v2754, 2147483648
      %v3940 = vsel %vm3938, %v3939, %v3937
      %v3941 = vrsqrt.pop %v2755
      %v3942 = vmul.f32 %v2755, %v3941
      %vm3943 = vcmp.eq.f32.partialorder %v2755, inf
      %v3944 = vsel %vm3943, %v2755, %v3942
      %vm3945 = vcmp.eq.f32.partialorder %v2755, 0.0
      %v3946 = vand.u32 %v2755, 2147483648
      %v3947 = vsel %vm3945, %v3946, %v3944
      %v3948 = vrsqrt.pop %v2756
      %v3949 = vmul.f32 %v2756, %v3948
      %vm3950 = vcmp.eq.f32.partialorder %v2756, inf
      %v3951 = vsel %vm3950, %v2756, %v3949
      %vm3952 = vcmp.eq.f32.partialorder %v2756, 0.0
      %v3953 = vand.u32 %v2756, 2147483648
      %v3954 = vsel %vm3952, %v3953, %v3951
      %v3955 = vrsqrt.pop %v2757
      %v3956 = vmul.f32 %v2757, %v3955
      %vm3957 = vcmp.eq.f32.partialorder %v2757, inf
      %v3958 = vsel %vm3957, %v2757, %v3956
      %vm3959 = vcmp.eq.f32.partialorder %v2757, 0.0
      %v3960 = vand.u32 %v2757, 2147483648
      %v3961 = vsel %vm3959, %v3960, %v3958
      %v3962 = vrsqrt.pop %v2758
      %v3963 = vmul.f32 %v2758, %v3962
      %vm3964 = vcmp.eq.f32.partialorder %v2758, inf
      %v3965 = vsel %vm3964, %v2758, %v3963
      %vm3966 = vcmp.eq.f32.partialorder %v2758, 0.0
      %v3967 = vand.u32 %v2758, 2147483648
      %v3968 = vsel %vm3966, %v3967, %v3965
      %v3969 = vrsqrt.pop %v2759
      %v3970 = vmul.f32 %v2759, %v3969
      %vm3971 = vcmp.eq.f32.partialorder %v2759, inf
      %v3972 = vsel %vm3971, %v2759, %v3970
      %vm3973 = vcmp.eq.f32.partialorder %v2759, 0.0
      %v3974 = vand.u32 %v2759, 2147483648
      %v3975 = vsel %vm3973, %v3974, %v3972
      %v3976 = vrsqrt.pop %v2760
      %v3977 = vmul.f32 %v2760, %v3976
      %vm3978 = vcmp.eq.f32.partialorder %v2760, inf
      %v3979 = vsel %vm3978, %v2760, %v3977
      %vm3980 = vcmp.eq.f32.partialorder %v2760, 0.0
      %v3981 = vand.u32 %v2760, 2147483648
      %v3982 = vsel %vm3980, %v3981, %v3979
      %v3983 = vrsqrt.pop %v2761
      %v3984 = vmul.f32 %v2761, %v3983
      %vm3985 = vcmp.eq.f32.partialorder %v2761, inf
      %v3986 = vsel %vm3985, %v2761, %v3984
      %vm3987 = vcmp.eq.f32.partialorder %v2761, 0.0
      %v3988 = vand.u32 %v2761, 2147483648
      %v3989 = vsel %vm3987, %v3988, %v3986
      %v3990 = vrsqrt.pop %v2762
      %v3991 = vmul.f32 %v2762, %v3990
      %vm3992 = vcmp.eq.f32.partialorder %v2762, inf
      %v3993 = vsel %vm3992, %v2762, %v3991
      %vm3994 = vcmp.eq.f32.partialorder %v2762, 0.0
      %v3995 = vand.u32 %v2762, 2147483648
      %v3996 = vsel %vm3994, %v3995, %v3993
      %v3997 = vrsqrt.pop %v2763
      %v3998 = vmul.f32 %v2763, %v3997
      %vm3999 = vcmp.eq.f32.partialorder %v2763, inf
      %v4000 = vsel %vm3999, %v2763, %v3998
      %vm4001 = vcmp.eq.f32.partialorder %v2763, 0.0
      %v4002 = vand.u32 %v2763, 2147483648
      %v4003 = vsel %vm4001, %v4002, %v4000
      %v4004 = vrsqrt.pop %v2764
      %v4005 = vmul.f32 %v2764, %v4004
      %vm4006 = vcmp.eq.f32.partialorder %v2764, inf
      %v4007 = vsel %vm4006, %v2764, %v4005
      %vm4008 = vcmp.eq.f32.partialorder %v2764, 0.0
      %v4009 = vand.u32 %v2764, 2147483648
      %v4010 = vsel %vm4008, %v4009, %v4007
      %v4011 = vrsqrt.pop %v2765
      %v4012 = vmul.f32 %v2765, %v4011
      %vm4013 = vcmp.eq.f32.partialorder %v2765, inf
      %v4014 = vsel %vm4013, %v2765, %v4012
      %vm4015 = vcmp.eq.f32.partialorder %v2765, 0.0
      %v4016 = vand.u32 %v2765, 2147483648
      %v4017 = vsel %vm4015, %v4016, %v4014
      %v4018 = vrsqrt.pop %v2766
      %v4019 = vmul.f32 %v2766, %v4018
      %vm4020 = vcmp.eq.f32.partialorder %v2766, inf
      %v4021 = vsel %vm4020, %v2766, %v4019
      %vm4022 = vcmp.eq.f32.partialorder %v2766, 0.0
      %v4023 = vand.u32 %v2766, 2147483648
      %v4024 = vsel %vm4022, %v4023, %v4021
      %v4025 = vrsqrt.pop %v2767
      %v4026 = vmul.f32 %v2767, %v4025
      %vm4027 = vcmp.eq.f32.partialorder %v2767, inf
      %v4028 = vsel %vm4027, %v2767, %v4026
      %vm4029 = vcmp.eq.f32.partialorder %v2767, 0.0
      %v4030 = vand.u32 %v2767, 2147483648
      %v4031 = vsel %vm4029, %v4030, %v4028
      %v4032 = vrsqrt.pop %v2768
      %v4033 = vmul.f32 %v2768, %v4032
      %vm4034 = vcmp.eq.f32.partialorder %v2768, inf
      %v4035 = vsel %vm4034, %v2768, %v4033
      %vm4036 = vcmp.eq.f32.partialorder %v2768, 0.0
      %v4037 = vand.u32 %v2768, 2147483648
      %v4038 = vsel %vm4036, %v4037, %v4035
      %v4039 = vrsqrt.pop %v2769
      %v4040 = vmul.f32 %v2769, %v4039
      %vm4041 = vcmp.eq.f32.partialorder %v2769, inf
      %v4042 = vsel %vm4041, %v2769, %v4040
      %vm4043 = vcmp.eq.f32.partialorder %v2769, 0.0
      %v4044 = vand.u32 %v2769, 2147483648
      %v4045 = vsel %vm4043, %v4044, %v4042
      %v4046 = vrsqrt.pop %v2770
      %v4047 = vmul.f32 %v2770, %v4046
      %vm4048 = vcmp.eq.f32.partialorder %v2770, inf
      %v4049 = vsel %vm4048, %v2770, %v4047
      %vm4050 = vcmp.eq.f32.partialorder %v2770, 0.0
      %v4051 = vand.u32 %v2770, 2147483648
      %v4052 = vsel %vm4050, %v4051, %v4049
      %v4053 = vrsqrt.pop %v2771
      %v4054 = vmul.f32 %v2771, %v4053
      %vm4055 = vcmp.eq.f32.partialorder %v2771, inf
      %v4056 = vsel %vm4055, %v2771, %v4054
      %vm4057 = vcmp.eq.f32.partialorder %v2771, 0.0
      %v4058 = vand.u32 %v2771, 2147483648
      %v4059 = vsel %vm4057, %v4058, %v4056
      %v4060 = vrsqrt.pop %v2772
      %v4061 = vmul.f32 %v2772, %v4060
      %vm4062 = vcmp.eq.f32.partialorder %v2772, inf
      %v4063 = vsel %vm4062, %v2772, %v4061
      %vm4064 = vcmp.eq.f32.partialorder %v2772, 0.0
      %v4065 = vand.u32 %v2772, 2147483648
      %v4066 = vsel %vm4064, %v4065, %v4063
      %v4067 = vrsqrt.pop %v2773
      %v4068 = vmul.f32 %v2773, %v4067
      %vm4069 = vcmp.eq.f32.partialorder %v2773, inf
      %v4070 = vsel %vm4069, %v2773, %v4068
      %vm4071 = vcmp.eq.f32.partialorder %v2773, 0.0
      %v4072 = vand.u32 %v2773, 2147483648
      %v4073 = vsel %vm4071, %v4072, %v4070
      %v4074 = vrsqrt.pop %v2774
      %v4075 = vmul.f32 %v2774, %v4074
      %vm4076 = vcmp.eq.f32.partialorder %v2774, inf
      %v4077 = vsel %vm4076, %v2774, %v4075
      %vm4078 = vcmp.eq.f32.partialorder %v2774, 0.0
      %v4079 = vand.u32 %v2774, 2147483648
      %v4080 = vsel %vm4078, %v4079, %v4077
      %v4081 = vrsqrt.pop %v2775
      %v4082 = vmul.f32 %v2775, %v4081
      %vm4083 = vcmp.eq.f32.partialorder %v2775, inf
      %v4084 = vsel %vm4083, %v2775, %v4082
      %vm4085 = vcmp.eq.f32.partialorder %v2775, 0.0
      %v4086 = vand.u32 %v2775, 2147483648
      %v4087 = vsel %vm4085, %v4086, %v4084
      %v4088 = vrsqrt.pop %v2776
      %v4089 = vmul.f32 %v2776, %v4088
      %vm4090 = vcmp.eq.f32.partialorder %v2776, inf
      %v4091 = vsel %vm4090, %v2776, %v4089
      %vm4092 = vcmp.eq.f32.partialorder %v2776, 0.0
      %v4093 = vand.u32 %v2776, 2147483648
      %v4094 = vsel %vm4092, %v4093, %v4091
      %v4095 = vrsqrt.pop %v2777
      %v4096 = vmul.f32 %v2777, %v4095
      %vm4097 = vcmp.eq.f32.partialorder %v2777, inf
      %v4098 = vsel %vm4097, %v2777, %v4096
      %vm4099 = vcmp.eq.f32.partialorder %v2777, 0.0
      %v4100 = vand.u32 %v2777, 2147483648
      %v4101 = vsel %vm4099, %v4100, %v4098
      %v4102 = vrsqrt.pop %v2778
      %v4103 = vmul.f32 %v2778, %v4102
      %vm4104 = vcmp.eq.f32.partialorder %v2778, inf
      %v4105 = vsel %vm4104, %v2778, %v4103
      %vm4106 = vcmp.eq.f32.partialorder %v2778, 0.0
      %v4107 = vand.u32 %v2778, 2147483648
      %v4108 = vsel %vm4106, %v4107, %v4105
      %v4109 = vrsqrt.pop %v2779
      %v4110 = vmul.f32 %v2779, %v4109
      %vm4111 = vcmp.eq.f32.partialorder %v2779, inf
      %v4112 = vsel %vm4111, %v2779, %v4110
      %vm4113 = vcmp.eq.f32.partialorder %v2779, 0.0
      %v4114 = vand.u32 %v2779, 2147483648
      %v4115 = vsel %vm4113, %v4114, %v4112
      %v4116 = vrsqrt.pop %v2780
      %v4117 = vmul.f32 %v2780, %v4116
      %vm4118 = vcmp.eq.f32.partialorder %v2780, inf
      %v4119 = vsel %vm4118, %v2780, %v4117
      %vm4120 = vcmp.eq.f32.partialorder %v2780, 0.0
      %v4121 = vand.u32 %v2780, 2147483648
      %v4122 = vsel %vm4120, %v4121, %v4119
      %v4123 = vrsqrt.pop %v2781
      %v4124 = vmul.f32 %v2781, %v4123
      %vm4125 = vcmp.eq.f32.partialorder %v2781, inf
      %v4126 = vsel %vm4125, %v2781, %v4124
      %vm4127 = vcmp.eq.f32.partialorder %v2781, 0.0
      %v4128 = vand.u32 %v2781, 2147483648
      %v4129 = vsel %vm4127, %v4128, %v4126
      %v4130 = vrsqrt.pop %v2782
      %v4131 = vmul.f32 %v2782, %v4130
      %vm4132 = vcmp.eq.f32.partialorder %v2782, inf
      %v4133 = vsel %vm4132, %v2782, %v4131
      %vm4134 = vcmp.eq.f32.partialorder %v2782, 0.0
      %v4135 = vand.u32 %v2782, 2147483648
      %v4136 = vsel %vm4134, %v4135, %v4133
      %v4137 = vrsqrt.pop %v2783
      %v4138 = vmul.f32 %v2783, %v4137
      %vm4139 = vcmp.eq.f32.partialorder %v2783, inf
      %v4140 = vsel %vm4139, %v2783, %v4138
      %vm4141 = vcmp.eq.f32.partialorder %v2783, 0.0
      %v4142 = vand.u32 %v2783, 2147483648
      %v4143 = vsel %vm4141, %v4142, %v4140
      %v4144 = vrsqrt.pop %v2784
      %v4145 = vmul.f32 %v2784, %v4144
      %vm4146 = vcmp.eq.f32.partialorder %v2784, inf
      %v4147 = vsel %vm4146, %v2784, %v4145
      %vm4148 = vcmp.eq.f32.partialorder %v2784, 0.0
      %v4149 = vand.u32 %v2784, 2147483648
      %v4150 = vsel %vm4148, %v4149, %v4147
      %v4151 = vrsqrt.pop %v2785
      %v4152 = vmul.f32 %v2785, %v4151
      %vm4153 = vcmp.eq.f32.partialorder %v2785, inf
      %v4154 = vsel %vm4153, %v2785, %v4152
      %vm4155 = vcmp.eq.f32.partialorder %v2785, 0.0
      %v4156 = vand.u32 %v2785, 2147483648
      %v4157 = vsel %vm4155, %v4156, %v4154
      %v4158 = vrsqrt.pop %v2786
      %v4159 = vmul.f32 %v2786, %v4158
      %vm4160 = vcmp.eq.f32.partialorder %v2786, inf
      %v4161 = vsel %vm4160, %v2786, %v4159
      %vm4162 = vcmp.eq.f32.partialorder %v2786, 0.0
      %v4163 = vand.u32 %v2786, 2147483648
      %v4164 = vsel %vm4162, %v4163, %v4161
      %v4165 = vrsqrt.pop %v2787
      %v4166 = vmul.f32 %v2787, %v4165
      %vm4167 = vcmp.eq.f32.partialorder %v2787, inf
      %v4168 = vsel %vm4167, %v2787, %v4166
      %vm4169 = vcmp.eq.f32.partialorder %v2787, 0.0
      %v4170 = vand.u32 %v2787, 2147483648
      %v4171 = vsel %vm4169, %v4170, %v4168
      %v4172 = vrsqrt.pop %v2788
      %v4173 = vmul.f32 %v2788, %v4172
      %vm4174 = vcmp.eq.f32.partialorder %v2788, inf
      %v4175 = vsel %vm4174, %v2788, %v4173
      %vm4176 = vcmp.eq.f32.partialorder %v2788, 0.0
      %v4177 = vand.u32 %v2788, 2147483648
      %v4178 = vsel %vm4176, %v4177, %v4175
      %v4179 = vrsqrt.pop %v2789
      %v4180 = vmul.f32 %v2789, %v4179
      %vm4181 = vcmp.eq.f32.partialorder %v2789, inf
      %v4182 = vsel %vm4181, %v2789, %v4180
      %vm4183 = vcmp.eq.f32.partialorder %v2789, 0.0
      %v4184 = vand.u32 %v2789, 2147483648
      %v4185 = vsel %vm4183, %v4184, %v4182
      %v4186 = vrsqrt.pop %v2790
      %v4187 = vmul.f32 %v2790, %v4186
      %vm4188 = vcmp.eq.f32.partialorder %v2790, inf
      %v4189 = vsel %vm4188, %v2790, %v4187
      %vm4190 = vcmp.eq.f32.partialorder %v2790, 0.0
      %v4191 = vand.u32 %v2790, 2147483648
      %v4192 = vsel %vm4190, %v4191, %v4189
      %v4193 = vrsqrt.pop %v2791
      %v4194 = vmul.f32 %v2791, %v4193
      %vm4195 = vcmp.eq.f32.partialorder %v2791, inf
      %v4196 = vsel %vm4195, %v2791, %v4194
      %vm4197 = vcmp.eq.f32.partialorder %v2791, 0.0
      %v4198 = vand.u32 %v2791, 2147483648
      %v4199 = vsel %vm4197, %v4198, %v4196
      %v4200 = vrsqrt.pop %v2792
      %v4201 = vmul.f32 %v2792, %v4200
      %vm4202 = vcmp.eq.f32.partialorder %v2792, inf
      %v4203 = vsel %vm4202, %v2792, %v4201
      %vm4204 = vcmp.eq.f32.partialorder %v2792, 0.0
      %v4205 = vand.u32 %v2792, 2147483648
      %v4206 = vsel %vm4204, %v4205, %v4203
      %v4207 = vrsqrt.pop %v2793
      %v4208 = vmul.f32 %v2793, %v4207
      %vm4209 = vcmp.eq.f32.partialorder %v2793, inf
      %v4210 = vsel %vm4209, %v2793, %v4208
      %vm4211 = vcmp.eq.f32.partialorder %v2793, 0.0
      %v4212 = vand.u32 %v2793, 2147483648
      %v4213 = vsel %vm4211, %v4212, %v4210
      %v4214 = vrsqrt.pop %v2794
      %v4215 = vmul.f32 %v2794, %v4214
      %vm4216 = vcmp.eq.f32.partialorder %v2794, inf
      %v4217 = vsel %vm4216, %v2794, %v4215
      %vm4218 = vcmp.eq.f32.partialorder %v2794, 0.0
      %v4219 = vand.u32 %v2794, 2147483648
      %v4220 = vsel %vm4218, %v4219, %v4217
      %v4221 = vrsqrt.pop %v2795
      %v4222 = vmul.f32 %v2795, %v4221
      %vm4223 = vcmp.eq.f32.partialorder %v2795, inf
      %v4224 = vsel %vm4223, %v2795, %v4222
      %vm4225 = vcmp.eq.f32.partialorder %v2795, 0.0
      %v4226 = vand.u32 %v2795, 2147483648
      %v4227 = vsel %vm4225, %v4226, %v4224
      %v4228 = vrsqrt.pop %v2796
      %v4229 = vmul.f32 %v2796, %v4228
      %vm4230 = vcmp.eq.f32.partialorder %v2796, inf
      %v4231 = vsel %vm4230, %v2796, %v4229
      %vm4232 = vcmp.eq.f32.partialorder %v2796, 0.0
      %v4233 = vand.u32 %v2796, 2147483648
      %v4234 = vsel %vm4232, %v4233, %v4231
      %v4235 = vrsqrt.pop %v2797
      %v4236 = vmul.f32 %v2797, %v4235
      %vm4237 = vcmp.eq.f32.partialorder %v2797, inf
      %v4238 = vsel %vm4237, %v2797, %v4236
      %vm4239 = vcmp.eq.f32.partialorder %v2797, 0.0
      %v4240 = vand.u32 %v2797, 2147483648
      %v4241 = vsel %vm4239, %v4240, %v4238
      %v4242 = vrsqrt.pop %v2798
      %v4243 = vmul.f32 %v2798, %v4242
      %vm4244 = vcmp.eq.f32.partialorder %v2798, inf
      %v4245 = vsel %vm4244, %v2798, %v4243
      %vm4246 = vcmp.eq.f32.partialorder %v2798, 0.0
      %v4247 = vand.u32 %v2798, 2147483648
      %v4248 = vsel %vm4246, %v4247, %v4245
      %v4249 = vrsqrt.pop %v2799
      %v4250 = vmul.f32 %v2799, %v4249
      %vm4251 = vcmp.eq.f32.partialorder %v2799, inf
      %v4252 = vsel %vm4251, %v2799, %v4250
      %vm4253 = vcmp.eq.f32.partialorder %v2799, 0.0
      %v4254 = vand.u32 %v2799, 2147483648
      %v4255 = vsel %vm4253, %v4254, %v4252
      %v4256 = vmax.f32 %v2806, 0.0
      %v4257 = vmax.f32 %v2813, 0.0
      %v4258 = vmax.f32 %v2820, 0.0
      %v4259 = vmax.f32 %v2827, 0.0
      %v4260 = vmax.f32 %v2834, 0.0
      %v4261 = vmax.f32 %v2841, 0.0
      %v4262 = vmax.f32 %v2848, 0.0
      %v4263 = vmax.f32 %v2855, 0.0
      %v4264 = vmax.f32 %v2862, 0.0
      %v4265 = vmax.f32 %v2869, 0.0
      %v4266 = vmax.f32 %v2876, 0.0
      %v4267 = vmax.f32 %v2883, 0.0
      %v4268 = vmax.f32 %v2890, 0.0
      %v4269 = vmax.f32 %v2897, 0.0
      %v4270 = vmax.f32 %v2904, 0.0
      %v4271 = vmax.f32 %v2911, 0.0
      %v4272 = vmax.f32 %v2918, 0.0
      %v4273 = vmax.f32 %v2925, 0.0
      %v4274 = vmax.f32 %v2932, 0.0
      %v4275 = vmax.f32 %v2939, 0.0
      %v4276 = vmax.f32 %v2946, 0.0
      %v4277 = vmax.f32 %v2953, 0.0
      %v4278 = vmax.f32 %v2960, 0.0
      %v4279 = vmax.f32 %v2967, 0.0
      %v4280 = vmax.f32 %v2974, 0.0
      %v4281 = vmax.f32 %v2981, 0.0
      %v4282 = vmax.f32 %v2988, 0.0
      %v4283 = vmax.f32 %v2995, 0.0
      %v4284 = vmax.f32 %v3002, 0.0
      %v4285 = vmax.f32 %v3009, 0.0
      %v4286 = vmax.f32 %v3016, 0.0
      %v4287 = vmax.f32 %v3023, 0.0
      %v4288 = vmax.f32 %v3030, 0.0
      %v4289 = vmax.f32 %v3037, 0.0
      %v4290 = vmax.f32 %v3044, 0.0
      %v4291 = vmax.f32 %v3051, 0.0
      %v4292 = vmax.f32 %v3058, 0.0
      %v4293 = vmax.f32 %v3065, 0.0
      %v4294 = vmax.f32 %v3072, 0.0
      %v4295 = vmax.f32 %v3079, 0.0
      %v4296 = vmax.f32 %v3086, 0.0
      %v4297 = vmax.f32 %v3093, 0.0
      %v4298 = vmax.f32 %v3100, 0.0
      %v4299 = vmax.f32 %v3107, 0.0
      %v4300 = vmax.f32 %v3114, 0.0
      %v4301 = vmax.f32 %v3121, 0.0
      %v4302 = vmax.f32 %v3128, 0.0
      %v4303 = vmax.f32 %v3135, 0.0
      %v4304 = vmax.f32 %v3142, 0.0
      %v4305 = vmax.f32 %v3149, 0.0
      %v4306 = vmax.f32 %v3156, 0.0
      %v4307 = vmax.f32 %v3163, 0.0
      %v4308 = vmax.f32 %v3170, 0.0
      %v4309 = vmax.f32 %v3177, 0.0
      %v4310 = vmax.f32 %v3184, 0.0
      %v4311 = vmax.f32 %v3191, 0.0
      %v4312 = vmax.f32 %v3198, 0.0
      %v4313 = vmax.f32 %v3205, 0.0
      %v4314 = vmax.f32 %v3212, 0.0
      %v4315 = vmax.f32 %v3219, 0.0
      %v4316 = vmax.f32 %v3226, 0.0
      %v4317 = vmax.f32 %v3233, 0.0
      %v4318 = vmax.f32 %v3240, 0.0
      %v4319 = vmax.f32 %v3247, 0.0
      %v4320 = vmax.f32 %v3254, 0.0
      %v4321 = vmax.f32 %v3261, 0.0
      %v4322 = vmax.f32 %v3268, 0.0
      %v4323 = vmax.f32 %v3275, 0.0
      %v4324 = vmax.f32 %v3282, 0.0
      %v4325 = vmax.f32 %v3289, 0.0
      %v4326 = vmax.f32 %v3296, 0.0
      %v4327 = vmax.f32 %v3303, 0.0
      %v4328 = vmax.f32 %v3310, 0.0
      %v4329 = vmax.f32 %v3317, 0.0
      %v4330 = vmax.f32 %v3324, 0.0
      %v4331 = vmax.f32 %v3331, 0.0
      %v4332 = vmax.f32 %v3338, 0.0
      %v4333 = vmax.f32 %v3345, 0.0
      %v4334 = vmax.f32 %v3352, 0.0
      %v4335 = vmax.f32 %v3359, 0.0
      %v4336 = vmax.f32 %v3366, 0.0
      %v4337 = vmax.f32 %v3373, 0.0
      %v4338 = vmax.f32 %v3380, 0.0
      %v4339 = vmax.f32 %v3387, 0.0
      %v4340 = vmax.f32 %v3394, 0.0
      %v4341 = vmax.f32 %v3401, 0.0
      %v4342 = vmax.f32 %v3408, 0.0
      %v4343 = vmax.f32 %v3415, 0.0
      %v4344 = vmax.f32 %v3422, 0.0
      %v4345 = vmax.f32 %v3429, 0.0
      %v4346 = vmax.f32 %v3436, 0.0
      %v4347 = vmax.f32 %v3443, 0.0
      %v4348 = vmax.f32 %v3450, 0.0
      %v4349 = vmax.f32 %v3457, 0.0
      %v4350 = vmax.f32 %v3464, 0.0
      %v4351 = vmax.f32 %v3471, 0.0
      %v4352 = vmax.f32 %v3478, 0.0
      %v4353 = vmax.f32 %v3485, 0.0
      %v4354 = vmax.f32 %v3492, 0.0
      %v4355 = vmax.f32 %v3499, 0.0
      %v4356 = vmax.f32 %v3506, 0.0
      %v4357 = vmax.f32 %v3513, 0.0
      %v4358 = vmax.f32 %v3520, 0.0
      %v4359 = vmax.f32 %v3527, 0.0
      %v4360 = vmax.f32 %v3534, 0.0
      %v4361 = vmax.f32 %v3541, 0.0
      %v4362 = vmax.f32 %v3548, 0.0
      %v4363 = vmax.f32 %v3555, 0.0
      %v4364 = vmax.f32 %v3562, 0.0
      %v4365 = vmax.f32 %v3569, 0.0
      %v4366 = vmax.f32 %v3576, 0.0
      %v4367 = vmax.f32 %v3583, 0.0
      %v4368 = vmax.f32 %v3590, 0.0
      %v4369 = vmax.f32 %v3597, 0.0
      %v4370 = vmax.f32 %v3604, 0.0
      %v4371 = vmax.f32 %v3611, 0.0
      %v4372 = vmax.f32 %v3618, 0.0
      %v4373 = vmax.f32 %v3625, 0.0
      %v4374 = vmax.f32 %v3632, 0.0
      %v4375 = vmax.f32 %v3639, 0.0
      %v4376 = vmax.f32 %v3646, 0.0
      %v4377 = vmax.f32 %v3653, 0.0
      %v4378 = vmax.f32 %v3660, 0.0
      %v4379 = vmax.f32 %v3667, 0.0
      %v4380 = vmax.f32 %v3674, 0.0
      %v4381 = vmax.f32 %v3681, 0.0
      %v4382 = vmax.f32 %v3688, 0.0
      %v4383 = vmax.f32 %v3695, 0.0
      %v4384 = vmax.f32 %v3702, 0.0
      %v4385 = vmax.f32 %v3709, 0.0
      %v4386 = vmax.f32 %v3716, 0.0
      %v4387 = vmax.f32 %v3723, 0.0
      %v4388 = vmax.f32 %v3730, 0.0
      %v4389 = vmax.f32 %v3737, 0.0
      %v4390 = vmax.f32 %v3744, 0.0
      %v4391 = vmax.f32 %v3751, 0.0
      %v4392 = vmax.f32 %v3758, 0.0
      %v4393 = vmax.f32 %v3765, 0.0
      %v4394 = vmax.f32 %v3772, 0.0
      %v4395 = vmax.f32 %v3779, 0.0
      %v4396 = vmax.f32 %v3786, 0.0
      %v4397 = vmax.f32 %v3793, 0.0
      %v4398 = vmax.f32 %v3800, 0.0
      %v4399 = vmax.f32 %v3807, 0.0
      %v4400 = vmax.f32 %v3814, 0.0
      %v4401 = vmax.f32 %v3821, 0.0
      %v4402 = vmax.f32 %v3828, 0.0
      %v4403 = vmax.f32 %v3835, 0.0
      %v4404 = vmax.f32 %v3842, 0.0
      %v4405 = vmax.f32 %v3849, 0.0
      %v4406 = vmax.f32 %v3856, 0.0
      %v4407 = vmax.f32 %v3863, 0.0
      %v4408 = vmax.f32 %v3870, 0.0
      %v4409 = vmax.f32 %v3877, 0.0
      %v4410 = vmax.f32 %v3884, 0.0
      %v4411 = vmax.f32 %v3891, 0.0
      %v4412 = vmax.f32 %v3898, 0.0
      %v4413 = vmax.f32 %v3905, 0.0
      %v4414 = vmax.f32 %v3912, 0.0
      %v4415 = vmax.f32 %v3919, 0.0
      %v4416 = vmax.f32 %v3926, 0.0
      %v4417 = vmax.f32 %v3933, 0.0
      %v4418 = vmax.f32 %v3940, 0.0
      %v4419 = vmax.f32 %v3947, 0.0
      %v4420 = vmax.f32 %v3954, 0.0
      %v4421 = vmax.f32 %v3961, 0.0
      %v4422 = vmax.f32 %v3968, 0.0
      %v4423 = vmax.f32 %v3975, 0.0
      %v4424 = vmax.f32 %v3982, 0.0
      %v4425 = vmax.f32 %v3989, 0.0
      %v4426 = vmax.f32 %v3996, 0.0
      %v4427 = vmax.f32 %v4003, 0.0
      %v4428 = vmax.f32 %v4010, 0.0
      %v4429 = vmax.f32 %v4017, 0.0
      %v4430 = vmax.f32 %v4024, 0.0
      %v4431 = vmax.f32 %v4031, 0.0
      %v4432 = vmax.f32 %v4038, 0.0
      %v4433 = vmax.f32 %v4045, 0.0
      %v4434 = vmax.f32 %v4052, 0.0
      %v4435 = vmax.f32 %v4059, 0.0
      %v4436 = vmax.f32 %v4066, 0.0
      %v4437 = vmax.f32 %v4073, 0.0
      %v4438 = vmax.f32 %v4080, 0.0
      %v4439 = vmax.f32 %v4087, 0.0
      %v4440 = vmax.f32 %v4094, 0.0
      %v4441 = vmax.f32 %v4101, 0.0
      %v4442 = vmax.f32 %v4108, 0.0
      %v4443 = vmax.f32 %v4115, 0.0
      %v4444 = vmax.f32 %v4122, 0.0
      %v4445 = vmax.f32 %v4129, 0.0
      %v4446 = vmax.f32 %v4136, 0.0
      %v4447 = vmax.f32 %v4143, 0.0
      %v4448 = vmax.f32 %v4150, 0.0
      %v4449 = vmax.f32 %v4157, 0.0
      %v4450 = vmax.f32 %v4164, 0.0
      %v4451 = vmax.f32 %v4171, 0.0
      %v4452 = vmax.f32 %v4178, 0.0
      %v4453 = vmax.f32 %v4185, 0.0
      %v4454 = vmax.f32 %v4192, 0.0
      %v4455 = vmax.f32 %v4199, 0.0
      %v4456 = vmax.f32 %v4206, 0.0
      %v4457 = vmax.f32 %v4213, 0.0
      %v4458 = vmax.f32 %v4220, 0.0
      %v4459 = vmax.f32 %v4227, 0.0
      %v4460 = vmax.f32 %v4234, 0.0
      %v4461 = vmax.f32 %v4241, 0.0
      %v4462 = vmax.f32 %v4248, 0.0
      %v4463 = vmax.f32 %v4255, 0.0
      %v4464 = vmin.f32 %v4256, 10.0
      %v4465 = vmin.f32 %v4257, 10.0
      %v4466 = vmin.f32 %v4258, 10.0
      %v4467 = vmin.f32 %v4259, 10.0
      %v4468 = vmin.f32 %v4260, 10.0
      %v4469 = vmin.f32 %v4261, 10.0
      %v4470 = vmin.f32 %v4262, 10.0
      %v4471 = vmin.f32 %v4263, 10.0
      %v4472 = vmin.f32 %v4264, 10.0
      %v4473 = vmin.f32 %v4265, 10.0
      %v4474 = vmin.f32 %v4266, 10.0
      %v4475 = vmin.f32 %v4267, 10.0
      %v4476 = vmin.f32 %v4268, 10.0
      %v4477 = vmin.f32 %v4269, 10.0
      %v4478 = vmin.f32 %v4270, 10.0
      %v4479 = vmin.f32 %v4271, 10.0
      %v4480 = vmin.f32 %v4272, 10.0
      %v4481 = vmin.f32 %v4273, 10.0
      %v4482 = vmin.f32 %v4274, 10.0
      %v4483 = vmin.f32 %v4275, 10.0
      %v4484 = vmin.f32 %v4276, 10.0
      %v4485 = vmin.f32 %v4277, 10.0
      %v4486 = vmin.f32 %v4278, 10.0
      %v4487 = vmin.f32 %v4279, 10.0
      %v4488 = vmin.f32 %v4280, 10.0
      %v4489 = vmin.f32 %v4281, 10.0
      %v4490 = vmin.f32 %v4282, 10.0
      %v4491 = vmin.f32 %v4283, 10.0
      %v4492 = vmin.f32 %v4284, 10.0
      %v4493 = vmin.f32 %v4285, 10.0
      %v4494 = vmin.f32 %v4286, 10.0
      %v4495 = vmin.f32 %v4287, 10.0
      %v4496 = vmin.f32 %v4288, 10.0
      %v4497 = vmin.f32 %v4289, 10.0
      %v4498 = vmin.f32 %v4290, 10.0
      %v4499 = vmin.f32 %v4291, 10.0
      %v4500 = vmin.f32 %v4292, 10.0
      %v4501 = vmin.f32 %v4293, 10.0
      %v4502 = vmin.f32 %v4294, 10.0
      %v4503 = vmin.f32 %v4295, 10.0
      %v4504 = vmin.f32 %v4296, 10.0
      %v4505 = vmin.f32 %v4297, 10.0
      %v4506 = vmin.f32 %v4298, 10.0
      %v4507 = vmin.f32 %v4299, 10.0
      %v4508 = vmin.f32 %v4300, 10.0
      %v4509 = vmin.f32 %v4301, 10.0
      %v4510 = vmin.f32 %v4302, 10.0
      %v4511 = vmin.f32 %v4303, 10.0
      %v4512 = vmin.f32 %v4304, 10.0
      %v4513 = vmin.f32 %v4305, 10.0
      %v4514 = vmin.f32 %v4306, 10.0
      %v4515 = vmin.f32 %v4307, 10.0
      %v4516 = vmin.f32 %v4308, 10.0
      %v4517 = vmin.f32 %v4309, 10.0
      %v4518 = vmin.f32 %v4310, 10.0
      %v4519 = vmin.f32 %v4311, 10.0
      %v4520 = vmin.f32 %v4312, 10.0
      %v4521 = vmin.f32 %v4313, 10.0
      %v4522 = vmin.f32 %v4314, 10.0
      %v4523 = vmin.f32 %v4315, 10.0
      %v4524 = vmin.f32 %v4316, 10.0
      %v4525 = vmin.f32 %v4317, 10.0
      %v4526 = vmin.f32 %v4318, 10.0
      %v4527 = vmin.f32 %v4319, 10.0
      %v4528 = vmin.f32 %v4320, 10.0
      %v4529 = vmin.f32 %v4321, 10.0
      %v4530 = vmin.f32 %v4322, 10.0
      %v4531 = vmin.f32 %v4323, 10.0
      %v4532 = vmin.f32 %v4324, 10.0
      %v4533 = vmin.f32 %v4325, 10.0
      %v4534 = vmin.f32 %v4326, 10.0
      %v4535 = vmin.f32 %v4327, 10.0
      %v4536 = vmin.f32 %v4328, 10.0
      %v4537 = vmin.f32 %v4329, 10.0
      %v4538 = vmin.f32 %v4330, 10.0
      %v4539 = vmin.f32 %v4331, 10.0
      %v4540 = vmin.f32 %v4332, 10.0
      %v4541 = vmin.f32 %v4333, 10.0
      %v4542 = vmin.f32 %v4334, 10.0
      %v4543 = vmin.f32 %v4335, 10.0
      %v4544 = vmin.f32 %v4336, 10.0
      %v4545 = vmin.f32 %v4337, 10.0
      %v4546 = vmin.f32 %v4338, 10.0
      %v4547 = vmin.f32 %v4339, 10.0
      %v4548 = vmin.f32 %v4340, 10.0
      %v4549 = vmin.f32 %v4341, 10.0
      %v4550 = vmin.f32 %v4342, 10.0
      %v4551 = vmin.f32 %v4343, 10.0
      %v4552 = vmin.f32 %v4344, 10.0
      %v4553 = vmin.f32 %v4345, 10.0
      %v4554 = vmin.f32 %v4346, 10.0
      %v4555 = vmin.f32 %v4347, 10.0
      %v4556 = vmin.f32 %v4348, 10.0
      %v4557 = vmin.f32 %v4349, 10.0
      %v4558 = vmin.f32 %v4350, 10.0
      %v4559 = vmin.f32 %v4351, 10.0
      %v4560 = vmin.f32 %v4352, 10.0
      %v4561 = vmin.f32 %v4353, 10.0
      %v4562 = vmin.f32 %v4354, 10.0
      %v4563 = vmin.f32 %v4355, 10.0
      %v4564 = vmin.f32 %v4356, 10.0
      %v4565 = vmin.f32 %v4357, 10.0
      %v4566 = vmin.f32 %v4358, 10.0
      %v4567 = vmin.f32 %v4359, 10.0
      %v4568 = vmin.f32 %v4360, 10.0
      %v4569 = vmin.f32 %v4361, 10.0
      %v4570 = vmin.f32 %v4362, 10.0
      %v4571 = vmin.f32 %v4363, 10.0
      %v4572 = vmin.f32 %v4364, 10.0
      %v4573 = vmin.f32 %v4365, 10.0
      %v4574 = vmin.f32 %v4366, 10.0
      %v4575 = vmin.f32 %v4367, 10.0
      %v4576 = vmin.f32 %v4368, 10.0
      %v4577 = vmin.f32 %v4369, 10.0
      %v4578 = vmin.f32 %v4370, 10.0
      %v4579 = vmin.f32 %v4371, 10.0
      %v4580 = vmin.f32 %v4372, 10.0
      %v4581 = vmin.f32 %v4373, 10.0
      %v4582 = vmin.f32 %v4374, 10.0
      %v4583 = vmin.f32 %v4375, 10.0
      %v4584 = vmin.f32 %v4376, 10.0
      %v4585 = vmin.f32 %v4377, 10.0
      %v4586 = vmin.f32 %v4378, 10.0
      %v4587 = vmin.f32 %v4379, 10.0
      %v4588 = vmin.f32 %v4380, 10.0
      %v4589 = vmin.f32 %v4381, 10.0
      %v4590 = vmin.f32 %v4382, 10.0
      %v4591 = vmin.f32 %v4383, 10.0
      %v4592 = vmin.f32 %v4384, 10.0
      %v4593 = vmin.f32 %v4385, 10.0
      %v4594 = vmin.f32 %v4386, 10.0
      %v4595 = vmin.f32 %v4387, 10.0
      %v4596 = vmin.f32 %v4388, 10.0
      %v4597 = vmin.f32 %v4389, 10.0
      %v4598 = vmin.f32 %v4390, 10.0
      %v4599 = vmin.f32 %v4391, 10.0
      %v4600 = vmin.f32 %v4392, 10.0
      %v4601 = vmin.f32 %v4393, 10.0
      %v4602 = vmin.f32 %v4394, 10.0
      %v4603 = vmin.f32 %v4395, 10.0
      %v4604 = vmin.f32 %v4396, 10.0
      %v4605 = vmin.f32 %v4397, 10.0
      %v4606 = vmin.f32 %v4398, 10.0
      %v4607 = vmin.f32 %v4399, 10.0
      %v4608 = vmin.f32 %v4400, 10.0
      %v4609 = vmin.f32 %v4401, 10.0
      %v4610 = vmin.f32 %v4402, 10.0
      %v4611 = vmin.f32 %v4403, 10.0
      %v4612 = vmin.f32 %v4404, 10.0
      %v4613 = vmin.f32 %v4405, 10.0
      %v4614 = vmin.f32 %v4406, 10.0
      %v4615 = vmin.f32 %v4407, 10.0
      %v4616 = vmin.f32 %v4408, 10.0
      %v4617 = vmin.f32 %v4409, 10.0
      %v4618 = vmin.f32 %v4410, 10.0
      %v4619 = vmin.f32 %v4411, 10.0
      %v4620 = vmin.f32 %v4412, 10.0
      %v4621 = vmin.f32 %v4413, 10.0
      %v4622 = vmin.f32 %v4414, 10.0
      %v4623 = vmin.f32 %v4415, 10.0
      %v4624 = vmin.f32 %v4416, 10.0
      %v4625 = vmin.f32 %v4417, 10.0
      %v4626 = vmin.f32 %v4418, 10.0
      %v4627 = vmin.f32 %v4419, 10.0
      %v4628 = vmin.f32 %v4420, 10.0
      %v4629 = vmin.f32 %v4421, 10.0
      %v4630 = vmin.f32 %v4422, 10.0
      %v4631 = vmin.f32 %v4423, 10.0
      %v4632 = vmin.f32 %v4424, 10.0
      %v4633 = vmin.f32 %v4425, 10.0
      %v4634 = vmin.f32 %v4426, 10.0
      %v4635 = vmin.f32 %v4427, 10.0
      %v4636 = vmin.f32 %v4428, 10.0
      %v4637 = vmin.f32 %v4429, 10.0
      %v4638 = vmin.f32 %v4430, 10.0
      %v4639 = vmin.f32 %v4431, 10.0
      %v4640 = vmin.f32 %v4432, 10.0
      %v4641 = vmin.f32 %v4433, 10.0
      %v4642 = vmin.f32 %v4434, 10.0
      %v4643 = vmin.f32 %v4435, 10.0
      %v4644 = vmin.f32 %v4436, 10.0
      %v4645 = vmin.f32 %v4437, 10.0
      %v4646 = vmin.f32 %v4438, 10.0
      %v4647 = vmin.f32 %v4439, 10.0
      %v4648 = vmin.f32 %v4440, 10.0
      %v4649 = vmin.f32 %v4441, 10.0
      %v4650 = vmin.f32 %v4442, 10.0
      %v4651 = vmin.f32 %v4443, 10.0
      %v4652 = vmin.f32 %v4444, 10.0
      %v4653 = vmin.f32 %v4445, 10.0
      %v4654 = vmin.f32 %v4446, 10.0
      %v4655 = vmin.f32 %v4447, 10.0
      %v4656 = vmin.f32 %v4448, 10.0
      %v4657 = vmin.f32 %v4449, 10.0
      %v4658 = vmin.f32 %v4450, 10.0
      %v4659 = vmin.f32 %v4451, 10.0
      %v4660 = vmin.f32 %v4452, 10.0
      %v4661 = vmin.f32 %v4453, 10.0
      %v4662 = vmin.f32 %v4454, 10.0
      %v4663 = vmin.f32 %v4455, 10.0
      %v4664 = vmin.f32 %v4456, 10.0
      %v4665 = vmin.f32 %v4457, 10.0
      %v4666 = vmin.f32 %v4458, 10.0
      %v4667 = vmin.f32 %v4459, 10.0
      %v4668 = vmin.f32 %v4460, 10.0
      %v4669 = vmin.f32 %v4461, 10.0
      %v4670 = vmin.f32 %v4462, 10.0
      %v4671 = vmin.f32 %v4463, 10.0
      %v4672 = vld [vmem:[%s2] sm:$0xff]
      %v4673 = vld [vmem:[%s2 + $0x8] sm:$0xff]
      %v4674 = vld [vmem:[%s2 + $0x10] sm:$0xff]
      %v4675 = vld [vmem:[%s2 + $0x18] sm:$0xff]
      %v4676 = vld [vmem:[%s2 + $0x20] sm:$0xff]
      %v4677 = vld [vmem:[%s2 + $0x28] sm:$0xff]
      %v4678 = vld [vmem:[%s2 + $0x30] sm:$0xff]
      %v4679 = vld [vmem:[%s2 + $0x38] sm:$0xff]
      %v4680 = vld [vmem:[%s2 + $0x40] sm:$0xff]
      %v4681 = vld [vmem:[%s2 + $0x48] sm:$0xff]
      %v4682 = vld [vmem:[%s2 + $0x50] sm:$0xff]
      %v4683 = vld [vmem:[%s2 + $0x58] sm:$0xff]
      %v4684 = vld [vmem:[%s2 + $0x60] sm:$0xff]
      %v4685 = vld [vmem:[%s2 + $0x68] sm:$0xff]
      %v4686 = vld [vmem:[%s2 + $0x70] sm:$0xff]
      %v4687 = vld [vmem:[%s2 + $0x78] sm:$0xff]
      %v4688 = vld [vmem:[%s2 + $0x80] sm:$0xff]
      %v4689 = vld [vmem:[%s2 + $0x88] sm:$0xff]
      %v4690 = vld [vmem:[%s2 + $0x90] sm:$0xff]
      %v4691 = vld [vmem:[%s2 + $0x98] sm:$0xff]
      %v4692 = vld [vmem:[%s2 + $0xa0] sm:$0xff]
      %v4693 = vld [vmem:[%s2 + $0xa8] sm:$0xff]
      %v4694 = vld [vmem:[%s2 + $0xb0] sm:$0xff]
      %v4695 = vld [vmem:[%s2 + $0xb8] sm:$0xff]
      %v4696 = vld [vmem:[%s2 + $0xc0] sm:$0xff]
      %v4697 = vld [vmem:[%s2 + $0xc8] sm:$0xff]
      %v4698 = vld [vmem:[%s2 + $0xd0] sm:$0xff]
      %v4699 = vld [vmem:[%s2 + $0xd8] sm:$0xff]
      %v4700 = vld [vmem:[%s2 + $0xe0] sm:$0xff]
      %v4701 = vld [vmem:[%s2 + $0xe8] sm:$0xff]
      %v4702 = vld [vmem:[%s2 + $0xf0] sm:$0xff]
      %v4703 = vld [vmem:[%s2 + $0xf8] sm:$0xff]
      %v4704 = vld [vmem:[%s2 + $0x100] sm:$0xff]
      %v4705 = vld [vmem:[%s2 + $0x108] sm:$0xff]
      %v4706 = vld [vmem:[%s2 + $0x110] sm:$0xff]
      %v4707 = vld [vmem:[%s2 + $0x118] sm:$0xff]
      %v4708 = vld [vmem:[%s2 + $0x120] sm:$0xff]
      %v4709 = vld [vmem:[%s2 + $0x128] sm:$0xff]
      %v4710 = vld [vmem:[%s2 + $0x130] sm:$0xff]
      %v4711 = vld [vmem:[%s2 + $0x138] sm:$0xff]
      %v4712 = vld [vmem:[%s2 + $0x140] sm:$0xff]
      %v4713 = vld [vmem:[%s2 + $0x148] sm:$0xff]
      %v4714 = vld [vmem:[%s2 + $0x150] sm:$0xff]
      %v4715 = vld [vmem:[%s2 + $0x158] sm:$0xff]
      %v4716 = vld [vmem:[%s2 + $0x160] sm:$0xff]
      %v4717 = vld [vmem:[%s2 + $0x168] sm:$0xff]
      %v4718 = vld [vmem:[%s2 + $0x170] sm:$0xff]
      %v4719 = vld [vmem:[%s2 + $0x178] sm:$0xff]
      %v4720 = vld [vmem:[%s2 + $0x180] sm:$0xff]
      %v4721 = vld [vmem:[%s2 + $0x188] sm:$0xff]
      %v4722 = vld [vmem:[%s2 + $0x190] sm:$0xff]
      %v4723 = vld [vmem:[%s2 + $0x198] sm:$0xff]
      %4724 = vmatprep.subr.mxu0 0.0
      %4725 = vmatpush1.msra.mxu0 %v4464
      %4726 = vmatprep.subr.mxu0 0.0
      %4727 = vmatpush1.msra.mxu0 %v4465
      %4728 = vmatprep.subr.mxu0 0.0
      %4729 = vmatpush1.msra.mxu0 %v4466
      %4730 = vmatprep.subr.mxu0 0.0
      %4731 = vmatpush1.msra.mxu0 %v4467
      %4732 = vmatprep.subr.mxu0 0.0
      %4733 = vmatpush1.msra.mxu0 %v4468
      %4734 = vmatprep.subr.mxu0 0.0
      %4735 = vmatpush1.msra.mxu0 %v4469
      %4736 = vmatprep.subr.mxu0 0.0
      %4737 = vmatpush1.msra.mxu0 %v4470
      %4738 = vmatprep.subr.mxu0 0.0
      %4739 = vmatpush1.msra.mxu0 %v4471
      %4740 = vmatprep.subr.mxu0 0.0
      %4741 = vmatpush1.msra.mxu0 %v4472
      %4742 = vmatprep.subr.mxu0 0.0
      %4743 = vmatpush1.msra.mxu0 %v4473
      %4744 = vmatprep.subr.mxu0 0.0
      %4745 = vmatpush1.msra.mxu0 %v4474
      %4746 = vmatprep.subr.mxu0 0.0
      %4747 = vmatpush1.msra.mxu0 %v4475
      %4748 = vmatprep.subr.mxu0 0.0
      %4749 = vmatpush1.msra.mxu0 %v4476
      %4750 = vmatprep.subr.mxu0 0.0
      %4751 = vmatpush1.msra.mxu0 %v4477
      %4752 = vmatprep.subr.mxu0 0.0
      %4753 = vmatpush1.msra.mxu0 %v4478
      %4754 = vmatprep.subr.mxu0 0.0
      %4755 = vmatpush1.msra.mxu0 %v4479
      %4756 = vmatprep.subr.mxu0 0.0
      %4757 = vmatpush1.msra.mxu0 %v4480
      %4758 = vmatprep.subr.mxu0 0.0
      %4759 = vmatpush1.msra.mxu0 %v4481
      %4760 = vmatprep.subr.mxu0 0.0
      %4761 = vmatpush1.msra.mxu0 %v4482
      %4762 = vmatprep.subr.mxu0 0.0
      %4763 = vmatpush1.msra.mxu0 %v4483
      %4764 = vmatprep.subr.mxu0 0.0
      %4765 = vmatpush1.msra.mxu0 %v4484
      %4766 = vmatprep.subr.mxu0 0.0
      %4767 = vmatpush1.msra.mxu0 %v4485
      %4768 = vmatprep.subr.mxu0 0.0
      %4769 = vmatpush1.msra.mxu0 %v4486
      %4770 = vmatprep.subr.mxu0 0.0
      %4771 = vmatpush1.msra.mxu0 %v4487
      %4772 = vmatprep.subr.mxu0 0.0
      %4773 = vmatpush1.msra.mxu0 %v4488
      %4774 = vmatprep.subr.mxu0 0.0
      %4775 = vmatpush1.msra.mxu0 %v4489
      %4776 = vmatprep.subr.mxu0 0.0
      %4777 = vmatpush1.msra.mxu0 %v4490
      %4778 = vmatprep.subr.mxu0 0.0
      %4779 = vmatpush1.msra.mxu0 %v4491
      %4780 = vmatprep.subr.mxu0 0.0
      %4781 = vmatpush1.msra.mxu0 %v4492
      %4782 = vmatprep.subr.mxu0 0.0
      %4783 = vmatpush1.msra.mxu0 %v4493
      %4784 = vmatprep.subr.mxu0 0.0
      %4785 = vmatpush1.msra.mxu0 %v4494
      %4786 = vmatprep.subr.mxu0 0.0
      %4787 = vmatpush1.msra.mxu0 %v4495
      %4788 = vmatprep.mubr.f32.mxu0 %v4673
      %4789 = vmatmul.mubr.f32.gmra.mrb[0].mxu0 %v4672
      %v4790 = vpop.f32.mrb[0].mxu0
      %v4791 = vadd.f32 0.0, %v4790
      %v4792 = vpop.f32.mrb[0].mxu0
      %4793 = vmatprep.mubr.f32.mxu0 %v4686
      %4794 = vmatmul.mubr.f32.gmra.mrb[0].mxu0 %v4685
      %v4795 = vpop.f32.mrb[0].mxu0
      %v4796 = vadd.f32 0.0, %v4795
      %v4797 = vpop.f32.mrb[0].mxu0
      %4798 = vmatprep.mubr.f32.mxu0 %v4699
      %4799 = vmatmul.mubr.f32.gmra.mrb[0].mxu0 %v4698
      %v4800 = vpop.f32.mrb[0].mxu0
      %v4801 = vadd.f32 0.0, %v4800
      %v4802 = vpop.f32.mrb[0].mxu0
      %4803 = vmatprep.mubr.f32.mxu0 %v4712
      %4804 = vmatmul.mubr.f32.gmra.mrb[0].mxu0 %v4711
      %v4805 = vpop.f32.mrb[0].mxu0
      %v4806 = vadd.f32 0.0, %v4805
      %v4807 = vpop.f32.mrb[0].mxu0
      %4808 = vdwg.mxu0
      %4809 = vmatprep.subr.mxu0 0.0
      %4810 = vmatpush1.msra.mxu0 %v4496
      %4811 = vmatprep.subr.mxu0 0.0
      %4812 = vmatpush1.msra.mxu0 %v4497
      %4813 = vmatprep.subr.mxu0 0.0
      %4814 = vmatpush1.msra.mxu0 %v4498
      %4815 = vmatprep.subr.mxu0 0.0
      %4816 = vmatpush1.msra.mxu0 %v4499
      %4817 = vmatprep.subr.mxu0 0.0
      %4818 = vmatpush1.msra.mxu0 %v4500
      %4819 = vmatprep.subr.mxu0 0.0
      %4820 = vmatpush1.msra.mxu0 %v4501
      %4821 = vmatprep.subr.mxu0 0.0
      %4822 = vmatpush1.msra.mxu0 %v4502
      %4823 = vmatprep.subr.mxu0 0.0
      %4824 = vmatpush1.msra.mxu0 %v4503
      %4825 = vmatprep.subr.mxu0 0.0
      %4826 = vmatpush1.msra.mxu0 %v4504
      %4827 = vmatprep.subr.mxu0 0.0
      %4828 = vmatpush1.msra.mxu0 %v4505
      %4829 = vmatprep.subr.mxu0 0.0
      %4830 = vmatpush1.msra.mxu0 %v4506
      %4831 = vmatprep.subr.mxu0 0.0
      %4832 = vmatpush1.msra.mxu0 %v4507
      %4833 = vmatprep.subr.mxu0 0.0
      %4834 = vmatpush1.msra.mxu0 %v4508
      %4835 = vmatprep.subr.mxu0 0.0
      %4836 = vmatpush1.msra.mxu0 %v4509
      %4837 = vmatprep.subr.mxu0 0.0
      %4838 = vmatpush1.msra.mxu0 %v4510
      %4839 = vmatprep.subr.mxu0 0.0
      %4840 = vmatpush1.msra.mxu0 %v4511
      %4841 = vmatprep.subr.mxu0 0.0
      %4842 = vmatpush1.msra.mxu0 %v4512
      %4843 = vmatprep.subr.mxu0 0.0
      %4844 = vmatpush1.msra.mxu0 %v4513
      %4845 = vmatprep.subr.mxu0 0.0
      %4846 = vmatpush1.msra.mxu0 %v4514
      %4847 = vmatprep.subr.mxu0 0.0
      %4848 = vmatpush1.msra.mxu0 %v4515
      %4849 = vmatprep.subr.mxu0 0.0
      %4850 = vmatpush1.msra.mxu0 %v4516
      %4851 = vmatprep.subr.mxu0 0.0
      %4852 = vmatpush1.msra.mxu0 %v4517
      %4853 = vmatprep.subr.mxu0 0.0
      %4854 = vmatpush1.msra.mxu0 %v4518
      %4855 = vmatprep.subr.mxu0 0.0
      %4856 = vmatpush1.msra.mxu0 %v4519
      %4857 = vmatprep.subr.mxu0 0.0
      %4858 = vmatpush1.msra.mxu0 %v4520
      %4859 = vmatprep.subr.mxu0 0.0
      %4860 = vmatpush1.msra.mxu0 %v4521
      %4861 = vmatprep.subr.mxu0 0.0
      %4862 = vmatpush1.msra.mxu0 %v4522
      %4863 = vmatprep.subr.mxu0 0.0
      %4864 = vmatpush1.msra.mxu0 %v4523
      %4865 = vmatprep.subr.mxu0 0.0
      %4866 = vmatpush1.msra.mxu0 %v4524
      %4867 = vmatprep.subr.mxu0 0.0
      %4868 = vmatpush1.msra.mxu0 %v4525
      %4869 = vmatprep.subr.mxu0 0.0
      %4870 = vmatpush1.msra.mxu0 %v4526
      %4871 = vmatprep.subr.mxu0 0.0
      %4872 = vmatpush1.msra.mxu0 %v4527
      %4873 = vmatprep.mubr.f32.mxu0 %v4675
      %4874 = vmatmul.mubr.f32.gmra.mrb[0].mxu0 %v4674
      %v4875 = vpop.f32.mrb[0].mxu0
      %v4876 = vadd.f32 %v4791, %v4875
      %v4877 = vpop.f32.mrb[0].mxu0
      %4878 = vmatprep.mubr.f32.mxu0 %v4688
      %4879 = vmatmul.mubr.f32.gmra.mrb[0].mxu0 %v4687
      %v4880 = vpop.f32.mrb[0].mxu0
      %v4881 = vadd.f32 %v4796, %v4880
      %v4882 = vpop.f32.mrb[0].mxu0
      %4883 = vmatprep.mubr.f32.mxu0 %v4701
      %4884 = vmatmul.mubr.f32.gmra.mrb[0].mxu0 %v4700
      %v4885 = vpop.f32.mrb[0].mxu0
      %v4886 = vadd.f32 %v4801, %v4885
      %v4887 = vpop.f32.mrb[0].mxu0
      %4888 = vmatprep.mubr.f32.mxu0 %v4714
      %4889 = vmatmul.mubr.f32.gmra.mrb[0].mxu0 %v4713
      %v4890 = vpop.f32.mrb[0].mxu0
      %v4891 = vadd.f32 %v4806, %v4890
      %v4892 = vpop.f32.mrb[0].mxu0
      %4893 = vdwg.mxu0
      %4894 = vmatprep.subr.mxu0 0.0
      %4895 = vmatpush1.msra.mxu0 %v4528
      %4896 = vmatprep.subr.mxu0 0.0
      %4897 = vmatpush1.msra.mxu0 %v4529
      %4898 = vmatprep.subr.mxu0 0.0
      %4899 = vmatpush1.msra.mxu0 %v4530
      %4900 = vmatprep.subr.mxu0 0.0
      %4901 = vmatpush1.msra.mxu0 %v4531
      %4902 = vmatprep.subr.mxu0 0.0
      %4903 = vmatpush1.msra.mxu0 %v4532
      %4904 = vmatprep.subr.mxu0 0.0
      %4905 = vmatpush1.msra.mxu0 %v4533
      %4906 = vmatprep.subr.mxu0 0.0
      %4907 = vmatpush1.msra.mxu0 %v4534
      %4908 = vmatprep.subr.mxu0 0.0
      %4909 = vmatpush1.msra.mxu0 %v4535
      %4910 = vmatprep.subr.mxu0 0.0
      %4911 = vmatpush1.msra.mxu0 %v4536
      %4912 = vmatprep.subr.mxu0 0.0
      %4913 = vmatpush1.msra.mxu0 %v4537
      %4914 = vmatprep.subr.mxu0 0.0
      %4915 = vmatpush1.msra.mxu0 %v4538
      %4916 = vmatprep.subr.mxu0 0.0
      %4917 = vmatpush1.msra.mxu0 %v4539
      %4918 = vmatprep.subr.mxu0 0.0
      %4919 = vmatpush1.msra.mxu0 %v4540
      %4920 = vmatprep.subr.mxu0 0.0
      %4921 = vmatpush1.msra.mxu0 %v4541
      %4922 = vmatprep.subr.mxu0 0.0
      %4923 = vmatpush1.msra.mxu0 %v4542
      %4924 = vmatprep.subr.mxu0 0.0
      %4925 = vmatpush1.msra.mxu0 %v4543
      %4926 = vmatprep.subr.mxu0 0.0
      %4927 = vmatpush1.msra.mxu0 %v4544
      %4928 = vmatprep.subr.mxu0 0.0
      %4929 = vmatpush1.msra.mxu0 %v4545
      %4930 = vmatprep.subr.mxu0 0.0
      %4931 = vmatpush1.msra.mxu0 %v4546
      %4932 = vmatprep.subr.mxu0 0.0
      %4933 = vmatpush1.msra.mxu0 %v4547
      %4934 = vmatprep.subr.mxu0 0.0
      %4935 = vmatpush1.msra.mxu0 %v4548
      %4936 = vmatprep.subr.mxu0 0.0
      %4937 = vmatpush1.msra.mxu0 %v4549
      %4938 = vmatprep.subr.mxu0 0.0
      %4939 = vmatpush1.msra.mxu0 %v4550
      %4940 = vmatprep.subr.mxu0 0.0
      %4941 = vmatpush1.msra.mxu0 %v4551
      %4942 = vmatprep.subr.mxu0 0.0
      %4943 = vmatpush1.msra.mxu0 %v4552
      %4944 = vmatprep.subr.mxu0 0.0
      %4945 = vmatpush1.msra.mxu0 %v4553
      %4946 = vmatprep.subr.mxu0 0.0
      %4947 = vmatpush1.msra.mxu0 %v4554
      %4948 = vmatprep.subr.mxu0 0.0
      %4949 = vmatpush1.msra.mxu0 %v4555
      %4950 = vmatprep.subr.mxu0 0.0
      %4951 = vmatpush1.msra.mxu0 %v4556
      %4952 = vmatprep.subr.mxu0 0.0
      %4953 = vmatpush1.msra.mxu0 %v4557
      %4954 = vmatprep.subr.mxu0 0.0
      %4955 = vmatpush1.msra.mxu0 %v4558
      %4956 = vmatprep.subr.mxu0 0.0
      %4957 = vmatpush1.msra.mxu0 %v4559
      %4958 = vmatprep.mubr.f32.mxu0 %v4677
      %4959 = vmatmul.mubr.f32.gmra.mrb[0].mxu0 %v4676
      %v4960 = vpop.f32.mrb[0].mxu0
      %v4961 = vadd.f32 %v4876, %v4960
      %v4962 = vpop.f32.mrb[0].mxu0
      %4963 = vmatprep.mubr.f32.mxu0 %v4690
      %4964 = vmatmul.mubr.f32.gmra.mrb[0].mxu0 %v4689
      %v4965 = vpop.f32.mrb[0].mxu0
      %v4966 = vadd.f32 %v4881, %v4965
      %v4967 = vpop.f32.mrb[0].mxu0
      %4968 = vmatprep.mubr.f32.mxu0 %v4703
      %4969 = vmatmul.mubr.f32.gmra.mrb[0].mxu0 %v4702
      %v4970 = vpop.f32.mrb[0].mxu0
      %v4971 = vadd.f32 %v4886, %v4970
      %v4972 = vpop.f32.mrb[0].mxu0
      %4973 = vmatprep.mubr.f32.mxu0 %v4716
      %4974 = vmatmul.mubr.f32.gmra.mrb[0].mxu0 %v4715
      %v4975 = vpop.f32.mrb[0].mxu0
      %v4976 = vadd.f32 %v4891, %v4975
      %v4977 = vpop.f32.mrb[0].mxu0
      %4978 = vdwg.mxu0
      %4979 = vmatprep.subr.mxu0 0.0
      %4980 = vmatpush1.msra.mxu0 %v4560
      %4981 = vmatprep.subr.mxu0 0.0
      %4982 = vmatpush1.msra.mxu0 %v4561
      %4983 = vmatprep.subr.mxu0 0.0
      %4984 = vmatpush1.msra.mxu0 %v4562
      %4985 = vmatprep.subr.mxu0 0.0
      %4986 = vmatpush1.msra.mxu0 %v4563
      %4987 = vmatprep.subr.mxu0 0.0
      %4988 = vmatpush1.msra.mxu0 %v4564
      %4989 = vmatprep.subr.mxu0 0.0
      %4990 = vmatpush1.msra.mxu0 %v4565
      %4991 = vmatprep.subr.mxu0 0.0
      %4992 = vmatpush1.msra.mxu0 %v4566
      %4993 = vmatprep.subr.mxu0 0.0
      %4994 = vmatpush1.msra.mxu0 %v4567
      %4995 = vmatprep.subr.mxu0 0.0
      %4996 = vmatpush1.msra.mxu0 %v4568
      %4997 = vmatprep.subr.mxu0 0.0
      %4998 = vmatpush1.msra.mxu0 %v4569
      %4999 = vmatprep.subr.mxu0 0.0
      %5000 = vmatpush1.msra.mxu0 %v4570
      %5001 = vmatprep.subr.mxu0 0.0
      %5002 = vmatpush1.msra.mxu0 %v4571
      %5003 = vmatprep.subr.mxu0 0.0
      %5004 = vmatpush1.msra.mxu0 %v4572
      %5005 = vmatprep.subr.mxu0 0.0
      %5006 = vmatpush1.msra.mxu0 %v4573
      %5007 = vmatprep.subr.mxu0 0.0
      %5008 = vmatpush1.msra.mxu0 %v4574
      %5009 = vmatprep.subr.mxu0 0.0
      %5010 = vmatpush1.msra.mxu0 %v4575
      %5011 = vmatprep.subr.mxu0 0.0
      %5012 = vmatpush1.msra.mxu0 %v4576
      %5013 = vmatprep.subr.mxu0 0.0
      %5014 = vmatpush1.msra.mxu0 %v4577
      %5015 = vmatprep.subr.mxu0 0.0
      %5016 = vmatpush1.msra.mxu0 %v4578
      %5017 = vmatprep.subr.mxu0 0.0
      %5018 = vmatpush1.msra.mxu0 %v4579
      %5019 = vmatprep.subr.mxu0 0.0
      %5020 = vmatpush1.msra.mxu0 %v4580
      %5021 = vmatprep.subr.mxu0 0.0
      %5022 = vmatpush1.msra.mxu0 %v4581
      %5023 = vmatprep.subr.mxu0 0.0
      %5024 = vmatpush1.msra.mxu0 %v4582
      %5025 = vmatprep.subr.mxu0 0.0
      %5026 = vmatpush1.msra.mxu0 %v4583
      %5027 = vmatprep.subr.mxu0 0.0
      %5028 = vmatpush1.msra.mxu0 %v4584
      %5029 = vmatprep.subr.mxu0 0.0
      %5030 = vmatpush1.msra.mxu0 %v4585
      %5031 = vmatprep.subr.mxu0 0.0
      %5032 = vmatpush1.msra.mxu0 %v4586
      %5033 = vmatprep.subr.mxu0 0.0
      %5034 = vmatpush1.msra.mxu0 %v4587
      %5035 = vmatprep.subr.mxu0 0.0
      %5036 = vmatpush1.msra.mxu0 %v4588
      %5037 = vmatprep.subr.mxu0 0.0
      %5038 = vmatpush1.msra.mxu0 %v4589
      %5039 = vmatprep.subr.mxu0 0.0
      %5040 = vmatpush1.msra.mxu0 %v4590
      %5041 = vmatprep.subr.mxu0 0.0
      %5042 = vmatpush1.msra.mxu0 %v4591
      %5043 = vmatprep.mubr.f32.mxu0 %v4679
      %5044 = vmatmul.mubr.f32.gmra.mrb[0].mxu0 %v4678
      %v5045 = vpop.f32.mrb[0].mxu0
      %v5046 = vadd.f32 %v4961, %v5045
      %v5047 = vpop.f32.mrb[0].mxu0
      %5048 = vmatprep.mubr.f32.mxu0 %v4692
      %5049 = vmatmul.mubr.f32.gmra.mrb[0].mxu0 %v4691
      %v5050 = vpop.f32.mrb[0].mxu0
      %v5051 = vadd.f32 %v4966, %v5050
      %v5052 = vpop.f32.mrb[0].mxu0
      %5053 = vmatprep.mubr.f32.mxu0 %v4705
      %5054 = vmatmul.mubr.f32.gmra.mrb[0].mxu0 %v4704
      %v5055 = vpop.f32.mrb[0].mxu0
      %v5056 = vadd.f32 %v4971, %v5055
      %v5057 = vpop.f32.mrb[0].mxu0
      %5058 = vmatprep.mubr.f32.mxu0 %v4718
      %5059 = vmatmul.mubr.f32.gmra.mrb[0].mxu0 %v4717
      %v5060 = vpop.f32.mrb[0].mxu0
      %v5061 = vadd.f32 %v4976, %v5060
      %v5062 = vpop.f32.mrb[0].mxu0
      %5063 = vdwg.mxu0
      %5064 = vmatprep.subr.mxu0 0.0
      %5065 = vmatpush1.msra.mxu0 %v4592
      %5066 = vmatprep.subr.mxu0 0.0
      %5067 = vmatpush1.msra.mxu0 %v4593
      %5068 = vmatprep.subr.mxu0 0.0
      %5069 = vmatpush1.msra.mxu0 %v4594
      %5070 = vmatprep.subr.mxu0 0.0
      %5071 = vmatpush1.msra.mxu0 %v4595
      %5072 = vmatprep.subr.mxu0 0.0
      %5073 = vmatpush1.msra.mxu0 %v4596
      %5074 = vmatprep.subr.mxu0 0.0
      %5075 = vmatpush1.msra.mxu0 %v4597
      %5076 = vmatprep.subr.mxu0 0.0
      %5077 = vmatpush1.msra.mxu0 %v4598
      %5078 = vmatprep.subr.mxu0 0.0
      %5079 = vmatpush1.msra.mxu0 %v4599
      %5080 = vmatprep.subr.mxu0 0.0
      %5081 = vmatpush1.msra.mxu0 %v4600
      %5082 = vmatprep.subr.mxu0 0.0
      %5083 = vmatpush1.msra.mxu0 %v4601
      %5084 = vmatprep.subr.mxu0 0.0
      %5085 = vmatpush1.msra.mxu0 %v4602
      %5086 = vmatprep.subr.mxu0 0.0
      %5087 = vmatpush1.msra.mxu0 %v4603
      %5088 = vmatprep.subr.mxu0 0.0
      %5089 = vmatpush1.msra.mxu0 %v4604
      %5090 = vmatprep.subr.mxu0 0.0
      %5091 = vmatpush1.msra.mxu0 %v4605
      %5092 = vmatprep.subr.mxu0 0.0
      %5093 = vmatpush1.msra.mxu0 %v4606
      %5094 = vmatprep.subr.mxu0 0.0
      %5095 = vmatpush1.msra.mxu0 %v4607
      %5096 = vmatprep.subr.mxu0 0.0
      %5097 = vmatpush1.msra.mxu0 %v4608
      %5098 = vmatprep.subr.mxu0 0.0
      %5099 = vmatpush1.msra.mxu0 %v4609
      %5100 = vmatprep.subr.mxu0 0.0
      %5101 = vmatpush1.msra.mxu0 %v4610
      %5102 = vmatprep.subr.mxu0 0.0
      %5103 = vmatpush1.msra.mxu0 %v4611
      %5104 = vmatprep.subr.mxu0 0.0
      %5105 = vmatpush1.msra.mxu0 %v4612
      %5106 = vmatprep.subr.mxu0 0.0
      %5107 = vmatpush1.msra.mxu0 %v4613
      %5108 = vmatprep.subr.mxu0 0.0
      %5109 = vmatpush1.msra.mxu0 %v4614
      %5110 = vmatprep.subr.mxu0 0.0
      %5111 = vmatpush1.msra.mxu0 %v4615
      %5112 = vmatprep.subr.mxu0 0.0
      %5113 = vmatpush1.msra.mxu0 %v4616
      %5114 = vmatprep.subr.mxu0 0.0
      %5115 = vmatpush1.msra.mxu0 %v4617
      %5116 = vmatprep.subr.mxu0 0.0
      %5117 = vmatpush1.msra.mxu0 %v4618
      %5118 = vmatprep.subr.mxu0 0.0
      %5119 = vmatpush1.msra.mxu0 %v4619
      %5120 = vmatprep.subr.mxu0 0.0
      %5121 = vmatpush1.msra.mxu0 %v4620
      %5122 = vmatprep.subr.mxu0 0.0
      %5123 = vmatpush1.msra.mxu0 %v4621
      %5124 = vmatprep.subr.mxu0 0.0
      %5125 = vmatpush1.msra.mxu0 %v4622
      %5126 = vmatprep.subr.mxu0 0.0
      %5127 = vmatpush1.msra.mxu0 %v4623
      %5128 = vmatprep.mubr.f32.mxu0 %v4681
      %5129 = vmatmul.mubr.f32.gmra.mrb[0].mxu0 %v4680
      %v5130 = vpop.f32.mrb[0].mxu0
      %v5131 = vadd.f32 %v5046, %v5130
      %v5132 = vpop.f32.mrb[0].mxu0
      %5133 = vmatprep.mubr.f32.mxu0 %v4694
      %5134 = vmatmul.mubr.f32.gmra.mrb[0].mxu0 %v4693
      %v5135 = vpop.f32.mrb[0].mxu0
      %v5136 = vadd.f32 %v5051, %v5135
      %v5137 = vpop.f32.mrb[0].mxu0
      %5138 = vmatprep.mubr.f32.mxu0 %v4707
      %5139 = vmatmul.mubr.f32.gmra.mrb[0].mxu0 %v4706
      %v5140 = vpop.f32.mrb[0].mxu0
      %v5141 = vadd.f32 %v5056, %v5140
      %v5142 = vpop.f32.mrb[0].mxu0
      %5143 = vmatprep.mubr.f32.mxu0 %v4720
      %5144 = vmatmul.mubr.f32.gmra.mrb[0].mxu0 %v4719
      %v5145 = vpop.f32.mrb[0].mxu0
      %v5146 = vadd.f32 %v5061, %v5145
      %v5147 = vpop.f32.mrb[0].mxu0
      %5148 = vdwg.mxu0
      %5149 = vmatprep.subr.mxu0 0.0
      %5150 = vmatpush1.msra.mxu0 %v4624
      %5151 = vmatprep.subr.mxu0 0.0
      %5152 = vmatpush1.msra.mxu0 %v4625
      %5153 = vmatprep.subr.mxu0 0.0
      %5154 = vmatpush1.msra.mxu0 %v4626
      %5155 = vmatprep.subr.mxu0 0.0
      %5156 = vmatpush1.msra.mxu0 %v4627
      %5157 = vmatprep.subr.mxu0 0.0
      %5158 = vmatpush1.msra.mxu0 %v4628
      %5159 = vmatprep.subr.mxu0 0.0
      %5160 = vmatpush1.msra.mxu0 %v4629
      %5161 = vmatprep.subr.mxu0 0.0
      %5162 = vmatpush1.msra.mxu0 %v4630
      %5163 = vmatprep.subr.mxu0 0.0
      %5164 = vmatpush1.msra.mxu0 %v4631
      %5165 = vmatprep.subr.mxu0 0.0
      %5166 = vmatpush1.msra.mxu0 %v4632
      %5167 = vmatprep.subr.mxu0 0.0
      %5168 = vmatpush1.msra.mxu0 %v4633
      %5169 = vmatprep.subr.mxu0 0.0
      %5170 = vmatpush1.msra.mxu0 %v4634
      %5171 = vmatprep.subr.mxu0 0.0
      %5172 = vmatpush1.msra.mxu0 %v4635
      %5173 = vmatprep.subr.mxu0 0.0
      %5174 = vmatpush1.msra.mxu0 %v4636
      %5175 = vmatprep.subr.mxu0 0.0
      %5176 = vmatpush1.msra.mxu0 %v4637
      %5177 = vmatprep.subr.mxu0 0.0
      %5178 = vmatpush1.msra.mxu0 %v4638
      %5179 = vmatprep.subr.mxu0 0.0
      %5180 = vmatpush1.msra.mxu0 %v4639
      %5181 = vmatprep.subr.mxu0 0.0
      %5182 = vmatpush1.msra.mxu0 %v4640
      %5183 = vmatprep.subr.mxu0 0.0
      %5184 = vmatpush1.msra.mxu0 %v4641
      %5185 = vmatprep.subr.mxu0 0.0
      %5186 = vmatpush1.msra.mxu0 %v4642
      %5187 = vmatprep.subr.mxu0 0.0
      %5188 = vmatpush1.msra.mxu0 %v4643
      %5189 = vmatprep.subr.mxu0 0.0
      %5190 = vmatpush1.msra.mxu0 %v4644
      %5191 = vmatprep.subr.mxu0 0.0
      %5192 = vmatpush1.msra.mxu0 %v4645
      %5193 = vmatprep.subr.mxu0 0.0
      %5194 = vmatpush1.msra.mxu0 %v4646
      %5195 = vmatprep.subr.mxu0 0.0
      %5196 = vmatpush1.msra.mxu0 %v4647
      %5197 = vmatprep.subr.mxu0 0.0
      %5198 = vmatpush1.msra.mxu0 %v4648
      %5199 = vmatprep.subr.mxu0 0.0
      %5200 = vmatpush1.msra.mxu0 %v4649
      %5201 = vmatprep.subr.mxu0 0.0
      %5202 = vmatpush1.msra.mxu0 %v4650
      %5203 = vmatprep.subr.mxu0 0.0
      %5204 = vmatpush1.msra.mxu0 %v4651
      %5205 = vmatprep.subr.mxu0 0.0
      %5206 = vmatpush1.msra.mxu0 %v4652
      %5207 = vmatprep.subr.mxu0 0.0
      %5208 = vmatpush1.msra.mxu0 %v4653
      %5209 = vmatprep.subr.mxu0 0.0
      %5210 = vmatpush1.msra.mxu0 %v4654
      %5211 = vmatprep.subr.mxu0 0.0
      %5212 = vmatpush1.msra.mxu0 %v4655
      %5213 = vmatprep.mubr.f32.mxu0 %v4683
      %5214 = vmatmul.mubr.f32.gmra.mrb[0].mxu0 %v4682
      %v5215 = vpop.f32.mrb[0].mxu0
      %v5216 = vadd.f32 %v5131, %v5215
      %v5217 = vpop.f32.mrb[0].mxu0
      %5218 = vmatprep.mubr.f32.mxu0 %v4696
      %5219 = vmatmul.mubr.f32.gmra.mrb[0].mxu0 %v4695
      %v5220 = vpop.f32.mrb[0].mxu0
      %v5221 = vadd.f32 %v5136, %v5220
      %v5222 = vpop.f32.mrb[0].mxu0
      %5223 = vmatprep.mubr.f32.mxu0 %v4709
      %5224 = vmatmul.mubr.f32.gmra.mrb[0].mxu0 %v4708
      %v5225 = vpop.f32.mrb[0].mxu0
      %v5226 = vadd.f32 %v5141, %v5225
      %v5227 = vpop.f32.mrb[0].mxu0
      %5228 = vmatprep.mubr.f32.mxu0 %v4722
      %5229 = vmatmul.mubr.f32.gmra.mrb[0].mxu0 %v4721
      %v5230 = vpop.f32.mrb[0].mxu0
      %v5231 = vadd.f32 %v5146, %v5230
      %v5232 = vpop.f32.mrb[0].mxu0
      %5233 = vdwg.mxu0
      %5234 = vmatprep.subr.mxu0 0.0
      %5235 = vmatpush1.msra.mxu0 %v4656
      %5236 = vmatprep.subr.mxu0 0.0
      %5237 = vmatpush1.msra.mxu0 %v4657
      %5238 = vmatprep.subr.mxu0 0.0
      %5239 = vmatpush1.msra.mxu0 %v4658
      %5240 = vmatprep.subr.mxu0 0.0
      %5241 = vmatpush1.msra.mxu0 %v4659
      %5242 = vmatprep.subr.mxu0 0.0
      %5243 = vmatpush1.msra.mxu0 %v4660
      %5244 = vmatprep.subr.mxu0 0.0
      %5245 = vmatpush1.msra.mxu0 %v4661
      %5246 = vmatprep.subr.mxu0 0.0
      %5247 = vmatpush1.msra.mxu0 %v4662
      %5248 = vmatprep.subr.mxu0 0.0
      %5249 = vmatpush1.msra.mxu0 %v4663
      %5250 = vmatprep.subr.mxu0 0.0
      %5251 = vmatpush1.msra.mxu0 %v4664
      %5252 = vmatprep.subr.mxu0 0.0
      %5253 = vmatpush1.msra.mxu0 %v4665
      %5254 = vmatprep.subr.mxu0 0.0
      %5255 = vmatpush1.msra.mxu0 %v4666
      %5256 = vmatprep.subr.mxu0 0.0
      %5257 = vmatpush1.msra.mxu0 %v4667
      %5258 = vmatprep.subr.mxu0 0.0
      %5259 = vmatpush1.msra.mxu0 %v4668
      %5260 = vmatprep.subr.mxu0 0.0
      %5261 = vmatpush1.msra.mxu0 %v4669
      %5262 = vmatprep.subr.mxu0 0.0
      %5263 = vmatpush1.msra.mxu0 %v4670
      %5264 = vmatprep.subr.mxu0 0.0
      %5265 = vmatpush1.msra.mxu0 %v4671
      %5266 = vmatprep.subr.mxu0 0.0
      %5267 = vmatpush1.msra.mxu0 0.0
      %5268 = vmatprep.subr.mxu0 0.0
      %5269 = vmatpush1.msra.mxu0 0.0
      %5270 = vmatprep.subr.mxu0 0.0
      %5271 = vmatpush1.msra.mxu0 0.0
      %5272 = vmatprep.subr.mxu0 0.0
      %5273 = vmatpush1.msra.mxu0 0.0
      %5274 = vmatprep.subr.mxu0 0.0
      %5275 = vmatpush1.msra.mxu0 0.0
      %5276 = vmatprep.subr.mxu0 0.0
      %5277 = vmatpush1.msra.mxu0 0.0
      %5278 = vmatprep.subr.mxu0 0.0
      %5279 = vmatpush1.msra.mxu0 0.0
      %5280 = vmatprep.subr.mxu0 0.0
      %5281 = vmatpush1.msra.mxu0 0.0
      %5282 = vmatprep.subr.mxu0 0.0
      %5283 = vmatpush1.msra.mxu0 0.0
      %5284 = vmatprep.subr.mxu0 0.0
      %5285 = vmatpush1.msra.mxu0 0.0
      %5286 = vmatprep.subr.mxu0 0.0
      %5287 = vmatpush1.msra.mxu0 0.0
      %5288 = vmatprep.subr.mxu0 0.0
      %5289 = vmatpush1.msra.mxu0 0.0
      %5290 = vmatprep.subr.mxu0 0.0
      %5291 = vmatpush1.msra.mxu0 0.0
      %5292 = vmatprep.subr.mxu0 0.0
      %5293 = vmatpush1.msra.mxu0 0.0
      %5294 = vmatprep.subr.mxu0 0.0
      %5295 = vmatpush1.msra.mxu0 0.0
      %5296 = vmatprep.subr.mxu0 0.0
      %5297 = vmatpush1.msra.mxu0 0.0
      %5298 = vmatprep.mubr.f32.mxu0 0.0
      %5299 = vmatmul.mubr.f32.gmra.mrb[0].mxu0 %v4684
      %v5300 = vpop.f32.mrb[0].mxu0
      %v5301 = vadd.f32 %v5216, %v5300
      %v5302 = vpop.f32.mrb[0].mxu0
      %5303 = vmatprep.mubr.f32.mxu0 0.0
      %5304 = vmatmul.mubr.f32.gmra.mrb[0].mxu0 %v4697
      %v5305 = vpop.f32.mrb[0].mxu0
      %v5306 = vadd.f32 %v5221, %v5305
      %v5307 = vpop.f32.mrb[0].mxu0
      %5308 = vmatprep.mubr.f32.mxu0 0.0
      %5309 = vmatmul.mubr.f32.gmra.mrb[0].mxu0 %v4710
      %v5310 = vpop.f32.mrb[0].mxu0
      %v5311 = vadd.f32 %v5226, %v5310
      %v5312 = vpop.f32.mrb[0].mxu0
      %5313 = vmatprep.mubr.f32.mxu0 0.0
      %5314 = vmatmul.mubr.f32.gmra.mrb[0].mxu0 %v4723
      %v5315 = vpop.f32.mrb[0].mxu0
      %v5316 = vadd.f32 %v5231, %v5315
      %v5317 = vpop.f32.mrb[0].mxu0
      %5318 = vdwg.mxu0
      %5319 = vst [vmem:[%s172] sm:$0xff] %v5301
      %5320 = vst [vmem:[%s172 + $0x8] sm:$0xff] %v5306
      %5321 = vst [vmem:[%s172 + $0x10] sm:$0xff] %v5311
      %5322 = vst [vmem:[%s172 + $0x18] sm:$0xff] %v5316
      %s5323 = smul.u32 4, %s14
      %p5324 = scmp.lt.s32.totalorder %s5323, 15
      %s5325 = scalar_select %p5324, %s5323, 15
      %s5326 = smul.addr %s5325, 8
      %s5327 = scalar_lea.vmem %s3, %s5326
      // Predicated region
      $region33: #{_forward_impl.2} parent=31 // pred_check
        %p5328 = pneg %p100
      $region34: #{_forward_impl.2} parent=31 // pred_check_branch
        %5330 = sbr.rel (%p5328) target = $region36
      $region35: #{_forward_impl.2} parent=31 // pred_region
        %s5331 = smul.u32 4, %s14
      $region36: #{_forward_impl.2} parent=31 // pred_fallthru
        _
    $region32: #{_forward_impl.2} parent=5 // pred_fallthru
      _
    %p5332 = scmp.le.s32.totalorder 2, %s9
    // Predicated region
    $region37: #{_forward_impl.2} parent=5 // pred_check
      %p5333 = pneg %p5332
    $region38: #{_forward_impl.2} parent=5 // pred_check_branch
      %5335 = sbr.rel (%p5333) target = $region40
    $region39: #{_forward_impl.2} parent=5 // pred_region
      %s5336 = ssub.s32 %s9, 2
      // Predicated region
      $region41: #{_forward_impl.2} parent=39 // pred_check
        %p5337 = pneg %p106
      $region42: #{_forward_impl.2} parent=39 // pred_check_branch
        %5339 = sbr.rel (%p5337) target = $region44
      $region43: #{_forward_impl.2} parent=39 // pred_region
        %s5340 = smul.u32 4, %s15
        %p5341 = scmp.lt.s32.totalorder %s5340, 15
        %s5342 = scalar_select %p5341, %s5340, 15
        %s5343 = smul.addr %s5342, 8
        %s5344 = scalar_lea.vmem %s3, %s5343
      $region44: #{_forward_impl.2} parent=39 // pred_fallthru
        _
    $region40: #{_forward_impl.2} parent=5 // pred_fallthru
      _
  $region6: #{_forward_impl.2} parent=0 // loop_footer
    %s13 = sadd.s32 1, %s9
  $region7: #{_forward_impl.2} parent=0 // loop_footer_branch
    %8 = sbr.rel target = $region3
  $region8: #{_forward_impl.2} parent=0 // loop_exit
    _

// kernel: _forward_impl.3
$region0: #{_forward_impl.3}
  #allocation0 [shape = 'u32[]', space=smem, size = 0x4, offset = 0x4, fixed_abs, tag = 'smem constant byte address 0x4 - core index']
  #allocation1 [shape = 'u32[144,128]{1,0:T(1,128)}', space=vmem, size = 0x12000, scoped, tag = 'internal scratch']
  %s0 = inlined_call_operand.vmem [shape: f32[2,64], index: 0, kind: input, shape index: {}]
  %s1 = inlined_call_operand.vmem [shape: f32[2,64], index: 1, kind: input, shape index: {}]
  %s2 = inlined_call_operand.vmem [shape: f32[64,6], index: 2, kind: input, shape index: {}]
  %s3 = inlined_call_operand.vmem [shape: f32[64,6], index: 3, kind: input, shape index: {}]
  %s4 = inlined_call_operand.vmem [shape: f32[1,6], index: 4, kind: input, shape index: {}]
  %s5 = inlined_call_operand.hbm [shape: f32[2,6], index: 5, kind: output, shape index: {}]
  %s6 = sld [smem:[#allocation0]]
  $region30: #{_forward_impl.3} parent=0
    _
  %s8 = ssub.s32 1, %s6
  %s9 = scalar_select 0, %s8, %s6
  $region1: #{_forward_impl.3} parent=0
    #allocation2 [shape = 'u8[1024]{0}', space=vmem, size = 0x400, scoped, tag = 'output window, operand 0, single buffered']
    #allocation3 [shape = 's32[1]{0}', space=sflag, size = 0x4, scoped, tag = 'scoped memory for _forward_impl.3']
    %10 = vsyncpa [#allocation3], 0
    // Predicated region
    $region2: #{_forward_impl.3} parent=1 // pred_check
      _
    $region3: #{_forward_impl.3} parent=1 // pred_check_branch
      %12 = sbr.rel (0) target = $region5
    $region4: #{_forward_impl.3} parent=1 // pred_region
      _
    $region5: #{_forward_impl.3} parent=1 // pred_fallthru
      _
    // Predicated region
    $region6: #{_forward_impl.3} parent=1 // pred_check
      _
    $region7: #{_forward_impl.3} parent=1 // pred_check_branch
      %14 = sbr.rel (0) target = $region9
    $region8: #{_forward_impl.3} parent=1 // pred_region
      _
    $region9: #{_forward_impl.3} parent=1 // pred_fallthru
      _
    // Predicated region
    $region10: #{_forward_impl.3} parent=1 // pred_check
      _
    $region11: #{_forward_impl.3} parent=1 // pred_check_branch
      %16 = sbr.rel (0) target = $region13
    $region12: #{_forward_impl.3} parent=1 // pred_region
      _
    $region13: #{_forward_impl.3} parent=1 // pred_fallthru
      _
    // Predicated region
    $region14: #{_forward_impl.3} parent=1 // pred_check
      _
    $region15: #{_forward_impl.3} parent=1 // pred_check_branch
      %18 = sbr.rel (0) target = $region17
    $region16: #{_forward_impl.3} parent=1 // pred_region
      _
    $region17: #{_forward_impl.3} parent=1 // pred_fallthru
      _
    // Predicated region
    $region18: #{_forward_impl.3} parent=1 // pred_check
      _
    $region19: #{_forward_impl.3} parent=1 // pred_check_branch
      %20 = sbr.rel (0) target = $region21
    $region20: #{_forward_impl.3} parent=1 // pred_region
      _
    $region21: #{_forward_impl.3} parent=1 // pred_fallthru
      _
    %v21 = vld [vmem:[%s0] sm:$0x3]
    %v22 = vld [vmem:[%s2] sm:$0xff]
    %v23 = vld [vmem:[%s2 + $0x8] sm:$0xff]
    %v24 = vld [vmem:[%s2 + $0x10] sm:$0xff]
    %v25 = vld [vmem:[%s2 + $0x18] sm:$0xff]
    %v26 = vld [vmem:[%s2 + $0x20] sm:$0xff]
    %v27 = vld [vmem:[%s2 + $0x28] sm:$0xff]
    %v28 = vld [vmem:[%s2 + $0x30] sm:$0xff]
    %v29 = vld [vmem:[%s2 + $0x38] sm:$0xff]
    %v30 = vld [vmem:[%s1] sm:$0x3]
    %v31 = vld [vmem:[%s3] sm:$0xff]
    %v32 = vld [vmem:[%s3 + $0x8] sm:$0xff]
    %v33 = vld [vmem:[%s3 + $0x10] sm:$0xff]
    %v34 = vld [vmem:[%s3 + $0x18] sm:$0xff]
    %v35 = vld [vmem:[%s3 + $0x20] sm:$0xff]
    %v36 = vld [vmem:[%s3 + $0x28] sm:$0xff]
    %v37 = vld [vmem:[%s3 + $0x30] sm:$0xff]
    %v38 = vld [vmem:[%s3 + $0x38] sm:$0xff]
    %vm39 = vcmask 523264
    %v41 = vsel %vm39, %v30, 0
    %43 = vmatprep.subr.mxu0 0.0
    %44 = vmatpush1.msra.mxu0 %v31
    %45 = vmatprep.subr.mxu0 0.0
    %46 = vmatpush1.msra.mxu0 %v32
    %47 = vmatprep.subr.mxu0 0.0
    %48 = vmatpush1.msra.mxu0 %v33
    %49 = vmatprep.subr.mxu0 0.0
    %50 = vmatpush1.msra.mxu0 %v34
    %51 = vmatprep.subr.mxu0 0.0
    %52 = vmatpush1.msra.mxu0 %v35
    %53 = vmatprep.subr.mxu0 0.0
    %54 = vmatpush1.msra.mxu0 %v36
    %55 = vmatprep.subr.mxu0 0.0
    %56 = vmatpush1.msra.mxu0 %v37
    %57 = vmatprep.subr.mxu0 0.0
    %58 = vmatpush1.msra.mxu0 %v38
    %59 = vmatprep.subr.mxu0 0.0
    %60 = vmatpush1.msra.mxu0 0.0
    %61 = vmatprep.subr.mxu0 0.0
    %62 = vmatpush1.msra.mxu0 0.0
    %63 = vmatprep.subr.mxu0 0.0
    %64 = vmatpush1.msra.mxu0 0.0
    %65 = vmatprep.subr.mxu0 0.0
    %66 = vmatpush1.msra.mxu0 0.0
    %67 = vmatprep.subr.mxu0 0.0
    %68 = vmatpush1.msra.mxu0 0.0
    %69 = vmatprep.subr.mxu0 0.0
    %70 = vmatpush1.msra.mxu0 0.0
    %71 = vmatprep.subr.mxu0 0.0
    %72 = vmatpush1.msra.mxu0 0.0
    %73 = vmatprep.subr.mxu0 0.0
    %74 = vmatpush1.msra.mxu0 0.0
    %75 = vmatprep.subr.mxu0 0.0
    %76 = vmatpush1.msra.mxu0 0.0
    %77 = vmatprep.subr.mxu0 0.0
    %78 = vmatpush1.msra.mxu0 0.0
    %79 = vmatprep.subr.mxu0 0.0
    %80 = vmatpush1.msra.mxu0 0.0
    %81 = vmatprep.subr.mxu0 0.0
    %82 = vmatpush1.msra.mxu0 0.0
    %83 = vmatprep.subr.mxu0 0.0
    %84 = vmatpush1.msra.mxu0 0.0
    %85 = vmatprep.subr.mxu0 0.0
    %86 = vmatpush1.msra.mxu0 0.0
    %87 = vmatprep.subr.mxu0 0.0
    %88 = vmatpush1.msra.mxu0 0.0
    %89 = vmatprep.subr.mxu0 0.0
    %90 = vmatpush1.msra.mxu0 0.0
    %91 = vmatprep.subr.mxu0 0.0
    %92 = vmatpush1.msra.mxu0 0.0
    %93 = vmatprep.subr.mxu0 0.0
    %94 = vmatpush1.msra.mxu0 0.0
    %95 = vmatprep.subr.mxu0 0.0
    %96 = vmatpush1.msra.mxu0 0.0
    %97 = vmatprep.subr.mxu0 0.0
    %98 = vmatpush1.msra.mxu0 0.0
    %99 = vmatprep.subr.mxu0 0.0
    %100 = vmatpush1.msra.mxu0 0.0
    %101 = vmatprep.subr.mxu0 0.0
    %102 = vmatpush1.msra.mxu0 0.0
    %103 = vmatprep.subr.mxu0 0.0
    %104 = vmatpush1.msra.mxu0 0.0
    %105 = vmatprep.subr.mxu0 0.0
    %106 = vmatpush1.msra.mxu0 0.0
    %107 = vmatprep.mubr.f32.mxu0 0.0
    %108 = vmatmul.mubr.f32.gmra.mrb[0].mxu0 %v41
    %v109 = vpop.f32.mrb[0].mxu0
    %v110 = vadd.f32 0.0, %v109
    %v111 = vpop.f32.mrb[0].mxu0
    %112 = vdwg.mxu0
    %v114 = vsel %vm39, %v21, 0
    %116 = vmatprep.subr.mxu0 0.0
    %117 = vmatpush1.msra.mxu0 %v22
    %118 = vmatprep.subr.mxu0 0.0
    %119 = vmatpush1.msra.mxu0 %v23
    %120 = vmatprep.subr.mxu0 0.0
    %121 = vmatpush1.msra.mxu0 %v24
    %122 = vmatprep.subr.mxu0 0.0
    %123 = vmatpush1.msra.mxu0 %v25
    %124 = vmatprep.subr.mxu0 0.0
    %125 = vmatpush1.msra.mxu0 %v26
    %126 = vmatprep.subr.mxu0 0.0
    %127 = vmatpush1.msra.mxu0 %v27
    %128 = vmatprep.subr.mxu0 0.0
    %129 = vmatpush1.msra.mxu0 %v28
    %130 = vmatprep.subr.mxu0 0.0
    %131 = vmatpush1.msra.mxu0 %v29
    %132 = vmatprep.subr.mxu0 0.0
    %133 = vmatpush1.msra.mxu0 0.0
    %134 = vmatprep.subr.mxu0 0.0
    %135 = vmatpush1.msra.mxu0 0.0
    %136 = vmatprep.subr.mxu0 0.0
    %137 = vmatpush1.msra.mxu0 0.0
    %138 = vmatprep.subr.mxu0 0.0
    %139 = vmatpush1.msra.mxu0 0.0
    %140 = vmatprep.subr.mxu0 0.0
    %141 = vmatpush1.msra.mxu0 0.0
    %142 = vmatprep.subr.mxu0 0.0
    %143 = vmatpush1.msra.mxu0 0.0
    %144 = vmatprep.subr.mxu0 0.0
    %145 = vmatpush1.msra.mxu0 0.0
    %146 = vmatprep.subr.mxu0 0.0
    %147 = vmatpush1.msra.mxu0 0.0
    %148 = vmatprep.subr.mxu0 0.0
    %149 = vmatpush1.msra.mxu0 0.0
    %150 = vmatprep.subr.mxu0 0.0
    %151 = vmatpush1.msra.mxu0 0.0
    %152 = vmatprep.subr.mxu0 0.0
    %153 = vmatpush1.msra.mxu0 0.0
    %154 = vmatprep.subr.mxu0 0.0
    %155 = vmatpush1.msra.mxu0 0.0
    %156 = vmatprep.subr.mxu0 0.0
    %157 = vmatpush1.msra.mxu0 0.0
    %158 = vmatprep.subr.mxu0 0.0
    %159 = vmatpush1.msra.mxu0 0.0
    %160 = vmatprep.subr.mxu0 0.0
    %161 = vmatpush1.msra.mxu0 0.0
    %162 = vmatprep.subr.mxu0 0.0
    %163 = vmatpush1.msra.mxu0 0.0
    %164 = vmatprep.subr.mxu0 0.0
    %165 = vmatpush1.msra.mxu0 0.0
    %166 = vmatprep.subr.mxu0 0.0
    %167 = vmatpush1.msra.mxu0 0.0
    %168 = vmatprep.subr.mxu0 0.0
    %169 = vmatpush1.msra.mxu0 0.0
    %170 = vmatprep.subr.mxu0 0.0
    %171 = vmatpush1.msra.mxu0 0.0
    %172 = vmatprep.subr.mxu0 0.0
    %173 = vmatpush1.msra.mxu0 0.0
    %174 = vmatprep.subr.mxu0 0.0
    %175 = vmatpush1.msra.mxu0 0.0
    %176 = vmatprep.subr.mxu0 0.0
    %177 = vmatpush1.msra.mxu0 0.0
    %178 = vmatprep.subr.mxu0 0.0
    %179 = vmatpush1.msra.mxu0 0.0
    %180 = vmatprep.mubr.f32.mxu0 0.0
    %181 = vmatmul.mubr.f32.gmra.mrb[0].mxu0 %v114
    %v182 = vpop.f32.mrb[0].mxu0
    %v183 = vadd.f32 %v110, %v182
    %v184 = vpop.f32.mrb[0].mxu0
    %185 = vdwg.mxu0
    %v186 = vld [vmem:[%s4] sm:$0x1]
    %v188 = vlaneseq
    %v189 = vshrl.u32 %v188, 7
    %v190 = vsub.s32 0, %v189
    %v191 = vrot.slane %v186, %v190
    %v193 = vadd.f32 %v183, %v191
    %vm194 = vcmask 41984
    %195 = vst.msk [vmem:[#allocation2] sm:$0x3] %vm194, %v193
    // Predicated region
    $region22: #{_forward_impl.3} parent=1 // pred_check
      _
    $region23: #{_forward_impl.3} parent=1 // pred_check_branch
      %197 = sbr.rel (0) target = $region25
    $region24: #{_forward_impl.3} parent=1 // pred_region
      %s199 = ssub.s32 32, 32
      %200 = vsyncadd [#allocation3], %s199
      %s202 = sshll.u32 [#allocation2], 4
      %s203 = int_to_ptr.vmem [resolvable:$true] %s202
      %205 = dma.vmem_to_hbm [thread:$0]  %s203, 32, %s5, [#allocation3]
    $region25: #{_forward_impl.3} parent=1 // pred_fallthru
      _
    // Predicated region
    $region26: #{_forward_impl.3} parent=1 // pred_check
      _
    $region27: #{_forward_impl.3} parent=1 // pred_check_branch
      %207 = sbr.rel (0) target = $region29
    $region28: #{_forward_impl.3} parent=1 // pred_region
      %208 = dma.done [#allocation3], 32
    $region29: #{_forward_impl.3} parent=1 // pred_fallthru
      _
    %209 = vsyncpa [#allocation3], 1

</llo_original>
